<compile_context>
chip_gen: v5e
topology: v5e:2x2
jax: 0.10.0
libtpu: 0.0.40
codegen_flags: <defaults>
</compile_context>

<pallas_src>
import math
import functools

import jax
import jax.numpy as jnp
from jax import lax
from jax.experimental import pallas as pl
from jax.experimental.pallas import tpu as pltpu

EPS = 1e-8
INV_SQRT2 = 1.0 / math.sqrt(2.0)


def fused_mamba_kernel(x_ref, wp_ref, bp_ref, nscale_ref, w1_ref, b1_ref,
                       w2_ref, b2_ref, fscale_ref, wc_ref, bc_ref,
                       out_ref, acc_ref,
                       *, n_layer, seq_len, inv_len, approx_recip,
                       gelu_dtype, axpy_input_proj, needs_mask):
    """One grid step = (batch tile b, seq tile s).

    x_ref:   (tb, tl, input_dim) activation tile
    out_ref: (tb, 1, num_classes) logits (constant block across the seq axis)
    acc_ref: (tb, d_model)        running per-batch sum of the final RMSNorm output
    """
    s = pl.program_id(1)

    @pl.when(s == 0)
    def _init():
        acc_ref[...] = jnp.zeros_like(acc_ref)

    tb, tl, din = x_ref.shape
    d_model = wp_ref.shape[1]
    rows = tb * tl
    mm_dtype = wp_ref.dtype   # matmul dtype (f32 or bf16); accumulation is always f32

    def rmsnorm(v, scale):
        # torch: norm = x.norm(2,-1,keepdim)/sqrt(d) == sqrt(mean(x^2));
        #        y = scale * x / (norm + eps)
        ms = jnp.mean(v * v, axis=-1, keepdims=True)
        inv = pl.reciprocal(jnp.sqrt(ms) + EPS, approx=approx_recip)
        return v * inv * scale

    # Flatten (tb, tl) rows onto sublanes; features stay on lanes.
    x = x_ref[...].reshape(rows, din)

    if axpy_input_proj:
        # ECG inputs have only a handful of channels: an MXU pass would be >95%
        # wasted K plus a relayout of the lane-sparse x tile -- do VPU AXPYs instead.
        wp = wp_ref[...].astype(jnp.float32)
        h = jnp.zeros((rows, d_model), jnp.float32)
        for c in range(din):
            h = h + x[:, c:c + 1] * wp[c:c + 1, :]
        h = h + bp_ref[...]
    else:
        h = jnp.dot(x.astype(mm_dtype), wp_ref[...],
                    preferred_element_type=jnp.float32) + bp_ref[...]

    # SimpleMambaBlock stack (n_layer is small & static -> unrolled)
    for l in range(n_layer):
        res = h
        hn = rmsnorm(h, nscale_ref[pl.ds(l, 1), :])
        a = (jnp.dot(hn.astype(mm_dtype), w1_ref[l],
                     preferred_element_type=jnp.float32)
             + b1_ref[pl.ds(l, 1), :])
        # exact GELU (PyTorch nn.GELU default, erf-based); on bf16-VPU chips the
        # erf/mults run in bf16 (a is cast to bf16 for the next matmul anyway).
        a = a.astype(gelu_dtype)
        a = 0.5 * a * (1.0 + lax.erf(a * INV_SQRT2))
        h = (jnp.dot(a.astype(mm_dtype), w2_ref[l],
                     preferred_element_type=jnp.float32)
             + b2_ref[pl.ds(l, 1), :] + res)

    # final backbone RMSNorm
    h = rmsnorm(h, fscale_ref[...]).reshape(tb, tl, d_model)   # f32

    # fused AdaptiveAvgPool1d(1): per-batch partial sum over this seq tile.
    # Padded rows (from rounding L up to the tile) are masked out: they are NOT zero
    # after bias+GELU, so they must not contribute to the pooled mean.
    if needs_mask:
        pos = s * tl + lax.broadcasted_iota(jnp.int32, (1, tl, 1), 1)
        h = jnp.where(pos < seq_len, h, 0.0)
    acc_ref[...] += jnp.sum(h, axis=1)

    # fused classifier at the last seq step
    @pl.when(s == pl.num_programs(1) - 1)
    def _finalize():
        pooled = acc_ref[...] * inv_len                        # mean over the ORIGINAL L
        logits = (jnp.dot(pooled.astype(mm_dtype), wc_ref[...],
                          preferred_element_type=jnp.float32)
                  + bc_ref[...])
        out_ref[...] = logits.reshape(out_ref.shape).astype(out_ref.dtype)


def _round_up(v, m):
    return ((v + m - 1) // m) * m


def _device_kind():
    try:
        return jax.devices()[0].device_kind.lower()
    except Exception:
        return ""


def _vmem_limit_bytes(kind):
    # v7x: 64 MiB physical per TensorCore -> do NOT request all of it.
    if any(t in kind for t in ("v7", "7x")):
        return 48 * 1024 * 1024
    # v4/v5e/v6e: 128 MiB physical -> raise well above the 16/32 MiB scoped default.
    if any(t in kind for t in ("v4", "v5", "v6")):
        return 100 * 1024 * 1024
    return None   # unknown hardware: leave the compiler default


def _pick_batch_tile(batch, tl, max_rows=4096):
    """Largest divisor of batch that (a) keeps tb*tl rows bounded and (b) when
    possible yields >= 2 batch tiles so the parallel axis can use both v7x cores."""
    cap = max(1, max_rows // tl)
    divs = [d for d in range(1, batch + 1) if batch % d == 0 and d <= cap]
    proper = [d for d in divs if d < batch]
    pool = proper if (batch > 1 and proper) else divs
    return max(pool) if pool else batch


def mamba_forward(x, params, *, seq_tile=512, matmul_dtype=jnp.bfloat16,
                  approx_recip=False):
    """Fused backbone + mean-pool + classifier in one pallas_call.

    matmul_dtype defaults to bf16 (bf16 MXU on all generations, f32 accumulation).
    approx_recip controls ONLY the RMSNorm reciprocal (independent precision knob).
    """
    B, L, input_dim = x.shape
    d_model = params["wp"].shape[1]
    n_layer, _, d_inner = params["w1"].shape
    num_classes = params["wc"].shape[1]

    kind = _device_kind()
    vmem_limit = _vmem_limit_bytes(kind)
    has_bf16_vpu = any(t in kind for t in ("v6", "v7", "7x"))   # NOT v5e

    # --- seq tiling: pad L up to a multiple-of-8 tile; mask handles the remainder ---
    tl = seq_tile if L > seq_tile else L
    tl = _round_up(max(tl, 1), 8)
    L_pad = _round_up(L, tl)
    needs_mask = L_pad != L
    x_p = jnp.pad(x, ((0, 0), (0, L_pad - L), (0, 0))) if needs_mask else x

    # --- batch tiling (output has a singleton middle axis, so tb is unconstrained) ---
    tb = _pick_batch_tile(B, tl)
    grid = (B // tb, L_pad // tl)

    mm_dtype = jnp.dtype(matmul_dtype)
    use_bf16_gelu = (mm_dtype == jnp.dtype(jnp.bfloat16)) and has_bf16_vpu
    use_axpy = input_dim <= 32

    rows = B * L
    flops = (2 * rows * input_dim * d_model
             + n_layer * 4 * rows * d_model * d_inner
             + 2 * B * d_model * num_classes)
    transcendentals = rows * n_layer * d_inner + rows * (n_layer + 1)
    bytes_accessed = (int(x_p.size) * x_p.dtype.itemsize
                      + sum(int(v.size) * 4 for v in params.values())
                      + B * num_classes * 4)

    def run(single_buffer_weights, gelu_dtype, axpy):
        # Constant-index weight blocks never change -> a second pipeline buffer is
        # pure VMEM waste; request a single buffer for them.
        wmode = {"pipeline_mode": pl.Buffered(1)} if single_buffer_weights else {}

        wp = params["wp"] if axpy else params["wp"].astype(mm_dtype)
        w1 = params["w1"].astype(mm_dtype)
        w2 = params["w2"].astype(mm_dtype)
        wc = params["wc"].astype(mm_dtype)

        kernel = functools.partial(
            fused_mamba_kernel,
            n_layer=n_layer, seq_len=L, inv_len=1.0 / L,
            approx_recip=approx_recip, gelu_dtype=gelu_dtype,
            axpy_input_proj=axpy, needs_mask=needs_mask)

        out = pl.pallas_call(
            kernel,
            out_shape=jax.ShapeDtypeStruct((B, 1, num_classes), jnp.float32),
            grid_spec=pltpu.PrefetchScalarGridSpec(
                num_scalar_prefetch=0,
                grid=grid,
                in_specs=[
                    pl.BlockSpec((tb, tl, input_dim), lambda b, s: (b, s, 0)),
                    pl.BlockSpec(wp.shape, lambda b, s: (0, 0), **wmode),
                    pl.BlockSpec(params["bp"].shape, lambda b, s: (0, 0), **wmode),
                    pl.BlockSpec(params["nscale"].shape, lambda b, s: (0, 0), **wmode),
                    pl.BlockSpec(w1.shape, lambda b, s: (0, 0, 0), **wmode),
                    pl.BlockSpec(params["b1"].shape, lambda b, s: (0, 0), **wmode),
                    pl.BlockSpec(w2.shape, lambda b, s: (0, 0, 0), **wmode),
                    pl.BlockSpec(params["b2"].shape, lambda b, s: (0, 0), **wmode),
                    pl.BlockSpec(params["fscale"].shape, lambda b, s: (0, 0), **wmode),
                    pl.BlockSpec(wc.shape, lambda b, s: (0, 0), **wmode),
                    pl.BlockSpec(params["bc"].shape, lambda b, s: (0, 0), **wmode),
                ],
                out_specs=pl.BlockSpec((tb, 1, num_classes), lambda b, s: (b, 0, 0)),
                scratch_shapes=[pltpu.VMEM((tb, d_model), jnp.float32)],
            ),
            compiler_params=pltpu.CompilerParams(
                dimension_semantics=("parallel", "arbitrary"),
                vmem_limit_bytes=vmem_limit,
            ),
            cost_estimate=pl.CostEstimate(
                flops=int(flops),
                transcendentals=int(transcendentals),
                bytes_accessed=int(bytes_accessed),
            ),
        )(x_p, wp, params["bp"], params["nscale"], w1, params["b1"],
          w2, params["b2"], params["fscale"], wc, params["bc"])
        return out[:, 0, :]

    # Fast configuration first; if the installed Pallas/Mosaic rejects any of its
    # features (single-buffered weight specs, bf16 GELU, AXPY input proj), fall back
    # to the previously-validated safe configuration so the kernel always runs.
    try:
        return run(single_buffer_weights=True,
                   gelu_dtype=jnp.bfloat16 if use_bf16_gelu else jnp.float32,
                   axpy=use_axpy)
    except Exception:
        return run(single_buffer_weights=False, gelu_dtype=jnp.float32, axpy=False)


def init_params(key, input_dim, d_model, d_inner, n_layer, num_classes):
    """Deterministic init mimicking nn.Linear (U[-1/sqrt(fan_in), 1/sqrt(fan_in)])."""
    ks = jax.random.split(key, 10)

    def lin(k, fan_in, shape):
        bound = 1.0 / math.sqrt(fan_in)
        return jax.random.uniform(k, shape, jnp.float32, -bound, bound)

    return {
        # input_proj
        "wp": lin(ks[0], input_dim, (input_dim, d_model)),
        "bp": lin(ks[1], input_dim, (1, d_model)),
        # per-layer block params (stacked along layer axis)
        "nscale": jnp.ones((n_layer, d_model), jnp.float32),
        "w1": lin(ks[2], d_model, (n_layer, d_model, d_inner)),
        "b1": lin(ks[3], d_model, (n_layer, d_inner)),
        "w2": lin(ks[4], d_inner, (n_layer, d_inner, d_model)),
        "b2": lin(ks[5], d_inner, (n_layer, d_model)),
        # final backbone RMSNorm
        "fscale": jnp.ones((1, d_model), jnp.float32),
        # classifier
        "wc": lin(ks[6], d_model, (d_model, num_classes)),
        "bc": lin(ks[7], d_model, (1, num_classes)),
    }


def reference_forward(x, params):
    """Pure-JAX reference matching the PyTorch module."""
    def rmsnorm(v, scale):
        rms = jnp.sqrt(jnp.mean(v * v, axis=-1, keepdims=True))
        return scale * v / (rms + EPS)

    h = x @ params["wp"] + params["bp"]
    n_layer = params["w1"].shape[0]
    for l in range(n_layer):
        res = h
        hn = rmsnorm(h, params["nscale"][l])
        a = hn @ params["w1"][l] + params["b1"][l]
        a = 0.5 * a * (1.0 + lax.erf(a * INV_SQRT2))
        h = a @ params["w2"][l] + params["b2"][l] + res
    h = rmsnorm(h, params["fscale"])
    pooled = jnp.mean(h, axis=1)
    return pooled @ params["wc"] + params["bc"]


if __name__ == "__main__":
    # Small shapes consistent with the module: x is (batch, seq, input_dim);
    # d_model=128 is the module default (lane-dense).
    B, L, input_dim = 2, 8, 4
    d_model, n_layer, num_classes = 128, 2, 5
    d_inner = 2 * d_model

    key = jax.random.PRNGKey(0)
    kx, kx2, kp = jax.random.split(key, 3)
    x = jax.random.normal(kx, (B, L, input_dim), jnp.float32)
    params = init_params(kp, input_dim, d_model, d_inner, n_layer, num_classes)

    ref = jax.block_until_ready(reference_forward(x, params))

    # f32 matmul path: tight check against the pure-JAX reference.
    out_f32 = jax.block_until_ready(
        mamba_forward(x, params, matmul_dtype=jnp.float32))
    assert out_f32.shape == (B, num_classes)
    assert jnp.allclose(out_f32, ref, atol=2e-4, rtol=2e-4), (out_f32, ref)

    # default bf16-MXU path (f32 accumulation): looser tolerance.
    out_bf16 = jax.block_until_ready(mamba_forward(x, params))
    assert out_bf16.shape == (B, num_classes)
    assert jnp.allclose(out_bf16, ref, atol=5e-2, rtol=5e-2), (out_bf16, ref)

    # awkward (non multiple-of-8) sequence length exercises the pad+mask pooling path.
    L2 = 12
    x2 = jax.random.normal(kx2, (B, L2, input_dim), jnp.float32)
    ref2 = jax.block_until_ready(reference_forward(x2, params))
    out2 = jax.block_until_ready(
        mamba_forward(x2, params, matmul_dtype=jnp.float32))
    assert out2.shape == (B, num_classes)
    assert jnp.allclose(out2, ref2, atol=2e-4, rtol=2e-4), (out2, ref2)

    print("KERNEL_OK")
</pallas_src>

<mosaic_0001>
module attributes {stable_mosaic.version = 11 : i64} {
  func.func @fused_mamba_kernel(%arg0: i32, %arg1: i32, %arg2: memref<1x8x4xf32, #tpu.memory_space<vmem>>, %arg3: memref<4x128xf32, #tpu.memory_space<vmem>>, %arg4: memref<1x128xf32, #tpu.memory_space<vmem>>, %arg5: memref<2x128xf32, #tpu.memory_space<vmem>>, %arg6: memref<2x128x256xf32, #tpu.memory_space<vmem>>, %arg7: memref<2x256xf32, #tpu.memory_space<vmem>>, %arg8: memref<2x256x128xf32, #tpu.memory_space<vmem>>, %arg9: memref<2x128xf32, #tpu.memory_space<vmem>>, %arg10: memref<1x128xf32, #tpu.memory_space<vmem>>, %arg11: memref<128x5xf32, #tpu.memory_space<vmem>>, %arg12: memref<1x5xf32, #tpu.memory_space<vmem>>, %arg13: memref<1x1x5xf32, #tpu.memory_space<vmem>>, %arg14: memref<1x128xf32, #tpu.memory_space<vmem>>) attributes {dimension_semantics = [#tpu.dimension_semantics<parallel>, #tpu.dimension_semantics<arbitrary>], iteration_bounds = array<i64: 2, 1>, scalar_prefetch = 0 : i64, scratch_operands = 1 : i64, tpu.core_type = #tpu.core_type<tc>, window_params = [{transform_indices = @transform_0, window_bounds = array<i64: 1, 8, 4>}, {pipeline_mode = #tpu.pipeline_mode<synchronous>, transform_indices = @transform_1, window_bounds = array<i64: 4, 128>}, {pipeline_mode = #tpu.pipeline_mode<synchronous>, transform_indices = @transform_2, window_bounds = array<i64: 1, 128>}, {pipeline_mode = #tpu.pipeline_mode<synchronous>, transform_indices = @transform_3, window_bounds = array<i64: 2, 128>}, {pipeline_mode = #tpu.pipeline_mode<synchronous>, transform_indices = @transform_4, window_bounds = array<i64: 2, 128, 256>}, {pipeline_mode = #tpu.pipeline_mode<synchronous>, transform_indices = @transform_5, window_bounds = array<i64: 2, 256>}, {pipeline_mode = #tpu.pipeline_mode<synchronous>, transform_indices = @transform_6, window_bounds = array<i64: 2, 256, 128>}, {pipeline_mode = #tpu.pipeline_mode<synchronous>, transform_indices = @transform_7, window_bounds = array<i64: 2, 128>}, {pipeline_mode = #tpu.pipeline_mode<synchronous>, transform_indices = @transform_8, window_bounds = array<i64: 1, 128>}, {pipeline_mode = #tpu.pipeline_mode<synchronous>, transform_indices = @transform_9, window_bounds = array<i64: 128, 5>}, {pipeline_mode = #tpu.pipeline_mode<synchronous>, transform_indices = @transform_10, window_bounds = array<i64: 1, 5>}, {transform_indices = @transform_11, window_bounds = array<i64: 1, 1, 5>}]} {
    %c0_i32 = arith.constant 0 : i32
    %0 = arith.cmpi eq, %arg1, %c0_i32 : i32
    %1 = arith.extui %0 : i1 to i32
    %c0_i32_0 = arith.constant 0 : i32
    %2 = arith.cmpi ne, %1, %c0_i32_0 : i32
    scf.if %2 {
      %cst_58 = arith.constant 0.000000e+00 : f32
      %126 = vector.broadcast %cst_58 : f32 to vector<1x128xf32>
      %c0_59 = arith.constant 0 : index
      %c0_60 = arith.constant 0 : index
      %127 = vector.load %arg14[%c0_59, %c0_60] : memref<1x128xf32, #tpu.memory_space<vmem>>, vector<1x128xf32>
      tpu.vector_store %arg14[%c0_59, %c0_60], %126 {strides = array<i32>} : memref<1x128xf32, #tpu.memory_space<vmem>>, vector<1x128xf32>,
    } else {
    }
    %c0 = arith.constant 0 : index
    %c0_1 = arith.constant 0 : index
    %c0_2 = arith.constant 0 : index
    %3 = vector.load %arg2[%c0, %c0_1, %c0_2] : memref<1x8x4xf32, #tpu.memory_space<vmem>>, vector<1x8x4xf32>
    %4 = vector.shape_cast %3 : vector<1x8x4xf32> to vector<8x4xf32>
    %c0_3 = arith.constant 0 : index
    %c0_4 = arith.constant 0 : index
    %5 = vector.load %arg3[%c0_3, %c0_4] : memref<4x128xf32, #tpu.memory_space<vmem>>, vector<4x128xf32>
    %cst = arith.constant 0.000000e+00 : f32
    %6 = vector.broadcast %cst : f32 to vector<8x128xf32>
    %7 = vector.extract_strided_slice %4 {offsets = [0, 0], sizes = [8, 1], strides = [1, 1]} : vector<8x4xf32> to vector<8x1xf32>
    %8 = vector.extract_strided_slice %5 {offsets = [0, 0], sizes = [1, 128], strides = [1, 1]} : vector<4x128xf32> to vector<1x128xf32>
    %9 = vector.broadcast %7 : vector<8x1xf32> to vector<8x128xf32>
    %10 = vector.broadcast %8 : vector<1x128xf32> to vector<8x128xf32>
    %11 = arith.mulf %9, %10 : vector<8x128xf32>
    %12 = arith.addf %6, %11 : vector<8x128xf32>
    %13 = vector.extract_strided_slice %4 {offsets = [0, 1], sizes = [8, 1], strides = [1, 1]} : vector<8x4xf32> to vector<8x1xf32>
    %14 = vector.extract_strided_slice %5 {offsets = [1, 0], sizes = [1, 128], strides = [1, 1]} : vector<4x128xf32> to vector<1x128xf32>
    %15 = vector.broadcast %13 : vector<8x1xf32> to vector<8x128xf32>
    %16 = vector.broadcast %14 : vector<1x128xf32> to vector<8x128xf32>
    %17 = arith.mulf %15, %16 : vector<8x128xf32>
    %18 = arith.addf %12, %17 : vector<8x128xf32>
    %19 = vector.extract_strided_slice %4 {offsets = [0, 2], sizes = [8, 1], strides = [1, 1]} : vector<8x4xf32> to vector<8x1xf32>
    %20 = vector.extract_strided_slice %5 {offsets = [2, 0], sizes = [1, 128], strides = [1, 1]} : vector<4x128xf32> to vector<1x128xf32>
    %21 = vector.broadcast %19 : vector<8x1xf32> to vector<8x128xf32>
    %22 = vector.broadcast %20 : vector<1x128xf32> to vector<8x128xf32>
    %23 = arith.mulf %21, %22 : vector<8x128xf32>
    %24 = arith.addf %18, %23 : vector<8x128xf32>
    %25 = vector.extract_strided_slice %4 {offsets = [0, 3], sizes = [8, 1], strides = [1, 1]} : vector<8x4xf32> to vector<8x1xf32>
    %26 = vector.extract_strided_slice %5 {offsets = [3, 0], sizes = [1, 128], strides = [1, 1]} : vector<4x128xf32> to vector<1x128xf32>
    %27 = vector.broadcast %25 : vector<8x1xf32> to vector<8x128xf32>
    %28 = vector.broadcast %26 : vector<1x128xf32> to vector<8x128xf32>
    %29 = arith.mulf %27, %28 : vector<8x128xf32>
    %30 = arith.addf %24, %29 : vector<8x128xf32>
    %c0_5 = arith.constant 0 : index
    %c0_6 = arith.constant 0 : index
    %31 = vector.load %arg4[%c0_5, %c0_6] : memref<1x128xf32, #tpu.memory_space<vmem>>, vector<1x128xf32>
    %32 = vector.broadcast %31 : vector<1x128xf32> to vector<8x128xf32>
    %33 = arith.addf %30, %32 : vector<8x128xf32>
    %c0_7 = arith.constant 0 : index
    %c0_8 = arith.constant 0 : index
    %34 = vector.load %arg5[%c0_7, %c0_8] : memref<2x128xf32, #tpu.memory_space<vmem>>, vector<1x128xf32>
    %35 = arith.mulf %33, %33 : vector<8x128xf32>
    %cst_9 = arith.constant dense<0.000000e+00> : vector<8xf32>
    %36 = vector.multi_reduction <add>, %35, %cst_9 [1] : vector<8x128xf32> to vector<8xf32>
    %37 = vector.shape_cast %36 : vector<8xf32> to vector<8x1xf32>
    %cst_10 = arith.constant 1.280000e+02 : f32
    %38 = vector.broadcast %cst_10 : f32 to vector<8x1xf32>
    %39 = arith.divf %37, %38 : vector<8x1xf32>
    %40 = math.sqrt %39 : vector<8x1xf32>
    %cst_11 = arith.constant 9.99999993E-9 : f32
    %41 = vector.broadcast %cst_11 : f32 to vector<8x1xf32>
    %42 = arith.addf %40, %41 : vector<8x1xf32>
    %43 = tpu.reciprocal %42 : vector<8x1xf32> -> vector<8x1xf32>
    %44 = vector.broadcast %43 : vector<8x1xf32> to vector<8x128xf32>
    %45 = arith.mulf %33, %44 : vector<8x128xf32>
    %46 = vector.broadcast %34 : vector<1x128xf32> to vector<8x128xf32>
    %47 = arith.mulf %45, %46 : vector<8x128xf32>
    %c0_12 = arith.constant 0 : index
    %c0_13 = arith.constant 0 : index
    %c0_14 = arith.constant 0 : index
    %48 = vector.load %arg6[%c0_12, %c0_13, %c0_14] : memref<2x128x256xf32, #tpu.memory_space<vmem>>, vector<1x128x256xf32>
    %49 = vector.shape_cast %48 : vector<1x128x256xf32> to vector<128x256xf32>
    %cst_15 = arith.constant dense<0.000000e+00> : vector<8x256xf32>
    %50 = tpu.matmul %47, %49, %cst_15 {dimension_numbers = #tpu.dot_dimension_numbers<[1], [0], [0], [1], [0, 0, 1, 1], [], []>} : vector<8x128xf32>, vector<128x256xf32>, vector<8x256xf32> -> vector<8x256xf32>
    %c0_16 = arith.constant 0 : index
    %c0_17 = arith.constant 0 : index
    %51 = vector.load %arg7[%c0_16, %c0_17] : memref<2x256xf32, #tpu.memory_space<vmem>>, vector<1x256xf32>
    %52 = vector.broadcast %51 : vector<1x256xf32> to vector<8x256xf32>
    %53 = arith.addf %50, %52 : vector<8x256xf32>
    %cst_18 = arith.constant 5.000000e-01 : f32
    %54 = vector.broadcast %cst_18 : f32 to vector<8x256xf32>
    %55 = arith.mulf %54, %53 : vector<8x256xf32>
    %cst_19 = arith.constant 0.707106769 : f32
    %56 = vector.broadcast %cst_19 : f32 to vector<8x256xf32>
    %57 = arith.mulf %53, %56 : vector<8x256xf32>
    %58 = math.erf %57 : vector<8x256xf32>
    %cst_20 = arith.constant 1.000000e+00 : f32
    %59 = vector.broadcast %cst_20 : f32 to vector<8x256xf32>
    %60 = arith.addf %59, %58 : vector<8x256xf32>
    %61 = arith.mulf %55, %60 : vector<8x256xf32>
    %c0_21 = arith.constant 0 : index
    %c0_22 = arith.constant 0 : index
    %c0_23 = arith.constant 0 : index
    %62 = vector.load %arg8[%c0_21, %c0_22, %c0_23] : memref<2x256x128xf32, #tpu.memory_space<vmem>>, vector<1x256x128xf32>
    %63 = vector.shape_cast %62 : vector<1x256x128xf32> to vector<256x128xf32>
    %cst_24 = arith.constant dense<0.000000e+00> : vector<8x128xf32>
    %64 = tpu.matmul %61, %63, %cst_24 {dimension_numbers = #tpu.dot_dimension_numbers<[1], [0], [0], [1], [0, 0, 1, 1], [], []>} : vector<8x256xf32>, vector<256x128xf32>, vector<8x128xf32> -> vector<8x128xf32>
    %c0_25 = arith.constant 0 : index
    %c0_26 = arith.constant 0 : index
    %65 = vector.load %arg9[%c0_25, %c0_26] : memref<2x128xf32, #tpu.memory_space<vmem>>, vector<1x128xf32>
    %66 = vector.broadcast %65 : vector<1x128xf32> to vector<8x128xf32>
    %67 = arith.addf %64, %66 : vector<8x128xf32>
    %68 = arith.addf %67, %33 : vector<8x128xf32>
    %c1 = arith.constant 1 : index
    %c0_27 = arith.constant 0 : index
    %69 = vector.load %arg5[%c1, %c0_27] : memref<2x128xf32, #tpu.memory_space<vmem>>, vector<1x128xf32>
    %70 = arith.mulf %68, %68 : vector<8x128xf32>
    %cst_28 = arith.constant dense<0.000000e+00> : vector<8xf32>
    %71 = vector.multi_reduction <add>, %70, %cst_28 [1] : vector<8x128xf32> to vector<8xf32>
    %72 = vector.shape_cast %71 : vector<8xf32> to vector<8x1xf32>
    %cst_29 = arith.constant 1.280000e+02 : f32
    %73 = vector.broadcast %cst_29 : f32 to vector<8x1xf32>
    %74 = arith.divf %72, %73 : vector<8x1xf32>
    %75 = math.sqrt %74 : vector<8x1xf32>
    %cst_30 = arith.constant 9.99999993E-9 : f32
    %76 = vector.broadcast %cst_30 : f32 to vector<8x1xf32>
    %77 = arith.addf %75, %76 : vector<8x1xf32>
    %78 = tpu.reciprocal %77 : vector<8x1xf32> -> vector<8x1xf32>
    %79 = vector.broadcast %78 : vector<8x1xf32> to vector<8x128xf32>
    %80 = arith.mulf %68, %79 : vector<8x128xf32>
    %81 = vector.broadcast %69 : vector<1x128xf32> to vector<8x128xf32>
    %82 = arith.mulf %80, %81 : vector<8x128xf32>
    %c1_31 = arith.constant 1 : index
    %c0_32 = arith.constant 0 : index
    %c0_33 = arith.constant 0 : index
    %83 = vector.load %arg6[%c1_31, %c0_32, %c0_33] : memref<2x128x256xf32, #tpu.memory_space<vmem>>, vector<1x128x256xf32>
    %84 = vector.shape_cast %83 : vector<1x128x256xf32> to vector<128x256xf32>
    %cst_34 = arith.constant dense<0.000000e+00> : vector<8x256xf32>
    %85 = tpu.matmul %82, %84, %cst_34 {dimension_numbers = #tpu.dot_dimension_numbers<[1], [0], [0], [1], [0, 0, 1, 1], [], []>} : vector<8x128xf32>, vector<128x256xf32>, vector<8x256xf32> -> vector<8x256xf32>
    %c1_35 = arith.constant 1 : index
    %c0_36 = arith.constant 0 : index
    %86 = vector.load %arg7[%c1_35, %c0_36] : memref<2x256xf32, #tpu.memory_space<vmem>>, vector<1x256xf32>
    %87 = vector.broadcast %86 : vector<1x256xf32> to vector<8x256xf32>
    %88 = arith.addf %85, %87 : vector<8x256xf32>
    %cst_37 = arith.constant 5.000000e-01 : f32
    %89 = vector.broadcast %cst_37 : f32 to vector<8x256xf32>
    %90 = arith.mulf %89, %88 : vector<8x256xf32>
    %cst_38 = arith.constant 0.707106769 : f32
    %91 = vector.broadcast %cst_38 : f32 to vector<8x256xf32>
    %92 = arith.mulf %88, %91 : vector<8x256xf32>
    %93 = math.erf %92 : vector<8x256xf32>
    %cst_39 = arith.constant 1.000000e+00 : f32
    %94 = vector.broadcast %cst_39 : f32 to vector<8x256xf32>
    %95 = arith.addf %94, %93 : vector<8x256xf32>
    %96 = arith.mulf %90, %95 : vector<8x256xf32>
    %c1_40 = arith.constant 1 : index
    %c0_41 = arith.constant 0 : index
    %c0_42 = arith.constant 0 : index
    %97 = vector.load %arg8[%c1_40, %c0_41, %c0_42] : memref<2x256x128xf32, #tpu.memory_space<vmem>>, vector<1x256x128xf32>
    %98 = vector.shape_cast %97 : vector<1x256x128xf32> to vector<256x128xf32>
    %cst_43 = arith.constant dense<0.000000e+00> : vector<8x128xf32>
    %99 = tpu.matmul %96, %98, %cst_43 {dimension_numbers = #tpu.dot_dimension_numbers<[1], [0], [0], [1], [0, 0, 1, 1], [], []>} : vector<8x256xf32>, vector<256x128xf32>, vector<8x128xf32> -> vector<8x128xf32>
    %c1_44 = arith.constant 1 : index
    %c0_45 = arith.constant 0 : index
    %100 = vector.load %arg9[%c1_44, %c0_45] : memref<2x128xf32, #tpu.memory_space<vmem>>, vector<1x128xf32>
    %101 = vector.broadcast %100 : vector<1x128xf32> to vector<8x128xf32>
    %102 = arith.addf %99, %101 : vector<8x128xf32>
    %103 = arith.addf %102, %68 : vector<8x128xf32>
    %c0_46 = arith.constant 0 : index
    %c0_47 = arith.constant 0 : index
    %104 = vector.load %arg10[%c0_46, %c0_47] : memref<1x128xf32, #tpu.memory_space<vmem>>, vector<1x128xf32>
    %105 = arith.mulf %103, %103 : vector<8x128xf32>
    %cst_48 = arith.constant dense<0.000000e+00> : vector<8xf32>
    %106 = vector.multi_reduction <add>, %105, %cst_48 [1] : vector<8x128xf32> to vector<8xf32>
    %107 = vector.shape_cast %106 : vector<8xf32> to vector<8x1xf32>
    %cst_49 = arith.constant 1.280000e+02 : f32
    %108 = vector.broadcast %cst_49 : f32 to vector<8x1xf32>
    %109 = arith.divf %107, %108 : vector<8x1xf32>
    %110 = math.sqrt %109 : vector<8x1xf32>
    %cst_50 = arith.constant 9.99999993E-9 : f32
    %111 = vector.broadcast %cst_50 : f32 to vector<8x1xf32>
    %112 = arith.addf %110, %111 : vector<8x1xf32>
    %113 = tpu.reciprocal %112 : vector<8x1xf32> -> vector<8x1xf32>
    %114 = vector.broadcast %113 : vector<8x1xf32> to vector<8x128xf32>
    %115 = arith.mulf %103, %114 : vector<8x128xf32>
    %116 = vector.broadcast %104 : vector<1x128xf32> to vector<8x128xf32>
    %117 = arith.mulf %115, %116 : vector<8x128xf32>
    %118 = vector.shape_cast %117 : vector<8x128xf32> to vector<1x8x128xf32>
    %c0_51 = arith.constant 0 : index
    %c0_52 = arith.constant 0 : index
    %119 = vector.load %arg14[%c0_51, %c0_52] : memref<1x128xf32, #tpu.memory_space<vmem>>, vector<1x128xf32>
    %cst_53 = arith.constant dense<0.000000e+00> : vector<1x128xf32>
    %120 = vector.multi_reduction <add>, %118, %cst_53 [1] : vector<1x8x128xf32> to vector<1x128xf32>
    %121 = arith.addf %119, %120 : vector<1x128xf32>
    %c0_54 = arith.constant 0 : index
    %c0_55 = arith.constant 0 : index
    %122 = vector.load %arg14[%c0_54, %c0_55] : memref<1x128xf32, #tpu.memory_space<vmem>>, vector<1x128xf32>
    tpu.vector_store %arg14[%c0_54, %c0_55], %121 {strides = array<i32>} : memref<1x128xf32, #tpu.memory_space<vmem>>, vector<1x128xf32>,
    %c0_i32_56 = arith.constant 0 : i32
    %123 = arith.cmpi eq, %arg1, %c0_i32_56 : i32
    %124 = arith.extui %123 : i1 to i32
    %c0_i32_57 = arith.constant 0 : i32
    %125 = arith.cmpi ne, %124, %c0_i32_57 : i32
    scf.if %125 {
      %c0_58 = arith.constant 0 : index
      %c0_59 = arith.constant 0 : index
      %126 = vector.load %arg14[%c0_58, %c0_59] : memref<1x128xf32, #tpu.memory_space<vmem>>, vector<1x128xf32>
      %cst_60 = arith.constant 1.250000e-01 : f32
      %127 = vector.broadcast %cst_60 : f32 to vector<1x128xf32>
      %128 = arith.mulf %126, %127 : vector<1x128xf32>
      %c0_61 = arith.constant 0 : index
      %c0_62 = arith.constant 0 : index
      %129 = vector.load %arg11[%c0_61, %c0_62] : memref<128x5xf32, #tpu.memory_space<vmem>>, vector<128x5xf32>
      %cst_63 = arith.constant dense<0.000000e+00> : vector<1x5xf32>
      %130 = tpu.matmul %128, %129, %cst_63 {dimension_numbers = #tpu.dot_dimension_numbers<[1], [0], [0], [1], [0, 0, 1, 1], [], []>} : vector<1x128xf32>, vector<128x5xf32>, vector<1x5xf32> -> vector<1x5xf32>
      %c0_64 = arith.constant 0 : index
      %c0_65 = arith.constant 0 : index
      %131 = vector.load %arg12[%c0_64, %c0_65] : memref<1x5xf32, #tpu.memory_space<vmem>>, vector<1x5xf32>
      %132 = arith.addf %130, %131 : vector<1x5xf32>
      %133 = vector.shape_cast %132 : vector<1x5xf32> to vector<1x1x5xf32>
      %c0_66 = arith.constant 0 : index
      %c0_67 = arith.constant 0 : index
      %c0_68 = arith.constant 0 : index
      %134 = vector.load %arg13[%c0_66, %c0_67, %c0_68] : memref<1x1x5xf32, #tpu.memory_space<vmem>>, vector<1x1x5xf32>
      tpu.vector_store %arg13[%c0_66, %c0_67, %c0_68], %133 {strides = array<i32>} : memref<1x1x5xf32, #tpu.memory_space<vmem>>, vector<1x1x5xf32>,
    } else {
    }
    return
  }
  func.func @transform_0(%arg0: i32, %arg1: i32) -> (i32, i32, i32) {
    %c0_i32 = arith.constant 0 : i32
    %c0_i32_0 = arith.constant 0 : i32
    return %arg0, %arg1, %c0_i32 : i32, i32, i32
  }
  func.func @transform_1(%arg0: i32, %arg1: i32) -> (i32, i32) {
    %c0_i32 = arith.constant 0 : i32
    %c0_i32_0 = arith.constant 0 : i32
    %c0_i32_1 = arith.constant 0 : i32
    return %c0_i32, %c0_i32_0 : i32, i32
  }
  func.func @transform_2(%arg0: i32, %arg1: i32) -> (i32, i32) {
    %c0_i32 = arith.constant 0 : i32
    %c0_i32_0 = arith.constant 0 : i32
    %c0_i32_1 = arith.constant 0 : i32
    return %c0_i32, %c0_i32_0 : i32, i32
  }
  func.func @transform_3(%arg0: i32, %arg1: i32) -> (i32, i32) {
    %c0_i32 = arith.constant 0 : i32
    %c0_i32_0 = arith.constant 0 : i32
    %c0_i32_1 = arith.constant 0 : i32
    return %c0_i32, %c0_i32_0 : i32, i32
  }
  func.func @transform_4(%arg0: i32, %arg1: i32) -> (i32, i32, i32) {
    %c0_i32 = arith.constant 0 : i32
    %c0_i32_0 = arith.constant 0 : i32
    %c0_i32_1 = arith.constant 0 : i32
    %c0_i32_2 = arith.constant 0 : i32
    return %c0_i32, %c0_i32_0, %c0_i32_1 : i32, i32, i32
  }
  func.func @transform_5(%arg0: i32, %arg1: i32) -> (i32, i32) {
    %c0_i32 = arith.constant 0 : i32
    %c0_i32_0 = arith.constant 0 : i32
    %c0_i32_1 = arith.constant 0 : i32
    return %c0_i32, %c0_i32_0 : i32, i32
  }
  func.func @transform_6(%arg0: i32, %arg1: i32) -> (i32, i32, i32) {
    %c0_i32 = arith.constant 0 : i32
    %c0_i32_0 = arith.constant 0 : i32
    %c0_i32_1 = arith.constant 0 : i32
    %c0_i32_2 = arith.constant 0 : i32
    return %c0_i32, %c0_i32_0, %c0_i32_1 : i32, i32, i32
  }
  func.func @transform_7(%arg0: i32, %arg1: i32) -> (i32, i32) {
    %c0_i32 = arith.constant 0 : i32
    %c0_i32_0 = arith.constant 0 : i32
    %c0_i32_1 = arith.constant 0 : i32
    return %c0_i32, %c0_i32_0 : i32, i32
  }
  func.func @transform_8(%arg0: i32, %arg1: i32) -> (i32, i32) {
    %c0_i32 = arith.constant 0 : i32
    %c0_i32_0 = arith.constant 0 : i32
    %c0_i32_1 = arith.constant 0 : i32
    return %c0_i32, %c0_i32_0 : i32, i32
  }
  func.func @transform_9(%arg0: i32, %arg1: i32) -> (i32, i32) {
    %c0_i32 = arith.constant 0 : i32
    %c0_i32_0 = arith.constant 0 : i32
    %c0_i32_1 = arith.constant 0 : i32
    return %c0_i32, %c0_i32_0 : i32, i32
  }
  func.func @transform_10(%arg0: i32, %arg1: i32) -> (i32, i32) {
    %c0_i32 = arith.constant 0 : i32
    %c0_i32_0 = arith.constant 0 : i32
    %c0_i32_1 = arith.constant 0 : i32
    return %c0_i32, %c0_i32_0 : i32, i32
  }
  func.func @transform_11(%arg0: i32, %arg1: i32) -> (i32, i32, i32) {
    %c0_i32 = arith.constant 0 : i32
    %c0_i32_0 = arith.constant 0 : i32
    %c0_i32_1 = arith.constant 0 : i32
    return %arg0, %c0_i32, %c0_i32_0 : i32, i32, i32
  }
}

module attributes {stable_mosaic.version = 11 : i64} {
  func.func @fused_mamba_kernel(%arg0: i32, %arg1: i32, %arg2: memref<1x8x4xf32, #tpu.memory_space<vmem>>, %arg3: memref<4x128xf32, #tpu.memory_space<vmem>>, %arg4: memref<1x128xf32, #tpu.memory_space<vmem>>, %arg5: memref<2x128xf32, #tpu.memory_space<vmem>>, %arg6: memref<2x128x256xf32, #tpu.memory_space<vmem>>, %arg7: memref<2x256xf32, #tpu.memory_space<vmem>>, %arg8: memref<2x256x128xf32, #tpu.memory_space<vmem>>, %arg9: memref<2x128xf32, #tpu.memory_space<vmem>>, %arg10: memref<1x128xf32, #tpu.memory_space<vmem>>, %arg11: memref<128x5xf32, #tpu.memory_space<vmem>>, %arg12: memref<1x5xf32, #tpu.memory_space<vmem>>, %arg13: memref<1x1x5xf32, #tpu.memory_space<vmem>>, %arg14: memref<1x128xf32, #tpu.memory_space<vmem>>) attributes {dimension_semantics = [#tpu.dimension_semantics<parallel>, #tpu.dimension_semantics<arbitrary>], iteration_bounds = array<i64: 2, 1>, scalar_prefetch = 0 : i64, scratch_operands = 1 : i64, tpu.core_type = #tpu.core_type<tc>, window_params = [{transform_indices = @transform_0, window_bounds = array<i64: 1, 8, 4>}, {pipeline_mode = #tpu.pipeline_mode<synchronous>, transform_indices = @transform_1, window_bounds = array<i64: 4, 128>}, {pipeline_mode = #tpu.pipeline_mode<synchronous>, transform_indices = @transform_2, window_bounds = array<i64: 1, 128>}, {pipeline_mode = #tpu.pipeline_mode<synchronous>, transform_indices = @transform_3, window_bounds = array<i64: 2, 128>}, {pipeline_mode = #tpu.pipeline_mode<synchronous>, transform_indices = @transform_4, window_bounds = array<i64: 2, 128, 256>}, {pipeline_mode = #tpu.pipeline_mode<synchronous>, transform_indices = @transform_5, window_bounds = array<i64: 2, 256>}, {pipeline_mode = #tpu.pipeline_mode<synchronous>, transform_indices = @transform_6, window_bounds = array<i64: 2, 256, 128>}, {pipeline_mode = #tpu.pipeline_mode<synchronous>, transform_indices = @transform_7, window_bounds = array<i64: 2, 128>}, {pipeline_mode = #tpu.pipeline_mode<synchronous>, transform_indices = @transform_8, window_bounds = array<i64: 1, 128>}, {pipeline_mode = #tpu.pipeline_mode<synchronous>, transform_indices = @transform_9, window_bounds = array<i64: 128, 5>}, {pipeline_mode = #tpu.pipeline_mode<synchronous>, transform_indices = @transform_10, window_bounds = array<i64: 1, 5>}, {transform_indices = @transform_11, window_bounds = array<i64: 1, 1, 5>}]} {
    %c0_i32 = arith.constant 0 : i32
    %0 = arith.cmpi eq, %arg1, %c0_i32 : i32
    %1 = arith.extui %0 : i1 to i32
    %c0_i32_0 = arith.constant 0 : i32
    %2 = arith.cmpi ne, %1, %c0_i32_0 : i32
    scf.if %2 {
      %cst_58 = arith.constant 0.000000e+00 : f32
      %102 = vector.broadcast %cst_58 : f32 to vector<1x128xf32>
      %c0_59 = arith.constant 0 : index
      %c0_60 = arith.constant 0 : index
      %103 = vector.load %arg14[%c0_59, %c0_60] : memref<1x128xf32, #tpu.memory_space<vmem>>, vector<1x128xf32>
      tpu.vector_store %arg14[%c0_59, %c0_60], %102 {strides = array<i32>} : memref<1x128xf32, #tpu.memory_space<vmem>>, vector<1x128xf32>,
    } else {
    }
    %c0 = arith.constant 0 : index
    %c0_1 = arith.constant 0 : index
    %c0_2 = arith.constant 0 : index
    %3 = vector.load %arg2[%c0, %c0_1, %c0_2] : memref<1x8x4xf32, #tpu.memory_space<vmem>>, vector<1x8x4xf32>
    %4 = vector.shape_cast %3 : vector<1x8x4xf32> to vector<8x4xf32>
    %c0_3 = arith.constant 0 : index
    %c0_4 = arith.constant 0 : index
    %5 = vector.load %arg3[%c0_3, %c0_4] : memref<4x128xf32, #tpu.memory_space<vmem>>, vector<4x128xf32>
    %cst = arith.constant dense<0.000000e+00> : vector<8x128xf32>
    %6 = tpu.matmul %4, %5, %cst {dimension_numbers = #tpu.dot_dimension_numbers<[1], [0], [0], [1], [0, 0, 1, 1], [], []>} : vector<8x4xf32>, vector<4x128xf32>, vector<8x128xf32> -> vector<8x128xf32>
    %c0_5 = arith.constant 0 : index
    %c0_6 = arith.constant 0 : index
    %7 = vector.load %arg4[%c0_5, %c0_6] : memref<1x128xf32, #tpu.memory_space<vmem>>, vector<1x128xf32>
    %8 = vector.broadcast %7 : vector<1x128xf32> to vector<8x128xf32>
    %9 = arith.addf %6, %8 : vector<8x128xf32>
    %c0_7 = arith.constant 0 : index
    %c0_8 = arith.constant 0 : index
    %10 = vector.load %arg5[%c0_7, %c0_8] : memref<2x128xf32, #tpu.memory_space<vmem>>, vector<1x128xf32>
    %11 = arith.mulf %9, %9 : vector<8x128xf32>
    %cst_9 = arith.constant dense<0.000000e+00> : vector<8xf32>
    %12 = vector.multi_reduction <add>, %11, %cst_9 [1] : vector<8x128xf32> to vector<8xf32>
    %13 = vector.shape_cast %12 : vector<8xf32> to vector<8x1xf32>
    %cst_10 = arith.constant 1.280000e+02 : f32
    %14 = vector.broadcast %cst_10 : f32 to vector<8x1xf32>
    %15 = arith.divf %13, %14 : vector<8x1xf32>
    %16 = math.sqrt %15 : vector<8x1xf32>
    %cst_11 = arith.constant 9.99999993E-9 : f32
    %17 = vector.broadcast %cst_11 : f32 to vector<8x1xf32>
    %18 = arith.addf %16, %17 : vector<8x1xf32>
    %19 = tpu.reciprocal %18 : vector<8x1xf32> -> vector<8x1xf32>
    %20 = vector.broadcast %19 : vector<8x1xf32> to vector<8x128xf32>
    %21 = arith.mulf %9, %20 : vector<8x128xf32>
    %22 = vector.broadcast %10 : vector<1x128xf32> to vector<8x128xf32>
    %23 = arith.mulf %21, %22 : vector<8x128xf32>
    %c0_12 = arith.constant 0 : index
    %c0_13 = arith.constant 0 : index
    %c0_14 = arith.constant 0 : index
    %24 = vector.load %arg6[%c0_12, %c0_13, %c0_14] : memref<2x128x256xf32, #tpu.memory_space<vmem>>, vector<1x128x256xf32>
    %25 = vector.shape_cast %24 : vector<1x128x256xf32> to vector<128x256xf32>
    %cst_15 = arith.constant dense<0.000000e+00> : vector<8x256xf32>
    %26 = tpu.matmul %23, %25, %cst_15 {dimension_numbers = #tpu.dot_dimension_numbers<[1], [0], [0], [1], [0, 0, 1, 1], [], []>} : vector<8x128xf32>, vector<128x256xf32>, vector<8x256xf32> -> vector<8x256xf32>
    %c0_16 = arith.constant 0 : index
    %c0_17 = arith.constant 0 : index
    %27 = vector.load %arg7[%c0_16, %c0_17] : memref<2x256xf32, #tpu.memory_space<vmem>>, vector<1x256xf32>
    %28 = vector.broadcast %27 : vector<1x256xf32> to vector<8x256xf32>
    %29 = arith.addf %26, %28 : vector<8x256xf32>
    %cst_18 = arith.constant 5.000000e-01 : f32
    %30 = vector.broadcast %cst_18 : f32 to vector<8x256xf32>
    %31 = arith.mulf %30, %29 : vector<8x256xf32>
    %cst_19 = arith.constant 0.707106769 : f32
    %32 = vector.broadcast %cst_19 : f32 to vector<8x256xf32>
    %33 = arith.mulf %29, %32 : vector<8x256xf32>
    %34 = math.erf %33 : vector<8x256xf32>
    %cst_20 = arith.constant 1.000000e+00 : f32
    %35 = vector.broadcast %cst_20 : f32 to vector<8x256xf32>
    %36 = arith.addf %35, %34 : vector<8x256xf32>
    %37 = arith.mulf %31, %36 : vector<8x256xf32>
    %c0_21 = arith.constant 0 : index
    %c0_22 = arith.constant 0 : index
    %c0_23 = arith.constant 0 : index
    %38 = vector.load %arg8[%c0_21, %c0_22, %c0_23] : memref<2x256x128xf32, #tpu.memory_space<vmem>>, vector<1x256x128xf32>
    %39 = vector.shape_cast %38 : vector<1x256x128xf32> to vector<256x128xf32>
    %cst_24 = arith.constant dense<0.000000e+00> : vector<8x128xf32>
    %40 = tpu.matmul %37, %39, %cst_24 {dimension_numbers = #tpu.dot_dimension_numbers<[1], [0], [0], [1], [0, 0, 1, 1], [], []>} : vector<8x256xf32>, vector<256x128xf32>, vector<8x128xf32> -> vector<8x128xf32>
    %c0_25 = arith.constant 0 : index
    %c0_26 = arith.constant 0 : index
    %41 = vector.load %arg9[%c0_25, %c0_26] : memref<2x128xf32, #tpu.memory_space<vmem>>, vector<1x128xf32>
    %42 = vector.broadcast %41 : vector<1x128xf32> to vector<8x128xf32>
    %43 = arith.addf %40, %42 : vector<8x128xf32>
    %44 = arith.addf %43, %9 : vector<8x128xf32>
    %c1 = arith.constant 1 : index
    %c0_27 = arith.constant 0 : index
    %45 = vector.load %arg5[%c1, %c0_27] : memref<2x128xf32, #tpu.memory_space<vmem>>, vector<1x128xf32>
    %46 = arith.mulf %44, %44 : vector<8x128xf32>
    %cst_28 = arith.constant dense<0.000000e+00> : vector<8xf32>
    %47 = vector.multi_reduction <add>, %46, %cst_28 [1] : vector<8x128xf32> to vector<8xf32>
    %48 = vector.shape_cast %47 : vector<8xf32> to vector<8x1xf32>
    %cst_29 = arith.constant 1.280000e+02 : f32
    %49 = vector.broadcast %cst_29 : f32 to vector<8x1xf32>
    %50 = arith.divf %48, %49 : vector<8x1xf32>
    %51 = math.sqrt %50 : vector<8x1xf32>
    %cst_30 = arith.constant 9.99999993E-9 : f32
    %52 = vector.broadcast %cst_30 : f32 to vector<8x1xf32>
    %53 = arith.addf %51, %52 : vector<8x1xf32>
    %54 = tpu.reciprocal %53 : vector<8x1xf32> -> vector<8x1xf32>
    %55 = vector.broadcast %54 : vector<8x1xf32> to vector<8x128xf32>
    %56 = arith.mulf %44, %55 : vector<8x128xf32>
    %57 = vector.broadcast %45 : vector<1x128xf32> to vector<8x128xf32>
    %58 = arith.mulf %56, %57 : vector<8x128xf32>
    %c1_31 = arith.constant 1 : index
    %c0_32 = arith.constant 0 : index
    %c0_33 = arith.constant 0 : index
    %59 = vector.load %arg6[%c1_31, %c0_32, %c0_33] : memref<2x128x256xf32, #tpu.memory_space<vmem>>, vector<1x128x256xf32>
    %60 = vector.shape_cast %59 : vector<1x128x256xf32> to vector<128x256xf32>
    %cst_34 = arith.constant dense<0.000000e+00> : vector<8x256xf32>
    %61 = tpu.matmul %58, %60, %cst_34 {dimension_numbers = #tpu.dot_dimension_numbers<[1], [0], [0], [1], [0, 0, 1, 1], [], []>} : vector<8x128xf32>, vector<128x256xf32>, vector<8x256xf32> -> vector<8x256xf32>
    %c1_35 = arith.constant 1 : index
    %c0_36 = arith.constant 0 : index
    %62 = vector.load %arg7[%c1_35, %c0_36] : memref<2x256xf32, #tpu.memory_space<vmem>>, vector<1x256xf32>
    %63 = vector.broadcast %62 : vector<1x256xf32> to vector<8x256xf32>
    %64 = arith.addf %61, %63 : vector<8x256xf32>
    %cst_37 = arith.constant 5.000000e-01 : f32
    %65 = vector.broadcast %cst_37 : f32 to vector<8x256xf32>
    %66 = arith.mulf %65, %64 : vector<8x256xf32>
    %cst_38 = arith.constant 0.707106769 : f32
    %67 = vector.broadcast %cst_38 : f32 to vector<8x256xf32>
    %68 = arith.mulf %64, %67 : vector<8x256xf32>
    %69 = math.erf %68 : vector<8x256xf32>
    %cst_39 = arith.constant 1.000000e+00 : f32
    %70 = vector.broadcast %cst_39 : f32 to vector<8x256xf32>
    %71 = arith.addf %70, %69 : vector<8x256xf32>
    %72 = arith.mulf %66, %71 : vector<8x256xf32>
    %c1_40 = arith.constant 1 : index
    %c0_41 = arith.constant 0 : index
    %c0_42 = arith.constant 0 : index
    %73 = vector.load %arg8[%c1_40, %c0_41, %c0_42] : memref<2x256x128xf32, #tpu.memory_space<vmem>>, vector<1x256x128xf32>
    %74 = vector.shape_cast %73 : vector<1x256x128xf32> to vector<256x128xf32>
    %cst_43 = arith.constant dense<0.000000e+00> : vector<8x128xf32>
    %75 = tpu.matmul %72, %74, %cst_43 {dimension_numbers = #tpu.dot_dimension_numbers<[1], [0], [0], [1], [0, 0, 1, 1], [], []>} : vector<8x256xf32>, vector<256x128xf32>, vector<8x128xf32> -> vector<8x128xf32>
    %c1_44 = arith.constant 1 : index
    %c0_45 = arith.constant 0 : index
    %76 = vector.load %arg9[%c1_44, %c0_45] : memref<2x128xf32, #tpu.memory_space<vmem>>, vector<1x128xf32>
    %77 = vector.broadcast %76 : vector<1x128xf32> to vector<8x128xf32>
    %78 = arith.addf %75, %77 : vector<8x128xf32>
    %79 = arith.addf %78, %44 : vector<8x128xf32>
    %c0_46 = arith.constant 0 : index
    %c0_47 = arith.constant 0 : index
    %80 = vector.load %arg10[%c0_46, %c0_47] : memref<1x128xf32, #tpu.memory_space<vmem>>, vector<1x128xf32>
    %81 = arith.mulf %79, %79 : vector<8x128xf32>
    %cst_48 = arith.constant dense<0.000000e+00> : vector<8xf32>
    %82 = vector.multi_reduction <add>, %81, %cst_48 [1] : vector<8x128xf32> to vector<8xf32>
    %83 = vector.shape_cast %82 : vector<8xf32> to vector<8x1xf32>
    %cst_49 = arith.constant 1.280000e+02 : f32
    %84 = vector.broadcast %cst_49 : f32 to vector<8x1xf32>
    %85 = arith.divf %83, %84 : vector<8x1xf32>
    %86 = math.sqrt %85 : vector<8x1xf32>
    %cst_50 = arith.constant 9.99999993E-9 : f32
    %87 = vector.broadcast %cst_50 : f32 to vector<8x1xf32>
    %88 = arith.addf %86, %87 : vector<8x1xf32>
    %89 = tpu.reciprocal %88 : vector<8x1xf32> -> vector<8x1xf32>
    %90 = vector.broadcast %89 : vector<8x1xf32> to vector<8x128xf32>
    %91 = arith.mulf %79, %90 : vector<8x128xf32>
    %92 = vector.broadcast %80 : vector<1x128xf32> to vector<8x128xf32>
    %93 = arith.mulf %91, %92 : vector<8x128xf32>
    %94 = vector.shape_cast %93 : vector<8x128xf32> to vector<1x8x128xf32>
    %c0_51 = arith.constant 0 : index
    %c0_52 = arith.constant 0 : index
    %95 = vector.load %arg14[%c0_51, %c0_52] : memref<1x128xf32, #tpu.memory_space<vmem>>, vector<1x128xf32>
    %cst_53 = arith.constant dense<0.000000e+00> : vector<1x128xf32>
    %96 = vector.multi_reduction <add>, %94, %cst_53 [1] : vector<1x8x128xf32> to vector<1x128xf32>
    %97 = arith.addf %95, %96 : vector<1x128xf32>
    %c0_54 = arith.constant 0 : index
    %c0_55 = arith.constant 0 : index
    %98 = vector.load %arg14[%c0_54, %c0_55] : memref<1x128xf32, #tpu.memory_space<vmem>>, vector<1x128xf32>
    tpu.vector_store %arg14[%c0_54, %c0_55], %97 {strides = array<i32>} : memref<1x128xf32, #tpu.memory_space<vmem>>, vector<1x128xf32>,
    %c0_i32_56 = arith.constant 0 : i32
    %99 = arith.cmpi eq, %arg1, %c0_i32_56 : i32
    %100 = arith.extui %99 : i1 to i32
    %c0_i32_57 = arith.constant 0 : i32
    %101 = arith.cmpi ne, %100, %c0_i32_57 : i32
    scf.if %101 {
      %c0_58 = arith.constant 0 : index
      %c0_59 = arith.constant 0 : index
      %102 = vector.load %arg14[%c0_58, %c0_59] : memref<1x128xf32, #tpu.memory_space<vmem>>, vector<1x128xf32>
      %cst_60 = arith.constant 1.250000e-01 : f32
      %103 = vector.broadcast %cst_60 : f32 to vector<1x128xf32>
      %104 = arith.mulf %102, %103 : vector<1x128xf32>
      %c0_61 = arith.constant 0 : index
      %c0_62 = arith.constant 0 : index
      %105 = vector.load %arg11[%c0_61, %c0_62] : memref<128x5xf32, #tpu.memory_space<vmem>>, vector<128x5xf32>
      %cst_63 = arith.constant dense<0.000000e+00> : vector<1x5xf32>
      %106 = tpu.matmul %104, %105, %cst_63 {dimension_numbers = #tpu.dot_dimension_numbers<[1], [0], [0], [1], [0, 0, 1, 1], [], []>} : vector<1x128xf32>, vector<128x5xf32>, vector<1x5xf32> -> vector<1x5xf32>
      %c0_64 = arith.constant 0 : index
      %c0_65 = arith.constant 0 : index
      %107 = vector.load %arg12[%c0_64, %c0_65] : memref<1x5xf32, #tpu.memory_space<vmem>>, vector<1x5xf32>
      %108 = arith.addf %106, %107 : vector<1x5xf32>
      %109 = vector.shape_cast %108 : vector<1x5xf32> to vector<1x1x5xf32>
      %c0_66 = arith.constant 0 : index
      %c0_67 = arith.constant 0 : index
      %c0_68 = arith.constant 0 : index
      %110 = vector.load %arg13[%c0_66, %c0_67, %c0_68] : memref<1x1x5xf32, #tpu.memory_space<vmem>>, vector<1x1x5xf32>
      tpu.vector_store %arg13[%c0_66, %c0_67, %c0_68], %109 {strides = array<i32>} : memref<1x1x5xf32, #tpu.memory_space<vmem>>, vector<1x1x5xf32>,
    } else {
    }
    return
  }
  func.func @transform_0(%arg0: i32, %arg1: i32) -> (i32, i32, i32) {
    %c0_i32 = arith.constant 0 : i32
    %c0_i32_0 = arith.constant 0 : i32
    return %arg0, %arg1, %c0_i32 : i32, i32, i32
  }
  func.func @transform_1(%arg0: i32, %arg1: i32) -> (i32, i32) {
    %c0_i32 = arith.constant 0 : i32
    %c0_i32_0 = arith.constant 0 : i32
    %c0_i32_1 = arith.constant 0 : i32
    return %c0_i32, %c0_i32_0 : i32, i32
  }
  func.func @transform_2(%arg0: i32, %arg1: i32) -> (i32, i32) {
    %c0_i32 = arith.constant 0 : i32
    %c0_i32_0 = arith.constant 0 : i32
    %c0_i32_1 = arith.constant 0 : i32
    return %c0_i32, %c0_i32_0 : i32, i32
  }
  func.func @transform_3(%arg0: i32, %arg1: i32) -> (i32, i32) {
    %c0_i32 = arith.constant 0 : i32
    %c0_i32_0 = arith.constant 0 : i32
    %c0_i32_1 = arith.constant 0 : i32
    return %c0_i32, %c0_i32_0 : i32, i32
  }
  func.func @transform_4(%arg0: i32, %arg1: i32) -> (i32, i32, i32) {
    %c0_i32 = arith.constant 0 : i32
    %c0_i32_0 = arith.constant 0 : i32
    %c0_i32_1 = arith.constant 0 : i32
    %c0_i32_2 = arith.constant 0 : i32
    return %c0_i32, %c0_i32_0, %c0_i32_1 : i32, i32, i32
  }
  func.func @transform_5(%arg0: i32, %arg1: i32) -> (i32, i32) {
    %c0_i32 = arith.constant 0 : i32
    %c0_i32_0 = arith.constant 0 : i32
    %c0_i32_1 = arith.constant 0 : i32
    return %c0_i32, %c0_i32_0 : i32, i32
  }
  func.func @transform_6(%arg0: i32, %arg1: i32) -> (i32, i32, i32) {
    %c0_i32 = arith.constant 0 : i32
    %c0_i32_0 = arith.constant 0 : i32
    %c0_i32_1 = arith.constant 0 : i32
    %c0_i32_2 = arith.constant 0 : i32
    return %c0_i32, %c0_i32_0, %c0_i32_1 : i32, i32, i32
  }
  func.func @transform_7(%arg0: i32, %arg1: i32) -> (i32, i32) {
    %c0_i32 = arith.constant 0 : i32
    %c0_i32_0 = arith.constant 0 : i32
    %c0_i32_1 = arith.constant 0 : i32
    return %c0_i32, %c0_i32_0 : i32, i32
  }
  func.func @transform_8(%arg0: i32, %arg1: i32) -> (i32, i32) {
    %c0_i32 = arith.constant 0 : i32
    %c0_i32_0 = arith.constant 0 : i32
    %c0_i32_1 = arith.constant 0 : i32
    return %c0_i32, %c0_i32_0 : i32, i32
  }
  func.func @transform_9(%arg0: i32, %arg1: i32) -> (i32, i32) {
    %c0_i32 = arith.constant 0 : i32
    %c0_i32_0 = arith.constant 0 : i32
    %c0_i32_1 = arith.constant 0 : i32
    return %c0_i32, %c0_i32_0 : i32, i32
  }
  func.func @transform_10(%arg0: i32, %arg1: i32) -> (i32, i32) {
    %c0_i32 = arith.constant 0 : i32
    %c0_i32_0 = arith.constant 0 : i32
    %c0_i32_1 = arith.constant 0 : i32
    return %c0_i32, %c0_i32_0 : i32, i32
  }
  func.func @transform_11(%arg0: i32, %arg1: i32) -> (i32, i32, i32) {
    %c0_i32 = arith.constant 0 : i32
    %c0_i32_0 = arith.constant 0 : i32
    %c0_i32_1 = arith.constant 0 : i32
    return %arg0, %c0_i32, %c0_i32_0 : i32, i32, i32
  }
}

</mosaic_0001>

<llo_original>
// kernel: tpu_custom_call.1
$region0: #{tpu_custom_call.1}
  #allocation0 [shape = 'u32[]', space=smem, size = 0x4, offset = 0x4, fixed_abs, tag = 'smem constant byte address 0x4 - core index']
  #allocation1 [shape = 'u32[72,128]{1,0:T(1,128)}', space=vmem, size = 0x9000, scoped, tag = 'internal scratch']
  #allocation2 [shape = 'f32[1,128]{1,0:T(1,128)}', space=vmem, size = 0x200, scoped, tag = 'scratch operand']
  %s0 = inlined_call_operand.vmem [shape: f32[2,8,4], index: 0, kind: input, shape index: {}]
  %s1 = inlined_call_operand.vmem [shape: f32[4,128], index: 1, kind: input, shape index: {}]
  %s2 = inlined_call_operand.vmem [shape: f32[1,128], index: 2, kind: input, shape index: {}]
  %s3 = inlined_call_operand.vmem [shape: f32[2,128], index: 3, kind: input, shape index: {}]
  %s4 = inlined_call_operand.hbm [shape: f32[2,128,256], index: 4, kind: input, shape index: {}]
  %s5 = inlined_call_operand.vmem [shape: f32[2,256], index: 5, kind: input, shape index: {}]
  %s6 = inlined_call_operand.hbm [shape: f32[2,256,128], index: 6, kind: input, shape index: {}]
  %s7 = inlined_call_operand.vmem [shape: f32[2,128], index: 7, kind: input, shape index: {}]
  %s8 = inlined_call_operand.vmem [shape: f32[1,128], index: 8, kind: input, shape index: {}]
  %s9 = inlined_call_operand.vmem [shape: f32[128,5], index: 9, kind: input, shape index: {}]
  %s10 = inlined_call_operand.vmem [shape: f32[1,5], index: 10, kind: input, shape index: {}]
  %s11 = inlined_call_operand.hbm [shape: f32[2,1,5], index: 11, kind: output, shape index: {}]
  %s12 = sld [smem:[#allocation0]]
  $region93: #{tpu_custom_call.1} parent=0
    _
  %s14 = ssub.s32 1, %s12
  %s15 = scalar_select 0, %s14, %s12
  $region1: #{tpu_custom_call.1} parent=0
    #allocation3 [shape = 'u8[262144]{0}', space=vmem, size = 0x40000, scoped, tag = 'input window, operand 4, single buffered']
    #allocation4 [shape = 's32[2]{0}', space=sflag, size = 0x8, scoped, tag = 'scoped memory for tpu_custom_call.1']
    #allocation5 [shape = 's32[2]{0}', space=sflag, size = 0x8, scoped, tag = 'scoped memory for tpu_custom_call.1']
    #allocation6 [shape = 'u8[262144]{0}', space=vmem, size = 0x40000, scoped, tag = 'input window, operand 6, single buffered']
    #allocation7 [shape = 's32[1]{0}', space=sflag, size = 0x4, scoped, tag = 'scoped memory for tpu_custom_call.1']
    #allocation8 [shape = 'u8[1024]{0}', space=vmem, size = 0x400, scoped, tag = 'output window, operand 0']
    %16 = vsyncpa [#allocation4], 0
    %17 = vsyncpa [#allocation7], 0
    %18 = vsyncpa [#allocation5], 0
    %s19 = scalar_lea.sflag [#allocation5], 1
    %20 = vsyncpa %s19, 0
    loop: start=0, step=1, limit=4
    $region2: #{tpu_custom_call.1} parent=1 // loop_pre_header
      _
    $region3: #{tpu_custom_call.1} parent=1 // loop_header
      %s22 = sphi 0, %s26
      %p23 = scmp.ge.s32.totalorder %s22, 4
      %s29 = sphi 0, %s41
      %s30 = sphi 0, %s37
      %s31 = sphi 0, %s29
      %s32 = sphi 0, %s30
      %s33 = sphi 0, %s31
      %s34 = sphi 0, %s32
      %s46 = sphi 0, %s48
      %s49 = sphi 0, %s46
      %s50 = sphi 0, %s49
      %s66 = sphi 0, %s50
      %s70 = sphi 0, %s70
      %s72 = sphi 0, %s70
      %s73 = sphi 0, %s72
      %s87 = sphi 0, %s73
      %s91 = sphi 0, %s91
      %s93 = sphi 0, %s91
      %s94 = sphi 0, %s93
      %s108 = sphi 0, %s94
      %s112 = sphi 0, %s112
      %s114 = sphi 0, %s112
      %s115 = sphi 0, %s114
      %s129 = sphi 0, %s115
      %s133 = sphi 0, %s133
      %s135 = sphi 0, %s133
      %s136 = sphi 0, %s135
      %s150 = sphi 0, %s136
      %s154 = sphi 0, %s154
      %s156 = sphi 0, %s154
      %s157 = sphi 0, %s156
      %s171 = sphi 0, %s157
      %s175 = sphi 0, %s175
      %s177 = sphi 0, %s175
      %s178 = sphi 0, %s177
      %s192 = sphi 0, %s178
      %s196 = sphi 0, %s196
      %s198 = sphi 0, %s196
      %s199 = sphi 0, %s198
      %s213 = sphi 0, %s199
      %s217 = sphi 0, %s217
      %s219 = sphi 0, %s217
      %s220 = sphi 0, %s219
      %s234 = sphi 0, %s220
      %s238 = sphi 0, %s238
      %s240 = sphi 0, %s238
      %s241 = sphi 0, %s240
      %s255 = sphi 0, %s241
      %s259 = sphi 0, %s259
      %s261 = sphi 0, %s259
      %s262 = sphi 0, %s261
      %s276 = sphi 0, %s262
      %s282 = sphi 0, %s284
      %s285 = sphi 0, %s282
      %s286 = sphi 0, %s285
      %s302 = sphi 0, %s286
    $region4: #{tpu_custom_call.1} parent=1 // loop_header_branch
      %25 = sbr.rel (%p23) target = $region8
    $region5: #{tpu_custom_call.1} parent=1 // loop_body
      %s27 = ssub.s32 %s22, 1
      %s28 = ssub.s32 %s22, 2
      %s35 = sadd.s32 1, %s30
      %p36 = scmp.ge.s32.totalorder %s35, 1
      %s37 = scalar_select %p36, 0, %s35
      %s38 = sadd.s32 1, %s29
      %s39 = scalar_select %p36, %s38, %s29
      %p40 = scmp.ge.s32.totalorder %s39, 2
      %s41 = scalar_select %p40, 0, %s39
      %s42 = ssub.s32 %s29, %s41
      %s43 = ssub.s32 %s30, %s37
      %s44 = sor.u32 %s42, %s43
      %p45 = scmp.eq.s32.totalorder %s44, 0
      %s47 = sadd.s32 %s46, 1
      %s48 = scalar_select %p45, %s46, %s47
      %p51 = pneg %p45
      %p52 = scmp.eq.s32.totalorder %s22, 1
      %p53 = por %p51, %p52
      %p54 = scmp.ne.s32.totalorder %s46, %s49
      %p55 = scmp.eq.s32.totalorder %s22, 0
      %p56 = por %p54, %p55
      %p57 = scmp.ne.s32.totalorder %s46, %s49
      %p58 = scmp.eq.s32.totalorder %s27, 1
      %p59 = por %p57, %p58
      %p60 = scmp.ne.s32.totalorder %s49, %s50
      %p61 = scmp.eq.s32.totalorder %s27, 0
      %p62 = por %p60, %p61
      %p63 = scmp.ne.s32.totalorder %s49, %s50
      %p64 = scmp.eq.s32.totalorder %s28, 1
      %p65 = por %p63, %p64
      %p67 = scmp.ne.s32.totalorder %s50, %s66
      %p68 = scmp.eq.s32.totalorder %s28, 0
      %p69 = por %p67, %p68
      %s71 = sadd.s32 %s70, 1
      %p74 = scmp.eq.s32.totalorder %s22, 1
      %p75 = scmp.ne.s32.totalorder %s70, %s72
      %p76 = scmp.eq.s32.totalorder %s22, 0
      %p77 = por %p75, %p76
      %p78 = scmp.ne.s32.totalorder %s70, %s72
      %p79 = scmp.eq.s32.totalorder %s27, 1
      %p80 = por %p78, %p79
      %p81 = scmp.ne.s32.totalorder %s72, %s73
      %p82 = scmp.eq.s32.totalorder %s27, 0
      %p83 = por %p81, %p82
      %p84 = scmp.ne.s32.totalorder %s72, %s73
      %p85 = scmp.eq.s32.totalorder %s28, 1
      %p86 = por %p84, %p85
      %p88 = scmp.ne.s32.totalorder %s73, %s87
      %p89 = scmp.eq.s32.totalorder %s28, 0
      %p90 = por %p88, %p89
      %s92 = sadd.s32 %s91, 1
      %p95 = scmp.eq.s32.totalorder %s22, 1
      %p96 = scmp.ne.s32.totalorder %s91, %s93
      %p97 = scmp.eq.s32.totalorder %s22, 0
      %p98 = por %p96, %p97
      %p99 = scmp.ne.s32.totalorder %s91, %s93
      %p100 = scmp.eq.s32.totalorder %s27, 1
      %p101 = por %p99, %p100
      %p102 = scmp.ne.s32.totalorder %s93, %s94
      %p103 = scmp.eq.s32.totalorder %s27, 0
      %p104 = por %p102, %p103
      %p105 = scmp.ne.s32.totalorder %s93, %s94
      %p106 = scmp.eq.s32.totalorder %s28, 1
      %p107 = por %p105, %p106
      %p109 = scmp.ne.s32.totalorder %s94, %s108
      %p110 = scmp.eq.s32.totalorder %s28, 0
      %p111 = por %p109, %p110
      %s113 = sadd.s32 %s112, 1
      %p116 = scmp.eq.s32.totalorder %s22, 1
      %p117 = scmp.ne.s32.totalorder %s112, %s114
      %p118 = scmp.eq.s32.totalorder %s22, 0
      %p119 = por %p117, %p118
      %p120 = scmp.ne.s32.totalorder %s112, %s114
      %p121 = scmp.eq.s32.totalorder %s27, 1
      %p122 = por %p120, %p121
      %p123 = scmp.ne.s32.totalorder %s114, %s115
      %p124 = scmp.eq.s32.totalorder %s27, 0
      %p125 = por %p123, %p124
      %p126 = scmp.ne.s32.totalorder %s114, %s115
      %p127 = scmp.eq.s32.totalorder %s28, 1
      %p128 = por %p126, %p127
      %p130 = scmp.ne.s32.totalorder %s115, %s129
      %p131 = scmp.eq.s32.totalorder %s28, 0
      %p132 = por %p130, %p131
      %s134 = sadd.s32 %s133, 1
      %p137 = scmp.eq.s32.totalorder %s22, 1
      %p138 = scmp.ne.s32.totalorder %s133, %s135
      %p139 = scmp.eq.s32.totalorder %s22, 0
      %p140 = por %p138, %p139
      %p141 = scmp.ne.s32.totalorder %s133, %s135
      %p142 = scmp.eq.s32.totalorder %s27, 1
      %p143 = por %p141, %p142
      %p144 = scmp.ne.s32.totalorder %s135, %s136
      %p145 = scmp.eq.s32.totalorder %s27, 0
      %p146 = por %p144, %p145
      %p147 = scmp.ne.s32.totalorder %s135, %s136
      %p148 = scmp.eq.s32.totalorder %s28, 1
      %p149 = por %p147, %p148
      %p151 = scmp.ne.s32.totalorder %s136, %s150
      %p152 = scmp.eq.s32.totalorder %s28, 0
      %p153 = por %p151, %p152
      %s155 = sadd.s32 %s154, 1
      %p158 = scmp.eq.s32.totalorder %s22, 1
      %p159 = scmp.ne.s32.totalorder %s154, %s156
      %p160 = scmp.eq.s32.totalorder %s22, 0
      %p161 = por %p159, %p160
      %p162 = scmp.ne.s32.totalorder %s154, %s156
      %p163 = scmp.eq.s32.totalorder %s27, 1
      %p164 = por %p162, %p163
      %p165 = scmp.ne.s32.totalorder %s156, %s157
      %p166 = scmp.eq.s32.totalorder %s27, 0
      %p167 = por %p165, %p166
      %p168 = scmp.ne.s32.totalorder %s156, %s157
      %p169 = scmp.eq.s32.totalorder %s28, 1
      %p170 = por %p168, %p169
      %p172 = scmp.ne.s32.totalorder %s157, %s171
      %p173 = scmp.eq.s32.totalorder %s28, 0
      %p174 = por %p172, %p173
      %s176 = sadd.s32 %s175, 1
      %p179 = scmp.eq.s32.totalorder %s22, 1
      %p180 = scmp.ne.s32.totalorder %s175, %s177
      %p181 = scmp.eq.s32.totalorder %s22, 0
      %p182 = por %p180, %p181
      %p183 = scmp.ne.s32.totalorder %s175, %s177
      %p184 = scmp.eq.s32.totalorder %s27, 1
      %p185 = por %p183, %p184
      %p186 = scmp.ne.s32.totalorder %s177, %s178
      %p187 = scmp.eq.s32.totalorder %s27, 0
      %p188 = por %p186, %p187
      %p189 = scmp.ne.s32.totalorder %s177, %s178
      %p190 = scmp.eq.s32.totalorder %s28, 1
      %p191 = por %p189, %p190
      %p193 = scmp.ne.s32.totalorder %s178, %s192
      %p194 = scmp.eq.s32.totalorder %s28, 0
      %p195 = por %p193, %p194
      %s197 = sadd.s32 %s196, 1
      %p200 = scmp.eq.s32.totalorder %s22, 1
      %p201 = scmp.ne.s32.totalorder %s196, %s198
      %p202 = scmp.eq.s32.totalorder %s22, 0
      %p203 = por %p201, %p202
      %p204 = scmp.ne.s32.totalorder %s196, %s198
      %p205 = scmp.eq.s32.totalorder %s27, 1
      %p206 = por %p204, %p205
      %p207 = scmp.ne.s32.totalorder %s198, %s199
      %p208 = scmp.eq.s32.totalorder %s27, 0
      %p209 = por %p207, %p208
      %p210 = scmp.ne.s32.totalorder %s198, %s199
      %p211 = scmp.eq.s32.totalorder %s28, 1
      %p212 = por %p210, %p211
      %p214 = scmp.ne.s32.totalorder %s199, %s213
      %p215 = scmp.eq.s32.totalorder %s28, 0
      %p216 = por %p214, %p215
      %s218 = sadd.s32 %s217, 1
      %p221 = scmp.eq.s32.totalorder %s22, 1
      %p222 = scmp.ne.s32.totalorder %s217, %s219
      %p223 = scmp.eq.s32.totalorder %s22, 0
      %p224 = por %p222, %p223
      %p225 = scmp.ne.s32.totalorder %s217, %s219
      %p226 = scmp.eq.s32.totalorder %s27, 1
      %p227 = por %p225, %p226
      %p228 = scmp.ne.s32.totalorder %s219, %s220
      %p229 = scmp.eq.s32.totalorder %s27, 0
      %p230 = por %p228, %p229
      %p231 = scmp.ne.s32.totalorder %s219, %s220
      %p232 = scmp.eq.s32.totalorder %s28, 1
      %p233 = por %p231, %p232
      %p235 = scmp.ne.s32.totalorder %s220, %s234
      %p236 = scmp.eq.s32.totalorder %s28, 0
      %p237 = por %p235, %p236
      %s239 = sadd.s32 %s238, 1
      %p242 = scmp.eq.s32.totalorder %s22, 1
      %p243 = scmp.ne.s32.totalorder %s238, %s240
      %p244 = scmp.eq.s32.totalorder %s22, 0
      %p245 = por %p243, %p244
      %p246 = scmp.ne.s32.totalorder %s238, %s240
      %p247 = scmp.eq.s32.totalorder %s27, 1
      %p248 = por %p246, %p247
      %p249 = scmp.ne.s32.totalorder %s240, %s241
      %p250 = scmp.eq.s32.totalorder %s27, 0
      %p251 = por %p249, %p250
      %p252 = scmp.ne.s32.totalorder %s240, %s241
      %p253 = scmp.eq.s32.totalorder %s28, 1
      %p254 = por %p252, %p253
      %p256 = scmp.ne.s32.totalorder %s241, %s255
      %p257 = scmp.eq.s32.totalorder %s28, 0
      %p258 = por %p256, %p257
      %s260 = sadd.s32 %s259, 1
      %p263 = scmp.eq.s32.totalorder %s22, 1
      %p264 = scmp.ne.s32.totalorder %s259, %s261
      %p265 = scmp.eq.s32.totalorder %s22, 0
      %p266 = por %p264, %p265
      %p267 = scmp.ne.s32.totalorder %s259, %s261
      %p268 = scmp.eq.s32.totalorder %s27, 1
      %p269 = por %p267, %p268
      %p270 = scmp.ne.s32.totalorder %s261, %s262
      %p271 = scmp.eq.s32.totalorder %s27, 0
      %p272 = por %p270, %p271
      %p273 = scmp.ne.s32.totalorder %s261, %s262
      %p274 = scmp.eq.s32.totalorder %s28, 1
      %p275 = por %p273, %p274
      %p277 = scmp.ne.s32.totalorder %s262, %s276
      %p278 = scmp.eq.s32.totalorder %s28, 0
      %p279 = por %p277, %p278
      %s280 = ssub.s32 %s29, %s41
      %p281 = scmp.eq.s32.totalorder %s280, 0
      %s283 = sadd.s32 %s282, 1
      %s284 = scalar_select %p281, %s282, %s283
      %p287 = pneg %p281
      %p288 = scmp.eq.s32.totalorder %s22, 1
      %p289 = por %p287, %p288
      %p290 = scmp.ne.s32.totalorder %s282, %s285
      %p291 = scmp.eq.s32.totalorder %s22, 0
      %p292 = por %p290, %p291
      %p293 = scmp.ne.s32.totalorder %s282, %s285
      %p294 = scmp.eq.s32.totalorder %s27, 1
      %p295 = por %p293, %p294
      %p296 = scmp.ne.s32.totalorder %s285, %s286
      %p297 = scmp.eq.s32.totalorder %s27, 0
      %p298 = por %p296, %p297
      %p299 = scmp.ne.s32.totalorder %s285, %s286
      %p300 = scmp.eq.s32.totalorder %s28, 1
      %p301 = por %p299, %p300
      %p303 = scmp.ne.s32.totalorder %s286, %s302
      %p304 = scmp.eq.s32.totalorder %s28, 0
      %p305 = por %p303, %p304
      %p306 = scmp.le.s32.totalorder 1, %s22
      %p307 = scmp.lt.s32.totalorder %s22, 3
      %p308 = pnand %p306, %p307
      %p309 = pneg %p308
      // Predicated region
      $region9: #{tpu_custom_call.1} parent=5 // pred_check
        _
      $region10: #{tpu_custom_call.1} parent=5 // pred_check_branch
        %311 = sbr.rel (%p308) target = $region12
      $region11: #{tpu_custom_call.1} parent=5 // pred_region
        %s312 = ssub.s32 %s22, 1
        // Predicated region
        $region13: #{tpu_custom_call.1} parent=11 // pred_check
          %p313 = pneg %p83
        $region14: #{tpu_custom_call.1} parent=11 // pred_check_branch
          %315 = sbr.rel (%p313) target = $region16
        $region15: #{tpu_custom_call.1} parent=11 // pred_region
          _
        $region16: #{tpu_custom_call.1} parent=11 // pred_fallthru
          _
        // Predicated region
        $region17: #{tpu_custom_call.1} parent=11 // pred_check
          %p316 = pneg %p104
        $region18: #{tpu_custom_call.1} parent=11 // pred_check_branch
          %318 = sbr.rel (%p316) target = $region20
        $region19: #{tpu_custom_call.1} parent=11 // pred_region
          _
        $region20: #{tpu_custom_call.1} parent=11 // pred_fallthru
          _
        // Predicated region
        $region21: #{tpu_custom_call.1} parent=11 // pred_check
          %p319 = pneg %p125
        $region22: #{tpu_custom_call.1} parent=11 // pred_check_branch
          %321 = sbr.rel (%p319) target = $region24
        $region23: #{tpu_custom_call.1} parent=11 // pred_region
          _
        $region24: #{tpu_custom_call.1} parent=11 // pred_fallthru
          _
        // Predicated region
        $region25: #{tpu_custom_call.1} parent=11 // pred_check
          %p322 = pneg %p146
        $region26: #{tpu_custom_call.1} parent=11 // pred_check_branch
          %324 = sbr.rel (%p322) target = $region28
        $region27: #{tpu_custom_call.1} parent=11 // pred_region
          %326 = vsyncadd [#allocation4], 0
          %s327 = sshll.u32 %s4, 4
          %s328 = int_to_ptr.hbm [resolvable:$true] %s327
          %s329 = sshll.u32 [#allocation3], 4
          %s330 = int_to_ptr.vmem [resolvable:$true] %s329
          %335 = dma.hbm_to_vmem [thread:$0]  %s328, 8192, %s330, [#allocation4], 256, 256, 16
        $region28: #{tpu_custom_call.1} parent=11 // pred_fallthru
          _
        // Predicated region
        $region29: #{tpu_custom_call.1} parent=11 // pred_check
          %p336 = pneg %p167
        $region30: #{tpu_custom_call.1} parent=11 // pred_check_branch
          %338 = sbr.rel (%p336) target = $region32
        $region31: #{tpu_custom_call.1} parent=11 // pred_region
          _
        $region32: #{tpu_custom_call.1} parent=11 // pred_fallthru
          _
        // Predicated region
        $region33: #{tpu_custom_call.1} parent=11 // pred_check
          %p339 = pneg %p188
        $region34: #{tpu_custom_call.1} parent=11 // pred_check_branch
          %341 = sbr.rel (%p339) target = $region36
        $region35: #{tpu_custom_call.1} parent=11 // pred_region
          %343 = vsyncadd [#allocation7], 0
          %s344 = sshll.u32 %s6, 4
          %s345 = int_to_ptr.hbm [resolvable:$true] %s344
          %s346 = sshll.u32 [#allocation6], 4
          %s347 = int_to_ptr.vmem [resolvable:$true] %s346
          %352 = dma.hbm_to_vmem [thread:$0]  %s345, 8192, %s347, [#allocation7], 128, 128, 8
        $region36: #{tpu_custom_call.1} parent=11 // pred_fallthru
          _
        // Predicated region
        $region37: #{tpu_custom_call.1} parent=11 // pred_check
          %p353 = pneg %p209
        $region38: #{tpu_custom_call.1} parent=11 // pred_check_branch
          %355 = sbr.rel (%p353) target = $region40
        $region39: #{tpu_custom_call.1} parent=11 // pred_region
          _
        $region40: #{tpu_custom_call.1} parent=11 // pred_fallthru
          _
        // Predicated region
        $region41: #{tpu_custom_call.1} parent=11 // pred_check
          %p356 = pneg %p230
        $region42: #{tpu_custom_call.1} parent=11 // pred_check_branch
          %358 = sbr.rel (%p356) target = $region44
        $region43: #{tpu_custom_call.1} parent=11 // pred_region
          _
        $region44: #{tpu_custom_call.1} parent=11 // pred_fallthru
          _
        // Predicated region
        $region45: #{tpu_custom_call.1} parent=11 // pred_check
          %p359 = pneg %p251
        $region46: #{tpu_custom_call.1} parent=11 // pred_check_branch
          %361 = sbr.rel (%p359) target = $region48
        $region47: #{tpu_custom_call.1} parent=11 // pred_region
          _
        $region48: #{tpu_custom_call.1} parent=11 // pred_fallthru
          _
        // Predicated region
        $region49: #{tpu_custom_call.1} parent=11 // pred_check
          %p362 = pneg %p272
        $region50: #{tpu_custom_call.1} parent=11 // pred_check_branch
          %364 = sbr.rel (%p362) target = $region52
        $region51: #{tpu_custom_call.1} parent=11 // pred_region
          _
        $region52: #{tpu_custom_call.1} parent=11 // pred_fallthru
          _
      $region12: #{tpu_custom_call.1} parent=5 // pred_fallthru
        _
      %p365 = scmp.lt.s32.totalorder %s22, 2
      // Predicated region
      $region53: #{tpu_custom_call.1} parent=5 // pred_check
        %p366 = pneg %p365
      $region54: #{tpu_custom_call.1} parent=5 // pred_check_branch
        %368 = sbr.rel (%p366) target = $region56
      $region55: #{tpu_custom_call.1} parent=5 // pred_region
        // Predicated region
        $region57: #{tpu_custom_call.1} parent=55 // pred_check
          %p369 = pneg %p56
        $region58: #{tpu_custom_call.1} parent=55 // pred_check_branch
          %371 = sbr.rel (%p369) target = $region60
        $region59: #{tpu_custom_call.1} parent=55 // pred_region
          %p372 = scmp.lt.s32.totalorder %s29, 1
          %s373 = scalar_select %p372, %s29, 1
          %p374 = scmp.lt.s32.totalorder %s30, 0
          %s375 = scalar_select %p374, %s30, 0
          %s376 = sadd.s32 %s375, %s373
          %s377 = smul.addr %s376, 8
          %s378 = scalar_lea.vmem %s0, %s377
        $region60: #{tpu_custom_call.1} parent=55 // pred_fallthru
          _
      $region56: #{tpu_custom_call.1} parent=5 // pred_fallthru
        _
      %p379 = scmp.le.s32.totalorder 1, %s22
      %p380 = scmp.lt.s32.totalorder %s22, 3
      %p381 = pnand %p379, %p380
      %p382 = pneg %p381
      // Predicated region
      $region61: #{tpu_custom_call.1} parent=5 // pred_check
        _
      $region62: #{tpu_custom_call.1} parent=5 // pred_check_branch
        %384 = sbr.rel (%p381) target = $region64
      $region63: #{tpu_custom_call.1} parent=5 // pred_region
        %s385 = ssub.s32 %s22, 1
        // Predicated region
        $region65: #{tpu_custom_call.1} parent=63 // pred_check
          %p386 = pneg %p146
        $region66: #{tpu_custom_call.1} parent=63 // pred_check_branch
          %388 = sbr.rel (%p386) target = $region68
        $region67: #{tpu_custom_call.1} parent=63 // pred_region
          %390 = dma.done [#allocation4], 8192
        $region68: #{tpu_custom_call.1} parent=63 // pred_fallthru
          _
        // Predicated region
        $region69: #{tpu_custom_call.1} parent=63 // pred_check
          %p391 = pneg %p188
        $region70: #{tpu_custom_call.1} parent=63 // pred_check_branch
          %393 = sbr.rel (%p391) target = $region72
        $region71: #{tpu_custom_call.1} parent=63 // pred_region
          %395 = dma.done [#allocation7], 8192
        $region72: #{tpu_custom_call.1} parent=63 // pred_fallthru
          _
        %p396 = scmp.lt.s32.totalorder %s31, 1
        %s397 = scalar_select %p396, %s31, 1
        %p398 = scmp.lt.s32.totalorder %s32, 0
        %s399 = scalar_select %p398, %s32, 0
        %s400 = sadd.s32 %s399, %s397
        %s401 = smul.addr %s400, 8
        %s402 = scalar_lea.vmem %s0, %s401
        %p403 = pneg %p62
        %p404 = pneg %p59
        %p405 = pneg %p83
        %p406 = pneg %p80
        %p407 = pneg %p104
        %p408 = pneg %p101
        %p409 = pneg %p125
        %p410 = pneg %p122
        %p411 = pneg %p146
        %p412 = pneg %p143
        %p413 = pneg %p167
        %p414 = pneg %p164
        %p415 = pneg %p188
        %p416 = pneg %p185
        %p417 = pneg %p209
        %p418 = pneg %p206
        %p419 = pneg %p230
        %p420 = pneg %p227
        %p421 = pneg %p251
        %p422 = pneg %p248
        %p423 = pneg %p272
        %p424 = pneg %p269
        %p425 = pneg %p298
        %p426 = pneg %p295
        %s427 = sand.u32 %s285, 1
        %s428 = scalar_lea.sflag [#allocation5], %s427
        %s429 = sand.u32 %s285, 1
        %s430 = scalar_lea.vmem [#allocation8], %s429
        %p431 = scmp.lt.s32.totalorder %s31, 1
        %s432 = scalar_select %p431, %s31, 1
        %p433 = scmp.lt.s32.totalorder %s32, 0
        %s434 = scalar_select %p433, %s32, 0
        %s435 = sadd.s32 %s434, %s432
        %s436 = smul.addr %s435, 8
        %s437 = scalar_lea.vmem %s0, %s436
        %p438 = scmp.eq.s32.totalorder %s32, 0
        // Predicated region
        $region73: #{tpu_custom_call.1} parent=63 // pred_check
          %p439 = pneg %p438
        $region74: #{tpu_custom_call.1} parent=63 // pred_check_branch
          %441 = sbr.rel (%p439) target = $region76
        $region75: #{tpu_custom_call.1} parent=63 // pred_region
          %442 = vst [vmem:[#allocation2] sm:$0x1] 0.0
        $region76: #{tpu_custom_call.1} parent=63 // pred_fallthru
          _
        %v443 = vld [vmem:[%s437] sm:$0xff]
        %v444 = vld [vmem:[%s1] sm:$0xf]
        %446 = vset.pattern.permute.xlu0 0
        %447 = vperm.xlu0 %446, %v443
        %v448 = vpop.permute.xlu0 %447
        %v450 = vperm.slane %v444, 0
        %v451 = vmul.f32 %v448, %v450
        %v452 = vadd.f32 %v451, 0.0
        %453 = vset.pattern.permute.xlu0 1
        %454 = vperm.xlu0 %453, %v443
        %v455 = vpop.permute.xlu0 %454
        %v457 = vperm.slane %v444, 1
        %v458 = vmul.f32 %v455, %v457
        %v459 = vadd.f32 %v452, %v458
        %460 = vset.pattern.permute.xlu0 2
        %461 = vperm.xlu0 %460, %v443
        %v462 = vpop.permute.xlu0 %461
        %v464 = vperm.slane %v444, 2
        %v465 = vmul.f32 %v462, %v464
        %v466 = vadd.f32 %v459, %v465
        %467 = vset.pattern.permute.xlu0 3
        %468 = vperm.xlu0 %467, %v443
        %v469 = vpop.permute.xlu0 %468
        %v471 = vperm.slane %v444, 3
        %v472 = vmul.f32 %v469, %v471
        %v473 = vadd.f32 %v466, %v472
        %v474 = vld [vmem:[%s2] sm:$0x1]
        %v476 = vperm.slane %v474, 0
        %v478 = vadd.f32 %v473, %v476
        %v479 = vld [vmem:[%s3] sm:$0x1]
        %v480 = vmul.f32 %v478, %v478
        %481 = vadd.xlane.f32.xlu0 %v480
        %v482 = vpop.xlane.xlu0 %481
        %v483 = vrcp.pop 128.0
        %v484 = vmul.f32 128.0, %v483
        %v485 = vsub.f32 1.0, %v484
        %v486 = vmul.f32 %v483, %v485
        %v487 = vadd.f32 %v483, %v486
        %vm488 = vweird.f32 %v483
        %v489 = vsel %vm488, %v483, %v487
        %v490 = vmul.f32 %v482, %v489
        %v491 = vrsqrt.pop %v490
        %v492 = vmul.f32 %v491, %v490
        %v493 = vmul.f32 %v492, %v491
        %v494 = vmul.f32 0.5, %v493
        %v495 = vsub.f32 1.5, %v494
        %v496 = vmul.f32 %v491, %v495
        %v497 = vmul.f32 %v490, %v496
        %vm498 = vcmp.eq.f32.partialorder %v490, inf
        %v499 = vsel %vm498, %v490, %v497
        %vm500 = vcmp.eq.f32.partialorder %v490, 0.0
        %v501 = vand.u32 %v490, 2147483648
        %v502 = vsel %vm500, %v501, %v499
        %v503 = vadd.f32 %v502, 1e-08
        %v504 = vrcp.pop %v503
        %v505 = vmul.f32 %v503, %v504
        %v506 = vsub.f32 1.0, %v505
        %v507 = vmul.f32 %v504, %v506
        %v508 = vadd.f32 %v504, %v507
        %vm509 = vweird.f32 %v503
        %vm510 = vweird.f32 %v504
        %vm511 = vmor %vm509, %vm510
        %v512 = vsel %vm511, %v504, %v508
        %v513 = vand.u32 2147483647, %v503
        %vm514 = vcmp.eq.f32.partialorder %v513, 8.507059e+37
        %v515 = vand.u32 %v503, 2147483648
        %v516 = vor.u32 1.1754944e-38, %v515
        %v517 = vsel %vm514, %v516, %v512
        %v518 = vmul.f32 %v478, %v517
        %v519 = vperm.slane %v479, 0
        %v520 = vmul.f32 %v518, %v519
        %v521 = vld [vmem:[#allocation3] sm:$0xff]
        %v522 = vld [vmem:[#allocation3 + $0x8] sm:$0xff]
        %v523 = vld [vmem:[#allocation3 + $0x10] sm:$0xff]
        %v524 = vld [vmem:[#allocation3 + $0x18] sm:$0xff]
        %v525 = vld [vmem:[#allocation3 + $0x20] sm:$0xff]
        %v526 = vld [vmem:[#allocation3 + $0x28] sm:$0xff]
        %v527 = vld [vmem:[#allocation3 + $0x30] sm:$0xff]
        %v528 = vld [vmem:[#allocation3 + $0x38] sm:$0xff]
        %v529 = vld [vmem:[#allocation3 + $0x40] sm:$0xff]
        %v530 = vld [vmem:[#allocation3 + $0x48] sm:$0xff]
        %v531 = vld [vmem:[#allocation3 + $0x50] sm:$0xff]
        %v532 = vld [vmem:[#allocation3 + $0x58] sm:$0xff]
        %v533 = vld [vmem:[#allocation3 + $0x60] sm:$0xff]
        %v534 = vld [vmem:[#allocation3 + $0x68] sm:$0xff]
        %v535 = vld [vmem:[#allocation3 + $0x70] sm:$0xff]
        %v536 = vld [vmem:[#allocation3 + $0x78] sm:$0xff]
        %v537 = vld [vmem:[#allocation3 + $0x80] sm:$0xff]
        %v538 = vld [vmem:[#allocation3 + $0x88] sm:$0xff]
        %v539 = vld [vmem:[#allocation3 + $0x90] sm:$0xff]
        %v540 = vld [vmem:[#allocation3 + $0x98] sm:$0xff]
        %v541 = vld [vmem:[#allocation3 + $0xa0] sm:$0xff]
        %v542 = vld [vmem:[#allocation3 + $0xa8] sm:$0xff]
        %v543 = vld [vmem:[#allocation3 + $0xb0] sm:$0xff]
        %v544 = vld [vmem:[#allocation3 + $0xb8] sm:$0xff]
        %v545 = vld [vmem:[#allocation3 + $0xc0] sm:$0xff]
        %v546 = vld [vmem:[#allocation3 + $0xc8] sm:$0xff]
        %v547 = vld [vmem:[#allocation3 + $0xd0] sm:$0xff]
        %v548 = vld [vmem:[#allocation3 + $0xd8] sm:$0xff]
        %v549 = vld [vmem:[#allocation3 + $0xe0] sm:$0xff]
        %v550 = vld [vmem:[#allocation3 + $0xe8] sm:$0xff]
        %v551 = vld [vmem:[#allocation3 + $0xf0] sm:$0xff]
        %v552 = vld [vmem:[#allocation3 + $0xf8] sm:$0xff]
        %v553 = vld [vmem:[%s5] ss:$2 sm:$0x3]
        %v555 = vperm.slane %v553, 0
        %v556 = vperm.slane %v553, 1
        %559 = vmatpush.msra.mxu0 %v551
        %560 = vmatpush.msra.mxu0 %v549
        %561 = vmatpush.msra.mxu0 %v547
        %562 = vmatpush.msra.mxu0 %v545
        %563 = vmatpush.msra.mxu0 %v543
        %564 = vmatpush.msra.mxu0 %v541
        %565 = vmatpush.msra.mxu0 %v539
        %566 = vmatpush.msra.mxu0 %v537
        %567 = vmatpush.msra.mxu0 %v535
        %568 = vmatpush.msra.mxu0 %v533
        %569 = vmatpush.msra.mxu0 %v531
        %570 = vmatpush.msra.mxu0 %v529
        %571 = vmatpush.msra.mxu0 %v527
        %572 = vmatpush.msra.mxu0 %v525
        %573 = vmatpush.msra.mxu0 %v523
        %574 = vmatpush.msra.mxu0 %v521
        %575 = vmatmul.f32.gmra.mxu0 %v520
        %v576 = vpop.f32.mrf.mxu0
        %v577 = vadd.f32 %v555, %v576
        %578 = vdwg.mxu0
        %579 = vmatpush.msra.mxu0 %v552
        %580 = vmatpush.msra.mxu0 %v550
        %581 = vmatpush.msra.mxu0 %v548
        %582 = vmatpush.msra.mxu0 %v546
        %583 = vmatpush.msra.mxu0 %v544
        %584 = vmatpush.msra.mxu0 %v542
        %585 = vmatpush.msra.mxu0 %v540
        %586 = vmatpush.msra.mxu0 %v538
        %587 = vmatpush.msra.mxu0 %v536
        %588 = vmatpush.msra.mxu0 %v534
        %589 = vmatpush.msra.mxu0 %v532
        %590 = vmatpush.msra.mxu0 %v530
        %591 = vmatpush.msra.mxu0 %v528
        %592 = vmatpush.msra.mxu0 %v526
        %593 = vmatpush.msra.mxu0 %v524
        %594 = vmatpush.msra.mxu0 %v522
        %595 = vmatmul.f32.gmra.mxu0 %v520
        %v596 = vpop.f32.mrf.mxu0
        %v597 = vadd.f32 %v556, %v596
        %598 = vdwg.mxu0
        %v599 = vmul.f32 %v577, 0.5
        %v600 = vmul.f32 %v597, 0.5
        %v601 = vmul.f32 %v577, 0.70710677
        %v602 = vmul.f32 %v597, 0.70710677
        %v603 = vmul.f32 %v601, %v601
        %v604 = vmin.f32 16.0, %v603
        %v605 = vmul.f32 %v604, 2.1237322e-06
        %v606 = vadd.f32 %v605, 0.00028619796
        %v607 = vmul.f32 %v604, %v606
        %v608 = vadd.f32 %v607, 0.0036580483
        %v609 = vmul.f32 %v604, %v608
        %v610 = vadd.f32 %v609, 0.05243302
        %v611 = vmul.f32 %v604, %v610
        %v612 = vadd.f32 %v611, 0.18741608
        %v613 = vmul.f32 %v604, %v612
        %v614 = vadd.f32 %v613, 1.1283791
        %v615 = vmul.f32 %v601, %v614
        %v616 = vmul.f32 %v604, 3.8918573e-05
        %v617 = vadd.f32 %v616, 0.001143296
        %v618 = vmul.f32 %v604, %v617
        %v619 = vadd.f32 %v618, 0.014752088
        %v620 = vmul.f32 %v604, %v619
        %v621 = vadd.f32 %v620, 0.112945676
        %v622 = vmul.f32 %v604, %v621
        %v623 = vadd.f32 %v622, 0.4994258
        %v624 = vmul.f32 %v604, %v623
        %v625 = vadd.f32 %v624, 1.0
        %v626 = vrcp.pop %v625
        %v627 = vmul.f32 %v625, %v626
        %v628 = vsub.f32 1.0, %v627
        %v629 = vmul.f32 %v626, %v628
        %v630 = vadd.f32 %v626, %v629
        %vm631 = vweird.f32 %v625
        %vm632 = vweird.f32 %v626
        %vm633 = vmor %vm631, %vm632
        %v634 = vsel %vm633, %v626, %v630
        %v635 = vand.u32 2147483647, %v625
        %vm636 = vcmp.eq.f32.partialorder %v635, 8.507059e+37
        %v637 = vand.u32 %v625, 2147483648
        %v638 = vor.u32 1.1754944e-38, %v637
        %v639 = vsel %vm636, %v638, %v634
        %v640 = vmul.f32 %v615, %v639
        %v641 = vmin.f32 %v640, 1.0
        %v642 = vmax.f32 %v641, -1.0
        %v643 = vmul.f32 %v602, %v602
        %v644 = vmin.f32 16.0, %v643
        %v645 = vmul.f32 %v644, 2.1237322e-06
        %v646 = vadd.f32 %v645, 0.00028619796
        %v647 = vmul.f32 %v644, %v646
        %v648 = vadd.f32 %v647, 0.0036580483
        %v649 = vmul.f32 %v644, %v648
        %v650 = vadd.f32 %v649, 0.05243302
        %v651 = vmul.f32 %v644, %v650
        %v652 = vadd.f32 %v651, 0.18741608
        %v653 = vmul.f32 %v644, %v652
        %v654 = vadd.f32 %v653, 1.1283791
        %v655 = vmul.f32 %v602, %v654
        %v656 = vmul.f32 %v644, 3.8918573e-05
        %v657 = vadd.f32 %v656, 0.001143296
        %v658 = vmul.f32 %v644, %v657
        %v659 = vadd.f32 %v658, 0.014752088
        %v660 = vmul.f32 %v644, %v659
        %v661 = vadd.f32 %v660, 0.112945676
        %v662 = vmul.f32 %v644, %v661
        %v663 = vadd.f32 %v662, 0.4994258
        %v664 = vmul.f32 %v644, %v663
        %v665 = vadd.f32 %v664, 1.0
        %v666 = vrcp.pop %v665
        %v667 = vmul.f32 %v665, %v666
        %v668 = vsub.f32 1.0, %v667
        %v669 = vmul.f32 %v666, %v668
        %v670 = vadd.f32 %v666, %v669
        %vm671 = vweird.f32 %v665
        %vm672 = vweird.f32 %v666
        %vm673 = vmor %vm671, %vm672
        %v674 = vsel %vm673, %v666, %v670
        %v675 = vand.u32 2147483647, %v665
        %vm676 = vcmp.eq.f32.partialorder %v675, 8.507059e+37
        %v677 = vand.u32 %v665, 2147483648
        %v678 = vor.u32 1.1754944e-38, %v677
        %v679 = vsel %vm676, %v678, %v674
        %v680 = vmul.f32 %v655, %v679
        %v681 = vmin.f32 %v680, 1.0
        %v682 = vmax.f32 %v681, -1.0
        %v683 = vadd.f32 %v642, 1.0
        %v684 = vadd.f32 %v682, 1.0
        %v685 = vmul.f32 %v599, %v683
        %v686 = vmul.f32 %v600, %v684
        %v687 = vld [vmem:[#allocation6] sm:$0xff]
        %v688 = vld [vmem:[#allocation6 + $0x8] sm:$0xff]
        %v689 = vld [vmem:[#allocation6 + $0x10] sm:$0xff]
        %v690 = vld [vmem:[#allocation6 + $0x18] sm:$0xff]
        %v691 = vld [vmem:[#allocation6 + $0x20] sm:$0xff]
        %v692 = vld [vmem:[#allocation6 + $0x28] sm:$0xff]
        %v693 = vld [vmem:[#allocation6 + $0x30] sm:$0xff]
        %v694 = vld [vmem:[#allocation6 + $0x38] sm:$0xff]
        %v695 = vld [vmem:[#allocation6 + $0x40] sm:$0xff]
        %v696 = vld [vmem:[#allocation6 + $0x48] sm:$0xff]
        %v697 = vld [vmem:[#allocation6 + $0x50] sm:$0xff]
        %v698 = vld [vmem:[#allocation6 + $0x58] sm:$0xff]
        %v699 = vld [vmem:[#allocation6 + $0x60] sm:$0xff]
        %v700 = vld [vmem:[#allocation6 + $0x68] sm:$0xff]
        %v701 = vld [vmem:[#allocation6 + $0x70] sm:$0xff]
        %v702 = vld [vmem:[#allocation6 + $0x78] sm:$0xff]
        %v703 = vld [vmem:[#allocation6 + $0x80] sm:$0xff]
        %v704 = vld [vmem:[#allocation6 + $0x88] sm:$0xff]
        %v705 = vld [vmem:[#allocation6 + $0x90] sm:$0xff]
        %v706 = vld [vmem:[#allocation6 + $0x98] sm:$0xff]
        %v707 = vld [vmem:[#allocation6 + $0xa0] sm:$0xff]
        %v708 = vld [vmem:[#allocation6 + $0xa8] sm:$0xff]
        %v709 = vld [vmem:[#allocation6 + $0xb0] sm:$0xff]
        %v710 = vld [vmem:[#allocation6 + $0xb8] sm:$0xff]
        %v711 = vld [vmem:[#allocation6 + $0xc0] sm:$0xff]
        %v712 = vld [vmem:[#allocation6 + $0xc8] sm:$0xff]
        %v713 = vld [vmem:[#allocation6 + $0xd0] sm:$0xff]
        %v714 = vld [vmem:[#allocation6 + $0xd8] sm:$0xff]
        %v715 = vld [vmem:[#allocation6 + $0xe0] sm:$0xff]
        %v716 = vld [vmem:[#allocation6 + $0xe8] sm:$0xff]
        %v717 = vld [vmem:[#allocation6 + $0xf0] sm:$0xff]
        %v718 = vld [vmem:[#allocation6 + $0xf8] sm:$0xff]
        %v719 = vld [vmem:[%s7] sm:$0x1]
        %v720 = vperm.slane %v719, 0
        %721 = vmatpush.msra.mxu0 %v702
        %722 = vmatpush.msra.mxu0 %v701
        %723 = vmatpush.msra.mxu0 %v700
        %724 = vmatpush.msra.mxu0 %v699
        %725 = vmatpush.msra.mxu0 %v698
        %726 = vmatpush.msra.mxu0 %v697
        %727 = vmatpush.msra.mxu0 %v696
        %728 = vmatpush.msra.mxu0 %v695
        %729 = vmatpush.msra.mxu0 %v694
        %730 = vmatpush.msra.mxu0 %v693
        %731 = vmatpush.msra.mxu0 %v692
        %732 = vmatpush.msra.mxu0 %v691
        %733 = vmatpush.msra.mxu0 %v690
        %734 = vmatpush.msra.mxu0 %v689
        %735 = vmatpush.msra.mxu0 %v688
        %736 = vmatpush.msra.mxu0 %v687
        %737 = vmatmul.f32.gmra.mxu0 %v685
        %v738 = vpop.f32.mrf.mxu0
        %v739 = vadd.f32 %v720, %v738
        %740 = vdwg.mxu0
        %741 = vmatpush.msra.mxu0 %v718
        %742 = vmatpush.msra.mxu0 %v717
        %743 = vmatpush.msra.mxu0 %v716
        %744 = vmatpush.msra.mxu0 %v715
        %745 = vmatpush.msra.mxu0 %v714
        %746 = vmatpush.msra.mxu0 %v713
        %747 = vmatpush.msra.mxu0 %v712
        %748 = vmatpush.msra.mxu0 %v711
        %749 = vmatpush.msra.mxu0 %v710
        %750 = vmatpush.msra.mxu0 %v709
        %751 = vmatpush.msra.mxu0 %v708
        %752 = vmatpush.msra.mxu0 %v707
        %753 = vmatpush.msra.mxu0 %v706
        %754 = vmatpush.msra.mxu0 %v705
        %755 = vmatpush.msra.mxu0 %v704
        %756 = vmatpush.msra.mxu0 %v703
        %757 = vmatmul.f32.gmra.mxu0 %v686
        %v758 = vpop.f32.mrf.mxu0
        %v759 = vadd.f32 %v739, %v758
        %760 = vdwg.mxu0
        %v761 = vadd.f32 %v759, %v478
        %v762 = vld [vmem:[%s3 + $0x1] sm:$0x1]
        %v763 = vmul.f32 %v761, %v761
        %764 = vadd.xlane.f32.xlu0 %v763
        %v765 = vpop.xlane.xlu0 %764
        %v766 = vmul.f32 %v765, %v489
        %v767 = vrsqrt.pop %v766
        %v768 = vmul.f32 %v767, %v766
        %v769 = vmul.f32 %v768, %v767
        %v770 = vmul.f32 0.5, %v769
        %v771 = vsub.f32 1.5, %v770
        %v772 = vmul.f32 %v767, %v771
        %v773 = vmul.f32 %v766, %v772
        %vm774 = vcmp.eq.f32.partialorder %v766, inf
        %v775 = vsel %vm774, %v766, %v773
        %vm776 = vcmp.eq.f32.partialorder %v766, 0.0
        %v777 = vand.u32 %v766, 2147483648
        %v778 = vsel %vm776, %v777, %v775
        %v779 = vadd.f32 %v778, 1e-08
        %v780 = vrcp.pop %v779
        %v781 = vmul.f32 %v779, %v780
        %v782 = vsub.f32 1.0, %v781
        %v783 = vmul.f32 %v780, %v782
        %v784 = vadd.f32 %v780, %v783
        %vm785 = vweird.f32 %v779
        %vm786 = vweird.f32 %v780
        %vm787 = vmor %vm785, %vm786
        %v788 = vsel %vm787, %v780, %v784
        %v789 = vand.u32 2147483647, %v779
        %vm790 = vcmp.eq.f32.partialorder %v789, 8.507059e+37
        %v791 = vand.u32 %v779, 2147483648
        %v792 = vor.u32 1.1754944e-38, %v791
        %v793 = vsel %vm790, %v792, %v788
        %v794 = vmul.f32 %v761, %v793
        %v795 = vperm.slane %v762, 0
        %v796 = vmul.f32 %v794, %v795
        %s797 = scalar_lea.vmem [#allocation3], 256
        %v798 = vld [vmem:[%s797] sm:$0xff]
        %v799 = vld [vmem:[%s797 + $0x8] sm:$0xff]
        %v800 = vld [vmem:[%s797 + $0x10] sm:$0xff]
        %v801 = vld [vmem:[%s797 + $0x18] sm:$0xff]
        %v802 = vld [vmem:[%s797 + $0x20] sm:$0xff]
        %v803 = vld [vmem:[%s797 + $0x28] sm:$0xff]
        %v804 = vld [vmem:[%s797 + $0x30] sm:$0xff]
        %v805 = vld [vmem:[%s797 + $0x38] sm:$0xff]
        %v806 = vld [vmem:[%s797 + $0x40] sm:$0xff]
        %v807 = vld [vmem:[%s797 + $0x48] sm:$0xff]
        %v808 = vld [vmem:[%s797 + $0x50] sm:$0xff]
        %v809 = vld [vmem:[%s797 + $0x58] sm:$0xff]
        %v810 = vld [vmem:[%s797 + $0x60] sm:$0xff]
        %v811 = vld [vmem:[%s797 + $0x68] sm:$0xff]
        %v812 = vld [vmem:[%s797 + $0x70] sm:$0xff]
        %v813 = vld [vmem:[%s797 + $0x78] sm:$0xff]
        %v814 = vld [vmem:[%s797 + $0x80] sm:$0xff]
        %v815 = vld [vmem:[%s797 + $0x88] sm:$0xff]
        %v816 = vld [vmem:[%s797 + $0x90] sm:$0xff]
        %v817 = vld [vmem:[%s797 + $0x98] sm:$0xff]
        %v818 = vld [vmem:[%s797 + $0xa0] sm:$0xff]
        %v819 = vld [vmem:[%s797 + $0xa8] sm:$0xff]
        %v820 = vld [vmem:[%s797 + $0xb0] sm:$0xff]
        %v821 = vld [vmem:[%s797 + $0xb8] sm:$0xff]
        %v822 = vld [vmem:[%s797 + $0xc0] sm:$0xff]
        %v823 = vld [vmem:[%s797 + $0xc8] sm:$0xff]
        %v824 = vld [vmem:[%s797 + $0xd0] sm:$0xff]
        %v825 = vld [vmem:[%s797 + $0xd8] sm:$0xff]
        %v826 = vld [vmem:[%s797 + $0xe0] sm:$0xff]
        %v827 = vld [vmem:[%s797 + $0xe8] sm:$0xff]
        %v828 = vld [vmem:[%s797 + $0xf0] sm:$0xff]
        %v829 = vld [vmem:[%s797 + $0xf8] sm:$0xff]
        %s830 = scalar_lea.vmem %s5, 1
        %v831 = vld [vmem:[%s830] ss:$2 sm:$0x3]
        %v833 = vperm.slane %v831, 0
        %v834 = vperm.slane %v831, 1
        %837 = vmatpush.msra.mxu0 %v828
        %838 = vmatpush.msra.mxu0 %v826
        %839 = vmatpush.msra.mxu0 %v824
        %840 = vmatpush.msra.mxu0 %v822
        %841 = vmatpush.msra.mxu0 %v820
        %842 = vmatpush.msra.mxu0 %v818
        %843 = vmatpush.msra.mxu0 %v816
        %844 = vmatpush.msra.mxu0 %v814
        %845 = vmatpush.msra.mxu0 %v812
        %846 = vmatpush.msra.mxu0 %v810
        %847 = vmatpush.msra.mxu0 %v808
        %848 = vmatpush.msra.mxu0 %v806
        %849 = vmatpush.msra.mxu0 %v804
        %850 = vmatpush.msra.mxu0 %v802
        %851 = vmatpush.msra.mxu0 %v800
        %852 = vmatpush.msra.mxu0 %v798
        %853 = vmatmul.f32.gmra.mxu0 %v796
        %v854 = vpop.f32.mrf.mxu0
        %v855 = vadd.f32 %v833, %v854
        %856 = vdwg.mxu0
        %857 = vmatpush.msra.mxu0 %v829
        %858 = vmatpush.msra.mxu0 %v827
        %859 = vmatpush.msra.mxu0 %v825
        %860 = vmatpush.msra.mxu0 %v823
        %861 = vmatpush.msra.mxu0 %v821
        %862 = vmatpush.msra.mxu0 %v819
        %863 = vmatpush.msra.mxu0 %v817
        %864 = vmatpush.msra.mxu0 %v815
        %865 = vmatpush.msra.mxu0 %v813
        %866 = vmatpush.msra.mxu0 %v811
        %867 = vmatpush.msra.mxu0 %v809
        %868 = vmatpush.msra.mxu0 %v807
        %869 = vmatpush.msra.mxu0 %v805
        %870 = vmatpush.msra.mxu0 %v803
        %871 = vmatpush.msra.mxu0 %v801
        %872 = vmatpush.msra.mxu0 %v799
        %873 = vmatmul.f32.gmra.mxu0 %v796
        %v874 = vpop.f32.mrf.mxu0
        %v875 = vadd.f32 %v834, %v874
        %876 = vdwg.mxu0
        %v877 = vmul.f32 %v855, 0.5
        %v878 = vmul.f32 %v875, 0.5
        %v879 = vmul.f32 %v855, 0.70710677
        %v880 = vmul.f32 %v875, 0.70710677
        %v881 = vmul.f32 %v879, %v879
        %v882 = vmin.f32 16.0, %v881
        %v883 = vmul.f32 %v882, 2.1237322e-06
        %v884 = vadd.f32 %v883, 0.00028619796
        %v885 = vmul.f32 %v882, %v884
        %v886 = vadd.f32 %v885, 0.0036580483
        %v887 = vmul.f32 %v882, %v886
        %v888 = vadd.f32 %v887, 0.05243302
        %v889 = vmul.f32 %v882, %v888
        %v890 = vadd.f32 %v889, 0.18741608
        %v891 = vmul.f32 %v882, %v890
        %v892 = vadd.f32 %v891, 1.1283791
        %v893 = vmul.f32 %v879, %v892
        %v894 = vmul.f32 %v882, 3.8918573e-05
        %v895 = vadd.f32 %v894, 0.001143296
        %v896 = vmul.f32 %v882, %v895
        %v897 = vadd.f32 %v896, 0.014752088
        %v898 = vmul.f32 %v882, %v897
        %v899 = vadd.f32 %v898, 0.112945676
        %v900 = vmul.f32 %v882, %v899
        %v901 = vadd.f32 %v900, 0.4994258
        %v902 = vmul.f32 %v882, %v901
        %v903 = vadd.f32 %v902, 1.0
        %v904 = vrcp.pop %v903
        %v905 = vmul.f32 %v903, %v904
        %v906 = vsub.f32 1.0, %v905
        %v907 = vmul.f32 %v904, %v906
        %v908 = vadd.f32 %v904, %v907
        %vm909 = vweird.f32 %v903
        %vm910 = vweird.f32 %v904
        %vm911 = vmor %vm909, %vm910
        %v912 = vsel %vm911, %v904, %v908
        %v913 = vand.u32 2147483647, %v903
        %vm914 = vcmp.eq.f32.partialorder %v913, 8.507059e+37
        %v915 = vand.u32 %v903, 2147483648
        %v916 = vor.u32 1.1754944e-38, %v915
        %v917 = vsel %vm914, %v916, %v912
        %v918 = vmul.f32 %v893, %v917
        %v919 = vmin.f32 %v918, 1.0
        %v920 = vmax.f32 %v919, -1.0
        %v921 = vmul.f32 %v880, %v880
        %v922 = vmin.f32 16.0, %v921
        %v923 = vmul.f32 %v922, 2.1237322e-06
        %v924 = vadd.f32 %v923, 0.00028619796
        %v925 = vmul.f32 %v922, %v924
        %v926 = vadd.f32 %v925, 0.0036580483
        %v927 = vmul.f32 %v922, %v926
        %v928 = vadd.f32 %v927, 0.05243302
        %v929 = vmul.f32 %v922, %v928
        %v930 = vadd.f32 %v929, 0.18741608
        %v931 = vmul.f32 %v922, %v930
        %v932 = vadd.f32 %v931, 1.1283791
        %v933 = vmul.f32 %v880, %v932
        %v934 = vmul.f32 %v922, 3.8918573e-05
        %v935 = vadd.f32 %v934, 0.001143296
        %v936 = vmul.f32 %v922, %v935
        %v937 = vadd.f32 %v936, 0.014752088
        %v938 = vmul.f32 %v922, %v937
        %v939 = vadd.f32 %v938, 0.112945676
        %v940 = vmul.f32 %v922, %v939
        %v941 = vadd.f32 %v940, 0.4994258
        %v942 = vmul.f32 %v922, %v941
        %v943 = vadd.f32 %v942, 1.0
        %v944 = vrcp.pop %v943
        %v945 = vmul.f32 %v943, %v944
        %v946 = vsub.f32 1.0, %v945
        %v947 = vmul.f32 %v944, %v946
        %v948 = vadd.f32 %v944, %v947
        %vm949 = vweird.f32 %v943
        %vm950 = vweird.f32 %v944
        %vm951 = vmor %vm949, %vm950
        %v952 = vsel %vm951, %v944, %v948
        %v953 = vand.u32 2147483647, %v943
        %vm954 = vcmp.eq.f32.partialorder %v953, 8.507059e+37
        %v955 = vand.u32 %v943, 2147483648
        %v956 = vor.u32 1.1754944e-38, %v955
        %v957 = vsel %vm954, %v956, %v952
        %v958 = vmul.f32 %v933, %v957
        %v959 = vmin.f32 %v958, 1.0
        %v960 = vmax.f32 %v959, -1.0
        %v961 = vadd.f32 %v920, 1.0
        %v962 = vadd.f32 %v960, 1.0
        %v963 = vmul.f32 %v877, %v961
        %v964 = vmul.f32 %v878, %v962
        %s965 = scalar_lea.vmem [#allocation6], 256
        %v966 = vld [vmem:[%s965] sm:$0xff]
        %v967 = vld [vmem:[%s965 + $0x8] sm:$0xff]
        %v968 = vld [vmem:[%s965 + $0x10] sm:$0xff]
        %v969 = vld [vmem:[%s965 + $0x18] sm:$0xff]
        %v970 = vld [vmem:[%s965 + $0x20] sm:$0xff]
        %v971 = vld [vmem:[%s965 + $0x28] sm:$0xff]
        %v972 = vld [vmem:[%s965 + $0x30] sm:$0xff]
        %v973 = vld [vmem:[%s965 + $0x38] sm:$0xff]
        %v974 = vld [vmem:[%s965 + $0x40] sm:$0xff]
        %v975 = vld [vmem:[%s965 + $0x48] sm:$0xff]
        %v976 = vld [vmem:[%s965 + $0x50] sm:$0xff]
        %v977 = vld [vmem:[%s965 + $0x58] sm:$0xff]
        %v978 = vld [vmem:[%s965 + $0x60] sm:$0xff]
        %v979 = vld [vmem:[%s965 + $0x68] sm:$0xff]
        %v980 = vld [vmem:[%s965 + $0x70] sm:$0xff]
        %v981 = vld [vmem:[%s965 + $0x78] sm:$0xff]
        %v982 = vld [vmem:[%s965 + $0x80] sm:$0xff]
        %v983 = vld [vmem:[%s965 + $0x88] sm:$0xff]
        %v984 = vld [vmem:[%s965 + $0x90] sm:$0xff]
        %v985 = vld [vmem:[%s965 + $0x98] sm:$0xff]
        %v986 = vld [vmem:[%s965 + $0xa0] sm:$0xff]
        %v987 = vld [vmem:[%s965 + $0xa8] sm:$0xff]
        %v988 = vld [vmem:[%s965 + $0xb0] sm:$0xff]
        %v989 = vld [vmem:[%s965 + $0xb8] sm:$0xff]
        %v990 = vld [vmem:[%s965 + $0xc0] sm:$0xff]
        %v991 = vld [vmem:[%s965 + $0xc8] sm:$0xff]
        %v992 = vld [vmem:[%s965 + $0xd0] sm:$0xff]
        %v993 = vld [vmem:[%s965 + $0xd8] sm:$0xff]
        %v994 = vld [vmem:[%s965 + $0xe0] sm:$0xff]
        %v995 = vld [vmem:[%s965 + $0xe8] sm:$0xff]
        %v996 = vld [vmem:[%s965 + $0xf0] sm:$0xff]
        %v997 = vld [vmem:[%s965 + $0xf8] sm:$0xff]
        %v998 = vld [vmem:[%s7 + $0x1] sm:$0x1]
        %v999 = vperm.slane %v998, 0
        %1000 = vmatpush.msra.mxu0 %v981
        %1001 = vmatpush.msra.mxu0 %v980
        %1002 = vmatpush.msra.mxu0 %v979
        %1003 = vmatpush.msra.mxu0 %v978
        %1004 = vmatpush.msra.mxu0 %v977
        %1005 = vmatpush.msra.mxu0 %v976
        %1006 = vmatpush.msra.mxu0 %v975
        %1007 = vmatpush.msra.mxu0 %v974
        %1008 = vmatpush.msra.mxu0 %v973
        %1009 = vmatpush.msra.mxu0 %v972
        %1010 = vmatpush.msra.mxu0 %v971
        %1011 = vmatpush.msra.mxu0 %v970
        %1012 = vmatpush.msra.mxu0 %v969
        %1013 = vmatpush.msra.mxu0 %v968
        %1014 = vmatpush.msra.mxu0 %v967
        %1015 = vmatpush.msra.mxu0 %v966
        %1016 = vmatmul.f32.gmra.mxu0 %v963
        %v1017 = vpop.f32.mrf.mxu0
        %v1018 = vadd.f32 %v999, %v1017
        %1019 = vdwg.mxu0
        %1020 = vmatpush.msra.mxu0 %v997
        %1021 = vmatpush.msra.mxu0 %v996
        %1022 = vmatpush.msra.mxu0 %v995
        %1023 = vmatpush.msra.mxu0 %v994
        %1024 = vmatpush.msra.mxu0 %v993
        %1025 = vmatpush.msra.mxu0 %v992
        %1026 = vmatpush.msra.mxu0 %v991
        %1027 = vmatpush.msra.mxu0 %v990
        %1028 = vmatpush.msra.mxu0 %v989
        %1029 = vmatpush.msra.mxu0 %v988
        %1030 = vmatpush.msra.mxu0 %v987
        %1031 = vmatpush.msra.mxu0 %v986
        %1032 = vmatpush.msra.mxu0 %v985
        %1033 = vmatpush.msra.mxu0 %v984
        %1034 = vmatpush.msra.mxu0 %v983
        %1035 = vmatpush.msra.mxu0 %v982
        %1036 = vmatmul.f32.gmra.mxu0 %v964
        %v1037 = vpop.f32.mrf.mxu0
        %v1038 = vadd.f32 %v1018, %v1037
        %1039 = vdwg.mxu0
        %v1040 = vadd.f32 %v1038, %v761
        %v1041 = vld [vmem:[%s8] sm:$0x1]
        %v1042 = vmul.f32 %v1040, %v1040
        %1043 = vadd.xlane.f32.xlu0 %v1042
        %v1044 = vpop.xlane.xlu0 %1043
        %v1045 = vmul.f32 %v1044, %v489
        %v1046 = vrsqrt.pop %v1045
        %v1047 = vmul.f32 %v1046, %v1045
        %v1048 = vmul.f32 %v1047, %v1046
        %v1049 = vmul.f32 0.5, %v1048
        %v1050 = vsub.f32 1.5, %v1049
        %v1051 = vmul.f32 %v1046, %v1050
        %v1052 = vmul.f32 %v1045, %v1051
        %vm1053 = vcmp.eq.f32.partialorder %v1045, inf
        %v1054 = vsel %vm1053, %v1045, %v1052
        %vm1055 = vcmp.eq.f32.partialorder %v1045, 0.0
        %v1056 = vand.u32 %v1045, 2147483648
        %v1057 = vsel %vm1055, %v1056, %v1054
        %v1058 = vadd.f32 %v1057, 1e-08
        %v1059 = vrcp.pop %v1058
        %v1060 = vmul.f32 %v1058, %v1059
        %v1061 = vsub.f32 1.0, %v1060
        %v1062 = vmul.f32 %v1059, %v1061
        %v1063 = vadd.f32 %v1059, %v1062
        %vm1064 = vweird.f32 %v1058
        %vm1065 = vweird.f32 %v1059
        %vm1066 = vmor %vm1064, %vm1065
        %v1067 = vsel %vm1066, %v1059, %v1063
        %v1068 = vand.u32 2147483647, %v1058
        %vm1069 = vcmp.eq.f32.partialorder %v1068, 8.507059e+37
        %v1070 = vand.u32 %v1058, 2147483648
        %v1071 = vor.u32 1.1754944e-38, %v1070
        %v1072 = vsel %vm1069, %v1071, %v1067
        %v1073 = vmul.f32 %v1040, %v1072
        %v1075 = vperm.slane %v1041, 0
        %v1077 = vmul.f32 %v1073, %v1075
        %v1078 = vld [vmem:[#allocation2] sm:$0x1]
        %v1079 = vrot.slane %v1077, 4
        %v1080 = vadd.f32 %v1077, %v1079
        %v1081 = vrot.slane %v1080, 2
        %v1082 = vadd.f32 %v1080, %v1081
        %v1083 = vrot.slane %v1082, 1
        %v1084 = vadd.f32 %v1082, %v1083
        %v1085 = vadd.f32 %v1078, %v1084
        %1086 = vst [vmem:[#allocation2] sm:$0x1] %v1085
        // Predicated region
        $region77: #{tpu_custom_call.1} parent=63 // pred_check
          %p1087 = pneg %p438
        $region78: #{tpu_custom_call.1} parent=63 // pred_check_branch
          %1089 = sbr.rel (%p1087) target = $region80
        $region79: #{tpu_custom_call.1} parent=63 // pred_region
          %v1090 = vld [vmem:[#allocation2] sm:$0x1]
          %v1091 = vmul.f32 %v1090, 0.125
          %v1092 = vld [vmem:[%s9] sm:$0xff]
          %v1093 = vld [vmem:[%s9 + $0x8] sm:$0xff]
          %v1094 = vld [vmem:[%s9 + $0x10] sm:$0xff]
          %v1095 = vld [vmem:[%s9 + $0x18] sm:$0xff]
          %v1096 = vld [vmem:[%s9 + $0x20] sm:$0xff]
          %v1097 = vld [vmem:[%s9 + $0x28] sm:$0xff]
          %v1098 = vld [vmem:[%s9 + $0x30] sm:$0xff]
          %v1099 = vld [vmem:[%s9 + $0x38] sm:$0xff]
          %v1100 = vld [vmem:[%s9 + $0x40] sm:$0xff]
          %v1101 = vld [vmem:[%s9 + $0x48] sm:$0xff]
          %v1102 = vld [vmem:[%s9 + $0x50] sm:$0xff]
          %v1103 = vld [vmem:[%s9 + $0x58] sm:$0xff]
          %v1104 = vld [vmem:[%s9 + $0x60] sm:$0xff]
          %v1105 = vld [vmem:[%s9 + $0x68] sm:$0xff]
          %v1106 = vld [vmem:[%s9 + $0x70] sm:$0xff]
          %v1107 = vld [vmem:[%s9 + $0x78] sm:$0xff]
          %v1108 = vld [vmem:[%s10] sm:$0x1]
          %1109 = vmatpush.msra.mxu0 %v1107
          %1110 = vmatpush.msra.mxu0 %v1106
          %1111 = vmatpush.msra.mxu0 %v1105
          %1112 = vmatpush.msra.mxu0 %v1104
          %1113 = vmatpush.msra.mxu0 %v1103
          %1114 = vmatpush.msra.mxu0 %v1102
          %1115 = vmatpush.msra.mxu0 %v1101
          %1116 = vmatpush.msra.mxu0 %v1100
          %1117 = vmatpush.msra.mxu0 %v1099
          %1118 = vmatpush.msra.mxu0 %v1098
          %1119 = vmatpush.msra.mxu0 %v1097
          %1120 = vmatpush.msra.mxu0 %v1096
          %1121 = vmatpush.msra.mxu0 %v1095
          %1122 = vmatpush.msra.mxu0 %v1094
          %1123 = vmatpush.msra.mxu0 %v1093
          %1124 = vmatpush.msra.mxu0 %v1092
          %1125 = vmatmul.f32.gmra.mxu0 %v1091
          %v1126 = vpop.f32.mrf.mxu0
          %v1127 = vadd.f32 %v1108, %v1126
          %1128 = vdwg.mxu0
          %vm1129 = vcmask 32768
          %1130 = vst.msk [vmem:[%s430] sm:$0x1] %vm1129, %v1127
        $region80: #{tpu_custom_call.1} parent=63 // pred_fallthru
          _
        %s1131 = sand.u32 %s285, 1
        %s1132 = scalar_lea.sflag [#allocation5], %s1131
        %s1133 = sand.u32 %s285, 1
        %s1134 = scalar_lea.vmem [#allocation8], %s1133
        // Predicated region
        $region81: #{tpu_custom_call.1} parent=63 // pred_check
          %p1135 = pneg %p295
        $region82: #{tpu_custom_call.1} parent=63 // pred_check_branch
          %1137 = sbr.rel (%p1135) target = $region84
        $region83: #{tpu_custom_call.1} parent=63 // pred_region
          %1139 = vsyncadd %s1132, 0
          %s1140 = scalar_lea.hbm %s11, %s31
          %s1142 = sshll.u32 %s1134, 4
          %s1143 = int_to_ptr.vmem [resolvable:$true] %s1142
          %s1144 = sshll.u32 %s1140, 4
          %s1145 = int_to_ptr.hbm [resolvable:$true] %s1144
          %1147 = dma.vmem_to_hbm [thread:$0]  %s1143, 16, %s1145, %s1132
        $region84: #{tpu_custom_call.1} parent=63 // pred_fallthru
          _
      $region64: #{tpu_custom_call.1} parent=5 // pred_fallthru
        _
      %p1148 = scmp.le.s32.totalorder 2, %s22
      // Predicated region
      $region85: #{tpu_custom_call.1} parent=5 // pred_check
        %p1149 = pneg %p1148
      $region86: #{tpu_custom_call.1} parent=5 // pred_check_branch
        %1151 = sbr.rel (%p1149) target = $region88
      $region87: #{tpu_custom_call.1} parent=5 // pred_region
        %s1152 = ssub.s32 %s22, 2
        // Predicated region
        $region89: #{tpu_custom_call.1} parent=87 // pred_check
          %p1153 = pneg %p301
        $region90: #{tpu_custom_call.1} parent=87 // pred_check_branch
          %1155 = sbr.rel (%p1153) target = $region92
        $region91: #{tpu_custom_call.1} parent=87 // pred_region
          %s1156 = sand.u32 %s286, 1
          %s1157 = scalar_lea.sflag [#allocation5], %s1156
          %s1158 = sand.u32 %s286, 1
          %s1159 = scalar_lea.vmem [#allocation8], %s1158
          %1161 = dma.done %s1157, 16
        $region92: #{tpu_custom_call.1} parent=87 // pred_fallthru
          _
      $region88: #{tpu_custom_call.1} parent=5 // pred_fallthru
        _
    $region6: #{tpu_custom_call.1} parent=1 // loop_footer
      %s26 = sadd.s32 1, %s22
    $region7: #{tpu_custom_call.1} parent=1 // loop_footer_branch
      %21 = sbr.rel target = $region3
    $region8: #{tpu_custom_call.1} parent=1 // loop_exit
      _
    %1162 = vsyncpa [#allocation4], 1
    %s1163 = scalar_lea.sflag [#allocation4], 1
    %1164 = vsyncpa %s1163, 1
    %1165 = vsyncpa [#allocation7], 1
    %1166 = vsyncpa [#allocation5], 1
    %s1167 = scalar_lea.sflag [#allocation5], 1
    %1168 = vsyncpa %s1167, 1

// kernel: tpu_custom_call.1
$region0: #{tpu_custom_call.1}
  #allocation0 [shape = 'u32[]', space=smem, size = 0x4, offset = 0x4, fixed_abs, tag = 'smem constant byte address 0x4 - core index']
  #allocation1 [shape = 'u32[72,128]{1,0:T(1,128)}', space=vmem, size = 0x9000, scoped, tag = 'internal scratch']
  #allocation2 [shape = 'f32[1,128]{1,0:T(1,128)}', space=vmem, size = 0x200, scoped, tag = 'scratch operand']
  %s0 = inlined_call_operand.vmem [shape: f32[2,8,4], index: 0, kind: input, shape index: {}]
  %s1 = inlined_call_operand.vmem [shape: f32[4,128], index: 1, kind: input, shape index: {}]
  %s2 = inlined_call_operand.vmem [shape: f32[1,128], index: 2, kind: input, shape index: {}]
  %s3 = inlined_call_operand.vmem [shape: f32[2,128], index: 3, kind: input, shape index: {}]
  %s4 = inlined_call_operand.hbm [shape: f32[2,128,256], index: 4, kind: input, shape index: {}]
  %s5 = inlined_call_operand.vmem [shape: f32[2,256], index: 5, kind: input, shape index: {}]
  %s6 = inlined_call_operand.hbm [shape: f32[2,256,128], index: 6, kind: input, shape index: {}]
  %s7 = inlined_call_operand.vmem [shape: f32[2,128], index: 7, kind: input, shape index: {}]
  %s8 = inlined_call_operand.vmem [shape: f32[1,128], index: 8, kind: input, shape index: {}]
  %s9 = inlined_call_operand.vmem [shape: f32[128,5], index: 9, kind: input, shape index: {}]
  %s10 = inlined_call_operand.vmem [shape: f32[1,5], index: 10, kind: input, shape index: {}]
  %s11 = inlined_call_operand.hbm [shape: f32[2,1,5], index: 11, kind: output, shape index: {}]
  %s12 = sld [smem:[#allocation0]]
  $region93: #{tpu_custom_call.1} parent=0
    _
  %s14 = ssub.s32 1, %s12
  %s15 = scalar_select 0, %s14, %s12
  $region1: #{tpu_custom_call.1} parent=0
    #allocation3 [shape = 'u8[262144]{0}', space=vmem, size = 0x40000, scoped, tag = 'input window, operand 4, single buffered']
    #allocation4 [shape = 's32[2]{0}', space=sflag, size = 0x8, scoped, tag = 'scoped memory for tpu_custom_call.1']
    #allocation5 [shape = 's32[2]{0}', space=sflag, size = 0x8, scoped, tag = 'scoped memory for tpu_custom_call.1']
    #allocation6 [shape = 'u8[262144]{0}', space=vmem, size = 0x40000, scoped, tag = 'input window, operand 6, single buffered']
    #allocation7 [shape = 's32[1]{0}', space=sflag, size = 0x4, scoped, tag = 'scoped memory for tpu_custom_call.1']
    #allocation8 [shape = 'u8[1024]{0}', space=vmem, size = 0x400, scoped, tag = 'output window, operand 0']
    %16 = vsyncpa [#allocation4], 0
    %17 = vsyncpa [#allocation7], 0
    %18 = vsyncpa [#allocation5], 0
    %s19 = scalar_lea.sflag [#allocation5], 1
    %20 = vsyncpa %s19, 0
    loop: start=0, step=1, limit=4
    $region2: #{tpu_custom_call.1} parent=1 // loop_pre_header
      _
    $region3: #{tpu_custom_call.1} parent=1 // loop_header
      %s22 = sphi 0, %s26
      %p23 = scmp.ge.s32.totalorder %s22, 4
      %s29 = sphi 0, %s41
      %s30 = sphi 0, %s37
      %s31 = sphi 0, %s29
      %s32 = sphi 0, %s30
      %s33 = sphi 0, %s31
      %s34 = sphi 0, %s32
      %s46 = sphi 0, %s48
      %s49 = sphi 0, %s46
      %s50 = sphi 0, %s49
      %s66 = sphi 0, %s50
      %s70 = sphi 0, %s70
      %s72 = sphi 0, %s70
      %s73 = sphi 0, %s72
      %s87 = sphi 0, %s73
      %s91 = sphi 0, %s91
      %s93 = sphi 0, %s91
      %s94 = sphi 0, %s93
      %s108 = sphi 0, %s94
      %s112 = sphi 0, %s112
      %s114 = sphi 0, %s112
      %s115 = sphi 0, %s114
      %s129 = sphi 0, %s115
      %s133 = sphi 0, %s133
      %s135 = sphi 0, %s133
      %s136 = sphi 0, %s135
      %s150 = sphi 0, %s136
      %s154 = sphi 0, %s154
      %s156 = sphi 0, %s154
      %s157 = sphi 0, %s156
      %s171 = sphi 0, %s157
      %s175 = sphi 0, %s175
      %s177 = sphi 0, %s175
      %s178 = sphi 0, %s177
      %s192 = sphi 0, %s178
      %s196 = sphi 0, %s196
      %s198 = sphi 0, %s196
      %s199 = sphi 0, %s198
      %s213 = sphi 0, %s199
      %s217 = sphi 0, %s217
      %s219 = sphi 0, %s217
      %s220 = sphi 0, %s219
      %s234 = sphi 0, %s220
      %s238 = sphi 0, %s238
      %s240 = sphi 0, %s238
      %s241 = sphi 0, %s240
      %s255 = sphi 0, %s241
      %s259 = sphi 0, %s259
      %s261 = sphi 0, %s259
      %s262 = sphi 0, %s261
      %s276 = sphi 0, %s262
      %s282 = sphi 0, %s284
      %s285 = sphi 0, %s282
      %s286 = sphi 0, %s285
      %s302 = sphi 0, %s286
    $region4: #{tpu_custom_call.1} parent=1 // loop_header_branch
      %25 = sbr.rel (%p23) target = $region8
    $region5: #{tpu_custom_call.1} parent=1 // loop_body
      %s27 = ssub.s32 %s22, 1
      %s28 = ssub.s32 %s22, 2
      %s35 = sadd.s32 1, %s30
      %p36 = scmp.ge.s32.totalorder %s35, 1
      %s37 = scalar_select %p36, 0, %s35
      %s38 = sadd.s32 1, %s29
      %s39 = scalar_select %p36, %s38, %s29
      %p40 = scmp.ge.s32.totalorder %s39, 2
      %s41 = scalar_select %p40, 0, %s39
      %s42 = ssub.s32 %s29, %s41
      %s43 = ssub.s32 %s30, %s37
      %s44 = sor.u32 %s42, %s43
      %p45 = scmp.eq.s32.totalorder %s44, 0
      %s47 = sadd.s32 %s46, 1
      %s48 = scalar_select %p45, %s46, %s47
      %p51 = pneg %p45
      %p52 = scmp.eq.s32.totalorder %s22, 1
      %p53 = por %p51, %p52
      %p54 = scmp.ne.s32.totalorder %s46, %s49
      %p55 = scmp.eq.s32.totalorder %s22, 0
      %p56 = por %p54, %p55
      %p57 = scmp.ne.s32.totalorder %s46, %s49
      %p58 = scmp.eq.s32.totalorder %s27, 1
      %p59 = por %p57, %p58
      %p60 = scmp.ne.s32.totalorder %s49, %s50
      %p61 = scmp.eq.s32.totalorder %s27, 0
      %p62 = por %p60, %p61
      %p63 = scmp.ne.s32.totalorder %s49, %s50
      %p64 = scmp.eq.s32.totalorder %s28, 1
      %p65 = por %p63, %p64
      %p67 = scmp.ne.s32.totalorder %s50, %s66
      %p68 = scmp.eq.s32.totalorder %s28, 0
      %p69 = por %p67, %p68
      %s71 = sadd.s32 %s70, 1
      %p74 = scmp.eq.s32.totalorder %s22, 1
      %p75 = scmp.ne.s32.totalorder %s70, %s72
      %p76 = scmp.eq.s32.totalorder %s22, 0
      %p77 = por %p75, %p76
      %p78 = scmp.ne.s32.totalorder %s70, %s72
      %p79 = scmp.eq.s32.totalorder %s27, 1
      %p80 = por %p78, %p79
      %p81 = scmp.ne.s32.totalorder %s72, %s73
      %p82 = scmp.eq.s32.totalorder %s27, 0
      %p83 = por %p81, %p82
      %p84 = scmp.ne.s32.totalorder %s72, %s73
      %p85 = scmp.eq.s32.totalorder %s28, 1
      %p86 = por %p84, %p85
      %p88 = scmp.ne.s32.totalorder %s73, %s87
      %p89 = scmp.eq.s32.totalorder %s28, 0
      %p90 = por %p88, %p89
      %s92 = sadd.s32 %s91, 1
      %p95 = scmp.eq.s32.totalorder %s22, 1
      %p96 = scmp.ne.s32.totalorder %s91, %s93
      %p97 = scmp.eq.s32.totalorder %s22, 0
      %p98 = por %p96, %p97
      %p99 = scmp.ne.s32.totalorder %s91, %s93
      %p100 = scmp.eq.s32.totalorder %s27, 1
      %p101 = por %p99, %p100
      %p102 = scmp.ne.s32.totalorder %s93, %s94
      %p103 = scmp.eq.s32.totalorder %s27, 0
      %p104 = por %p102, %p103
      %p105 = scmp.ne.s32.totalorder %s93, %s94
      %p106 = scmp.eq.s32.totalorder %s28, 1
      %p107 = por %p105, %p106
      %p109 = scmp.ne.s32.totalorder %s94, %s108
      %p110 = scmp.eq.s32.totalorder %s28, 0
      %p111 = por %p109, %p110
      %s113 = sadd.s32 %s112, 1
      %p116 = scmp.eq.s32.totalorder %s22, 1
      %p117 = scmp.ne.s32.totalorder %s112, %s114
      %p118 = scmp.eq.s32.totalorder %s22, 0
      %p119 = por %p117, %p118
      %p120 = scmp.ne.s32.totalorder %s112, %s114
      %p121 = scmp.eq.s32.totalorder %s27, 1
      %p122 = por %p120, %p121
      %p123 = scmp.ne.s32.totalorder %s114, %s115
      %p124 = scmp.eq.s32.totalorder %s27, 0
      %p125 = por %p123, %p124
      %p126 = scmp.ne.s32.totalorder %s114, %s115
      %p127 = scmp.eq.s32.totalorder %s28, 1
      %p128 = por %p126, %p127
      %p130 = scmp.ne.s32.totalorder %s115, %s129
      %p131 = scmp.eq.s32.totalorder %s28, 0
      %p132 = por %p130, %p131
      %s134 = sadd.s32 %s133, 1
      %p137 = scmp.eq.s32.totalorder %s22, 1
      %p138 = scmp.ne.s32.totalorder %s133, %s135
      %p139 = scmp.eq.s32.totalorder %s22, 0
      %p140 = por %p138, %p139
      %p141 = scmp.ne.s32.totalorder %s133, %s135
      %p142 = scmp.eq.s32.totalorder %s27, 1
      %p143 = por %p141, %p142
      %p144 = scmp.ne.s32.totalorder %s135, %s136
      %p145 = scmp.eq.s32.totalorder %s27, 0
      %p146 = por %p144, %p145
      %p147 = scmp.ne.s32.totalorder %s135, %s136
      %p148 = scmp.eq.s32.totalorder %s28, 1
      %p149 = por %p147, %p148
      %p151 = scmp.ne.s32.totalorder %s136, %s150
      %p152 = scmp.eq.s32.totalorder %s28, 0
      %p153 = por %p151, %p152
      %s155 = sadd.s32 %s154, 1
      %p158 = scmp.eq.s32.totalorder %s22, 1
      %p159 = scmp.ne.s32.totalorder %s154, %s156
      %p160 = scmp.eq.s32.totalorder %s22, 0
      %p161 = por %p159, %p160
      %p162 = scmp.ne.s32.totalorder %s154, %s156
      %p163 = scmp.eq.s32.totalorder %s27, 1
      %p164 = por %p162, %p163
      %p165 = scmp.ne.s32.totalorder %s156, %s157
      %p166 = scmp.eq.s32.totalorder %s27, 0
      %p167 = por %p165, %p166
      %p168 = scmp.ne.s32.totalorder %s156, %s157
      %p169 = scmp.eq.s32.totalorder %s28, 1
      %p170 = por %p168, %p169
      %p172 = scmp.ne.s32.totalorder %s157, %s171
      %p173 = scmp.eq.s32.totalorder %s28, 0
      %p174 = por %p172, %p173
      %s176 = sadd.s32 %s175, 1
      %p179 = scmp.eq.s32.totalorder %s22, 1
      %p180 = scmp.ne.s32.totalorder %s175, %s177
      %p181 = scmp.eq.s32.totalorder %s22, 0
      %p182 = por %p180, %p181
      %p183 = scmp.ne.s32.totalorder %s175, %s177
      %p184 = scmp.eq.s32.totalorder %s27, 1
      %p185 = por %p183, %p184
      %p186 = scmp.ne.s32.totalorder %s177, %s178
      %p187 = scmp.eq.s32.totalorder %s27, 0
      %p188 = por %p186, %p187
      %p189 = scmp.ne.s32.totalorder %s177, %s178
      %p190 = scmp.eq.s32.totalorder %s28, 1
      %p191 = por %p189, %p190
      %p193 = scmp.ne.s32.totalorder %s178, %s192
      %p194 = scmp.eq.s32.totalorder %s28, 0
      %p195 = por %p193, %p194
      %s197 = sadd.s32 %s196, 1
      %p200 = scmp.eq.s32.totalorder %s22, 1
      %p201 = scmp.ne.s32.totalorder %s196, %s198
      %p202 = scmp.eq.s32.totalorder %s22, 0
      %p203 = por %p201, %p202
      %p204 = scmp.ne.s32.totalorder %s196, %s198
      %p205 = scmp.eq.s32.totalorder %s27, 1
      %p206 = por %p204, %p205
      %p207 = scmp.ne.s32.totalorder %s198, %s199
      %p208 = scmp.eq.s32.totalorder %s27, 0
      %p209 = por %p207, %p208
      %p210 = scmp.ne.s32.totalorder %s198, %s199
      %p211 = scmp.eq.s32.totalorder %s28, 1
      %p212 = por %p210, %p211
      %p214 = scmp.ne.s32.totalorder %s199, %s213
      %p215 = scmp.eq.s32.totalorder %s28, 0
      %p216 = por %p214, %p215
      %s218 = sadd.s32 %s217, 1
      %p221 = scmp.eq.s32.totalorder %s22, 1
      %p222 = scmp.ne.s32.totalorder %s217, %s219
      %p223 = scmp.eq.s32.totalorder %s22, 0
      %p224 = por %p222, %p223
      %p225 = scmp.ne.s32.totalorder %s217, %s219
      %p226 = scmp.eq.s32.totalorder %s27, 1
      %p227 = por %p225, %p226
      %p228 = scmp.ne.s32.totalorder %s219, %s220
      %p229 = scmp.eq.s32.totalorder %s27, 0
      %p230 = por %p228, %p229
      %p231 = scmp.ne.s32.totalorder %s219, %s220
      %p232 = scmp.eq.s32.totalorder %s28, 1
      %p233 = por %p231, %p232
      %p235 = scmp.ne.s32.totalorder %s220, %s234
      %p236 = scmp.eq.s32.totalorder %s28, 0
      %p237 = por %p235, %p236
      %s239 = sadd.s32 %s238, 1
      %p242 = scmp.eq.s32.totalorder %s22, 1
      %p243 = scmp.ne.s32.totalorder %s238, %s240
      %p244 = scmp.eq.s32.totalorder %s22, 0
      %p245 = por %p243, %p244
      %p246 = scmp.ne.s32.totalorder %s238, %s240
      %p247 = scmp.eq.s32.totalorder %s27, 1
      %p248 = por %p246, %p247
      %p249 = scmp.ne.s32.totalorder %s240, %s241
      %p250 = scmp.eq.s32.totalorder %s27, 0
      %p251 = por %p249, %p250
      %p252 = scmp.ne.s32.totalorder %s240, %s241
      %p253 = scmp.eq.s32.totalorder %s28, 1
      %p254 = por %p252, %p253
      %p256 = scmp.ne.s32.totalorder %s241, %s255
      %p257 = scmp.eq.s32.totalorder %s28, 0
      %p258 = por %p256, %p257
      %s260 = sadd.s32 %s259, 1
      %p263 = scmp.eq.s32.totalorder %s22, 1
      %p264 = scmp.ne.s32.totalorder %s259, %s261
      %p265 = scmp.eq.s32.totalorder %s22, 0
      %p266 = por %p264, %p265
      %p267 = scmp.ne.s32.totalorder %s259, %s261
      %p268 = scmp.eq.s32.totalorder %s27, 1
      %p269 = por %p267, %p268
      %p270 = scmp.ne.s32.totalorder %s261, %s262
      %p271 = scmp.eq.s32.totalorder %s27, 0
      %p272 = por %p270, %p271
      %p273 = scmp.ne.s32.totalorder %s261, %s262
      %p274 = scmp.eq.s32.totalorder %s28, 1
      %p275 = por %p273, %p274
      %p277 = scmp.ne.s32.totalorder %s262, %s276
      %p278 = scmp.eq.s32.totalorder %s28, 0
      %p279 = por %p277, %p278
      %s280 = ssub.s32 %s29, %s41
      %p281 = scmp.eq.s32.totalorder %s280, 0
      %s283 = sadd.s32 %s282, 1
      %s284 = scalar_select %p281, %s282, %s283
      %p287 = pneg %p281
      %p288 = scmp.eq.s32.totalorder %s22, 1
      %p289 = por %p287, %p288
      %p290 = scmp.ne.s32.totalorder %s282, %s285
      %p291 = scmp.eq.s32.totalorder %s22, 0
      %p292 = por %p290, %p291
      %p293 = scmp.ne.s32.totalorder %s282, %s285
      %p294 = scmp.eq.s32.totalorder %s27, 1
      %p295 = por %p293, %p294
      %p296 = scmp.ne.s32.totalorder %s285, %s286
      %p297 = scmp.eq.s32.totalorder %s27, 0
      %p298 = por %p296, %p297
      %p299 = scmp.ne.s32.totalorder %s285, %s286
      %p300 = scmp.eq.s32.totalorder %s28, 1
      %p301 = por %p299, %p300
      %p303 = scmp.ne.s32.totalorder %s286, %s302
      %p304 = scmp.eq.s32.totalorder %s28, 0
      %p305 = por %p303, %p304
      %p306 = scmp.le.s32.totalorder 1, %s22
      %p307 = scmp.lt.s32.totalorder %s22, 3
      %p308 = pnand %p306, %p307
      %p309 = pneg %p308
      // Predicated region
      $region9: #{tpu_custom_call.1} parent=5 // pred_check
        _
      $region10: #{tpu_custom_call.1} parent=5 // pred_check_branch
        %311 = sbr.rel (%p308) target = $region12
      $region11: #{tpu_custom_call.1} parent=5 // pred_region
        %s312 = ssub.s32 %s22, 1
        // Predicated region
        $region13: #{tpu_custom_call.1} parent=11 // pred_check
          %p313 = pneg %p83
        $region14: #{tpu_custom_call.1} parent=11 // pred_check_branch
          %315 = sbr.rel (%p313) target = $region16
        $region15: #{tpu_custom_call.1} parent=11 // pred_region
          _
        $region16: #{tpu_custom_call.1} parent=11 // pred_fallthru
          _
        // Predicated region
        $region17: #{tpu_custom_call.1} parent=11 // pred_check
          %p316 = pneg %p104
        $region18: #{tpu_custom_call.1} parent=11 // pred_check_branch
          %318 = sbr.rel (%p316) target = $region20
        $region19: #{tpu_custom_call.1} parent=11 // pred_region
          _
        $region20: #{tpu_custom_call.1} parent=11 // pred_fallthru
          _
        // Predicated region
        $region21: #{tpu_custom_call.1} parent=11 // pred_check
          %p319 = pneg %p125
        $region22: #{tpu_custom_call.1} parent=11 // pred_check_branch
          %321 = sbr.rel (%p319) target = $region24
        $region23: #{tpu_custom_call.1} parent=11 // pred_region
          _
        $region24: #{tpu_custom_call.1} parent=11 // pred_fallthru
          _
        // Predicated region
        $region25: #{tpu_custom_call.1} parent=11 // pred_check
          %p322 = pneg %p146
        $region26: #{tpu_custom_call.1} parent=11 // pred_check_branch
          %324 = sbr.rel (%p322) target = $region28
        $region27: #{tpu_custom_call.1} parent=11 // pred_region
          %326 = vsyncadd [#allocation4], 0
          %s327 = sshll.u32 %s4, 4
          %s328 = int_to_ptr.hbm [resolvable:$true] %s327
          %s329 = sshll.u32 [#allocation3], 4
          %s330 = int_to_ptr.vmem [resolvable:$true] %s329
          %335 = dma.hbm_to_vmem [thread:$0]  %s328, 8192, %s330, [#allocation4], 256, 256, 16
        $region28: #{tpu_custom_call.1} parent=11 // pred_fallthru
          _
        // Predicated region
        $region29: #{tpu_custom_call.1} parent=11 // pred_check
          %p336 = pneg %p167
        $region30: #{tpu_custom_call.1} parent=11 // pred_check_branch
          %338 = sbr.rel (%p336) target = $region32
        $region31: #{tpu_custom_call.1} parent=11 // pred_region
          _
        $region32: #{tpu_custom_call.1} parent=11 // pred_fallthru
          _
        // Predicated region
        $region33: #{tpu_custom_call.1} parent=11 // pred_check
          %p339 = pneg %p188
        $region34: #{tpu_custom_call.1} parent=11 // pred_check_branch
          %341 = sbr.rel (%p339) target = $region36
        $region35: #{tpu_custom_call.1} parent=11 // pred_region
          %343 = vsyncadd [#allocation7], 0
          %s344 = sshll.u32 %s6, 4
          %s345 = int_to_ptr.hbm [resolvable:$true] %s344
          %s346 = sshll.u32 [#allocation6], 4
          %s347 = int_to_ptr.vmem [resolvable:$true] %s346
          %352 = dma.hbm_to_vmem [thread:$0]  %s345, 8192, %s347, [#allocation7], 128, 128, 8
        $region36: #{tpu_custom_call.1} parent=11 // pred_fallthru
          _
        // Predicated region
        $region37: #{tpu_custom_call.1} parent=11 // pred_check
          %p353 = pneg %p209
        $region38: #{tpu_custom_call.1} parent=11 // pred_check_branch
          %355 = sbr.rel (%p353) target = $region40
        $region39: #{tpu_custom_call.1} parent=11 // pred_region
          _
        $region40: #{tpu_custom_call.1} parent=11 // pred_fallthru
          _
        // Predicated region
        $region41: #{tpu_custom_call.1} parent=11 // pred_check
          %p356 = pneg %p230
        $region42: #{tpu_custom_call.1} parent=11 // pred_check_branch
          %358 = sbr.rel (%p356) target = $region44
        $region43: #{tpu_custom_call.1} parent=11 // pred_region
          _
        $region44: #{tpu_custom_call.1} parent=11 // pred_fallthru
          _
        // Predicated region
        $region45: #{tpu_custom_call.1} parent=11 // pred_check
          %p359 = pneg %p251
        $region46: #{tpu_custom_call.1} parent=11 // pred_check_branch
          %361 = sbr.rel (%p359) target = $region48
        $region47: #{tpu_custom_call.1} parent=11 // pred_region
          _
        $region48: #{tpu_custom_call.1} parent=11 // pred_fallthru
          _
        // Predicated region
        $region49: #{tpu_custom_call.1} parent=11 // pred_check
          %p362 = pneg %p272
        $region50: #{tpu_custom_call.1} parent=11 // pred_check_branch
          %364 = sbr.rel (%p362) target = $region52
        $region51: #{tpu_custom_call.1} parent=11 // pred_region
          _
        $region52: #{tpu_custom_call.1} parent=11 // pred_fallthru
          _
      $region12: #{tpu_custom_call.1} parent=5 // pred_fallthru
        _
      %p365 = scmp.lt.s32.totalorder %s22, 2
      // Predicated region
      $region53: #{tpu_custom_call.1} parent=5 // pred_check
        %p366 = pneg %p365
      $region54: #{tpu_custom_call.1} parent=5 // pred_check_branch
        %368 = sbr.rel (%p366) target = $region56
      $region55: #{tpu_custom_call.1} parent=5 // pred_region
        // Predicated region
        $region57: #{tpu_custom_call.1} parent=55 // pred_check
          %p369 = pneg %p56
        $region58: #{tpu_custom_call.1} parent=55 // pred_check_branch
          %371 = sbr.rel (%p369) target = $region60
        $region59: #{tpu_custom_call.1} parent=55 // pred_region
          %p372 = scmp.lt.s32.totalorder %s29, 1
          %s373 = scalar_select %p372, %s29, 1
          %p374 = scmp.lt.s32.totalorder %s30, 0
          %s375 = scalar_select %p374, %s30, 0
          %s376 = sadd.s32 %s375, %s373
          %s377 = smul.addr %s376, 8
          %s378 = scalar_lea.vmem %s0, %s377
        $region60: #{tpu_custom_call.1} parent=55 // pred_fallthru
          _
      $region56: #{tpu_custom_call.1} parent=5 // pred_fallthru
        _
      %p379 = scmp.le.s32.totalorder 1, %s22
      %p380 = scmp.lt.s32.totalorder %s22, 3
      %p381 = pnand %p379, %p380
      %p382 = pneg %p381
      // Predicated region
      $region61: #{tpu_custom_call.1} parent=5 // pred_check
        _
      $region62: #{tpu_custom_call.1} parent=5 // pred_check_branch
        %384 = sbr.rel (%p381) target = $region64
      $region63: #{tpu_custom_call.1} parent=5 // pred_region
        %s385 = ssub.s32 %s22, 1
        // Predicated region
        $region65: #{tpu_custom_call.1} parent=63 // pred_check
          %p386 = pneg %p146
        $region66: #{tpu_custom_call.1} parent=63 // pred_check_branch
          %388 = sbr.rel (%p386) target = $region68
        $region67: #{tpu_custom_call.1} parent=63 // pred_region
          %390 = dma.done [#allocation4], 8192
        $region68: #{tpu_custom_call.1} parent=63 // pred_fallthru
          _
        // Predicated region
        $region69: #{tpu_custom_call.1} parent=63 // pred_check
          %p391 = pneg %p188
        $region70: #{tpu_custom_call.1} parent=63 // pred_check_branch
          %393 = sbr.rel (%p391) target = $region72
        $region71: #{tpu_custom_call.1} parent=63 // pred_region
          %395 = dma.done [#allocation7], 8192
        $region72: #{tpu_custom_call.1} parent=63 // pred_fallthru
          _
        %p396 = scmp.lt.s32.totalorder %s31, 1
        %s397 = scalar_select %p396, %s31, 1
        %p398 = scmp.lt.s32.totalorder %s32, 0
        %s399 = scalar_select %p398, %s32, 0
        %s400 = sadd.s32 %s399, %s397
        %s401 = smul.addr %s400, 8
        %s402 = scalar_lea.vmem %s0, %s401
        %p403 = pneg %p62
        %p404 = pneg %p59
        %p405 = pneg %p83
        %p406 = pneg %p80
        %p407 = pneg %p104
        %p408 = pneg %p101
        %p409 = pneg %p125
        %p410 = pneg %p122
        %p411 = pneg %p146
        %p412 = pneg %p143
        %p413 = pneg %p167
        %p414 = pneg %p164
        %p415 = pneg %p188
        %p416 = pneg %p185
        %p417 = pneg %p209
        %p418 = pneg %p206
        %p419 = pneg %p230
        %p420 = pneg %p227
        %p421 = pneg %p251
        %p422 = pneg %p248
        %p423 = pneg %p272
        %p424 = pneg %p269
        %p425 = pneg %p298
        %p426 = pneg %p295
        %s427 = sand.u32 %s285, 1
        %s428 = scalar_lea.sflag [#allocation5], %s427
        %s429 = sand.u32 %s285, 1
        %s430 = scalar_lea.vmem [#allocation8], %s429
        %p431 = scmp.lt.s32.totalorder %s31, 1
        %s432 = scalar_select %p431, %s31, 1
        %p433 = scmp.lt.s32.totalorder %s32, 0
        %s434 = scalar_select %p433, %s32, 0
        %s435 = sadd.s32 %s434, %s432
        %s436 = smul.addr %s435, 8
        %s437 = scalar_lea.vmem %s0, %s436
        %p438 = scmp.eq.s32.totalorder %s32, 0
        // Predicated region
        $region73: #{tpu_custom_call.1} parent=63 // pred_check
          %p439 = pneg %p438
        $region74: #{tpu_custom_call.1} parent=63 // pred_check_branch
          %441 = sbr.rel (%p439) target = $region76
        $region75: #{tpu_custom_call.1} parent=63 // pred_region
          %442 = vst [vmem:[#allocation2] sm:$0x1] 0.0
        $region76: #{tpu_custom_call.1} parent=63 // pred_fallthru
          _
        %v443 = vld [vmem:[%s437] sm:$0xff]
        %v444 = vld [vmem:[%s1] sm:$0xf]
        %v445 = vld [vmem:[%s2] sm:$0x1]
        %v447 = vperm.slane %v445, 0
        %vm449 = vcmask 31744
        %v451 = vsel %vm449, %v443, 0
        %vm453 = vcmask 1043456
        %v455 = vsel %vm453, %v444, 0
        %457 = vmatpush.msra.mxu0 0.0
        %458 = vmatpush.msra.mxu0 0.0
        %459 = vmatpush.msra.mxu0 0.0
        %460 = vmatpush.msra.mxu0 0.0
        %461 = vmatpush.msra.mxu0 0.0
        %462 = vmatpush.msra.mxu0 0.0
        %463 = vmatpush.msra.mxu0 0.0
        %464 = vmatpush.msra.mxu0 0.0
        %465 = vmatpush.msra.mxu0 0.0
        %466 = vmatpush.msra.mxu0 0.0
        %467 = vmatpush.msra.mxu0 0.0
        %468 = vmatpush.msra.mxu0 0.0
        %469 = vmatpush.msra.mxu0 0.0
        %470 = vmatpush.msra.mxu0 0.0
        %471 = vmatpush.msra.mxu0 0.0
        %472 = vmatpush.msra.mxu0 %v455
        %473 = vmatmul.f32.gmra.mxu0 %v451
        %v474 = vpop.f32.mrf.mxu0
        %v475 = vadd.f32 %v447, %v474
        %476 = vdwg.mxu0
        %v477 = vld [vmem:[%s3] sm:$0x1]
        %v478 = vmul.f32 %v475, %v475
        %479 = vadd.xlane.f32.xlu0 %v478
        %v480 = vpop.xlane.xlu0 %479
        %v481 = vrcp.pop 128.0
        %v482 = vmul.f32 128.0, %v481
        %v483 = vsub.f32 1.0, %v482
        %v484 = vmul.f32 %v481, %v483
        %v485 = vadd.f32 %v481, %v484
        %vm486 = vweird.f32 %v481
        %v487 = vsel %vm486, %v481, %v485
        %v488 = vmul.f32 %v480, %v487
        %v489 = vrsqrt.pop %v488
        %v490 = vmul.f32 %v489, %v488
        %v491 = vmul.f32 %v490, %v489
        %v492 = vmul.f32 0.5, %v491
        %v493 = vsub.f32 1.5, %v492
        %v494 = vmul.f32 %v489, %v493
        %v495 = vmul.f32 %v488, %v494
        %vm496 = vcmp.eq.f32.partialorder %v488, inf
        %v497 = vsel %vm496, %v488, %v495
        %vm498 = vcmp.eq.f32.partialorder %v488, 0.0
        %v499 = vand.u32 %v488, 2147483648
        %v500 = vsel %vm498, %v499, %v497
        %v501 = vadd.f32 %v500, 1e-08
        %v502 = vrcp.pop %v501
        %v503 = vmul.f32 %v501, %v502
        %v504 = vsub.f32 1.0, %v503
        %v505 = vmul.f32 %v502, %v504
        %v506 = vadd.f32 %v502, %v505
        %vm507 = vweird.f32 %v501
        %vm508 = vweird.f32 %v502
        %vm509 = vmor %vm507, %vm508
        %v510 = vsel %vm509, %v502, %v506
        %v511 = vand.u32 2147483647, %v501
        %vm512 = vcmp.eq.f32.partialorder %v511, 8.507059e+37
        %v513 = vand.u32 %v501, 2147483648
        %v514 = vor.u32 1.1754944e-38, %v513
        %v515 = vsel %vm512, %v514, %v510
        %v516 = vmul.f32 %v475, %v515
        %v517 = vperm.slane %v477, 0
        %v518 = vmul.f32 %v516, %v517
        %v519 = vld [vmem:[#allocation3] sm:$0xff]
        %v520 = vld [vmem:[#allocation3 + $0x8] sm:$0xff]
        %v521 = vld [vmem:[#allocation3 + $0x10] sm:$0xff]
        %v522 = vld [vmem:[#allocation3 + $0x18] sm:$0xff]
        %v523 = vld [vmem:[#allocation3 + $0x20] sm:$0xff]
        %v524 = vld [vmem:[#allocation3 + $0x28] sm:$0xff]
        %v525 = vld [vmem:[#allocation3 + $0x30] sm:$0xff]
        %v526 = vld [vmem:[#allocation3 + $0x38] sm:$0xff]
        %v527 = vld [vmem:[#allocation3 + $0x40] sm:$0xff]
        %v528 = vld [vmem:[#allocation3 + $0x48] sm:$0xff]
        %v529 = vld [vmem:[#allocation3 + $0x50] sm:$0xff]
        %v530 = vld [vmem:[#allocation3 + $0x58] sm:$0xff]
        %v531 = vld [vmem:[#allocation3 + $0x60] sm:$0xff]
        %v532 = vld [vmem:[#allocation3 + $0x68] sm:$0xff]
        %v533 = vld [vmem:[#allocation3 + $0x70] sm:$0xff]
        %v534 = vld [vmem:[#allocation3 + $0x78] sm:$0xff]
        %v535 = vld [vmem:[#allocation3 + $0x80] sm:$0xff]
        %v536 = vld [vmem:[#allocation3 + $0x88] sm:$0xff]
        %v537 = vld [vmem:[#allocation3 + $0x90] sm:$0xff]
        %v538 = vld [vmem:[#allocation3 + $0x98] sm:$0xff]
        %v539 = vld [vmem:[#allocation3 + $0xa0] sm:$0xff]
        %v540 = vld [vmem:[#allocation3 + $0xa8] sm:$0xff]
        %v541 = vld [vmem:[#allocation3 + $0xb0] sm:$0xff]
        %v542 = vld [vmem:[#allocation3 + $0xb8] sm:$0xff]
        %v543 = vld [vmem:[#allocation3 + $0xc0] sm:$0xff]
        %v544 = vld [vmem:[#allocation3 + $0xc8] sm:$0xff]
        %v545 = vld [vmem:[#allocation3 + $0xd0] sm:$0xff]
        %v546 = vld [vmem:[#allocation3 + $0xd8] sm:$0xff]
        %v547 = vld [vmem:[#allocation3 + $0xe0] sm:$0xff]
        %v548 = vld [vmem:[#allocation3 + $0xe8] sm:$0xff]
        %v549 = vld [vmem:[#allocation3 + $0xf0] sm:$0xff]
        %v550 = vld [vmem:[#allocation3 + $0xf8] sm:$0xff]
        %v551 = vld [vmem:[%s5] ss:$2 sm:$0x3]
        %v553 = vperm.slane %v551, 0
        %v554 = vperm.slane %v551, 1
        %557 = vmatpush.msra.mxu0 %v549
        %558 = vmatpush.msra.mxu0 %v547
        %559 = vmatpush.msra.mxu0 %v545
        %560 = vmatpush.msra.mxu0 %v543
        %561 = vmatpush.msra.mxu0 %v541
        %562 = vmatpush.msra.mxu0 %v539
        %563 = vmatpush.msra.mxu0 %v537
        %564 = vmatpush.msra.mxu0 %v535
        %565 = vmatpush.msra.mxu0 %v533
        %566 = vmatpush.msra.mxu0 %v531
        %567 = vmatpush.msra.mxu0 %v529
        %568 = vmatpush.msra.mxu0 %v527
        %569 = vmatpush.msra.mxu0 %v525
        %570 = vmatpush.msra.mxu0 %v523
        %571 = vmatpush.msra.mxu0 %v521
        %572 = vmatpush.msra.mxu0 %v519
        %573 = vmatmul.f32.gmra.mxu0 %v518
        %v574 = vpop.f32.mrf.mxu0
        %v575 = vadd.f32 %v553, %v574
        %576 = vdwg.mxu0
        %577 = vmatpush.msra.mxu0 %v550
        %578 = vmatpush.msra.mxu0 %v548
        %579 = vmatpush.msra.mxu0 %v546
        %580 = vmatpush.msra.mxu0 %v544
        %581 = vmatpush.msra.mxu0 %v542
        %582 = vmatpush.msra.mxu0 %v540
        %583 = vmatpush.msra.mxu0 %v538
        %584 = vmatpush.msra.mxu0 %v536
        %585 = vmatpush.msra.mxu0 %v534
        %586 = vmatpush.msra.mxu0 %v532
        %587 = vmatpush.msra.mxu0 %v530
        %588 = vmatpush.msra.mxu0 %v528
        %589 = vmatpush.msra.mxu0 %v526
        %590 = vmatpush.msra.mxu0 %v524
        %591 = vmatpush.msra.mxu0 %v522
        %592 = vmatpush.msra.mxu0 %v520
        %593 = vmatmul.f32.gmra.mxu0 %v518
        %v594 = vpop.f32.mrf.mxu0
        %v595 = vadd.f32 %v554, %v594
        %596 = vdwg.mxu0
        %v597 = vmul.f32 %v575, 0.5
        %v598 = vmul.f32 %v595, 0.5
        %v599 = vmul.f32 %v575, 0.70710677
        %v600 = vmul.f32 %v595, 0.70710677
        %v601 = vmul.f32 %v599, %v599
        %v602 = vmin.f32 16.0, %v601
        %v603 = vmul.f32 %v602, 2.1237322e-06
        %v604 = vadd.f32 %v603, 0.00028619796
        %v605 = vmul.f32 %v602, %v604
        %v606 = vadd.f32 %v605, 0.0036580483
        %v607 = vmul.f32 %v602, %v606
        %v608 = vadd.f32 %v607, 0.05243302
        %v609 = vmul.f32 %v602, %v608
        %v610 = vadd.f32 %v609, 0.18741608
        %v611 = vmul.f32 %v602, %v610
        %v612 = vadd.f32 %v611, 1.1283791
        %v613 = vmul.f32 %v599, %v612
        %v614 = vmul.f32 %v602, 3.8918573e-05
        %v615 = vadd.f32 %v614, 0.001143296
        %v616 = vmul.f32 %v602, %v615
        %v617 = vadd.f32 %v616, 0.014752088
        %v618 = vmul.f32 %v602, %v617
        %v619 = vadd.f32 %v618, 0.112945676
        %v620 = vmul.f32 %v602, %v619
        %v621 = vadd.f32 %v620, 0.4994258
        %v622 = vmul.f32 %v602, %v621
        %v623 = vadd.f32 %v622, 1.0
        %v624 = vrcp.pop %v623
        %v625 = vmul.f32 %v623, %v624
        %v626 = vsub.f32 1.0, %v625
        %v627 = vmul.f32 %v624, %v626
        %v628 = vadd.f32 %v624, %v627
        %vm629 = vweird.f32 %v623
        %vm630 = vweird.f32 %v624
        %vm631 = vmor %vm629, %vm630
        %v632 = vsel %vm631, %v624, %v628
        %v633 = vand.u32 2147483647, %v623
        %vm634 = vcmp.eq.f32.partialorder %v633, 8.507059e+37
        %v635 = vand.u32 %v623, 2147483648
        %v636 = vor.u32 1.1754944e-38, %v635
        %v637 = vsel %vm634, %v636, %v632
        %v638 = vmul.f32 %v613, %v637
        %v639 = vmin.f32 %v638, 1.0
        %v640 = vmax.f32 %v639, -1.0
        %v641 = vmul.f32 %v600, %v600
        %v642 = vmin.f32 16.0, %v641
        %v643 = vmul.f32 %v642, 2.1237322e-06
        %v644 = vadd.f32 %v643, 0.00028619796
        %v645 = vmul.f32 %v642, %v644
        %v646 = vadd.f32 %v645, 0.0036580483
        %v647 = vmul.f32 %v642, %v646
        %v648 = vadd.f32 %v647, 0.05243302
        %v649 = vmul.f32 %v642, %v648
        %v650 = vadd.f32 %v649, 0.18741608
        %v651 = vmul.f32 %v642, %v650
        %v652 = vadd.f32 %v651, 1.1283791
        %v653 = vmul.f32 %v600, %v652
        %v654 = vmul.f32 %v642, 3.8918573e-05
        %v655 = vadd.f32 %v654, 0.001143296
        %v656 = vmul.f32 %v642, %v655
        %v657 = vadd.f32 %v656, 0.014752088
        %v658 = vmul.f32 %v642, %v657
        %v659 = vadd.f32 %v658, 0.112945676
        %v660 = vmul.f32 %v642, %v659
        %v661 = vadd.f32 %v660, 0.4994258
        %v662 = vmul.f32 %v642, %v661
        %v663 = vadd.f32 %v662, 1.0
        %v664 = vrcp.pop %v663
        %v665 = vmul.f32 %v663, %v664
        %v666 = vsub.f32 1.0, %v665
        %v667 = vmul.f32 %v664, %v666
        %v668 = vadd.f32 %v664, %v667
        %vm669 = vweird.f32 %v663
        %vm670 = vweird.f32 %v664
        %vm671 = vmor %vm669, %vm670
        %v672 = vsel %vm671, %v664, %v668
        %v673 = vand.u32 2147483647, %v663
        %vm674 = vcmp.eq.f32.partialorder %v673, 8.507059e+37
        %v675 = vand.u32 %v663, 2147483648
        %v676 = vor.u32 1.1754944e-38, %v675
        %v677 = vsel %vm674, %v676, %v672
        %v678 = vmul.f32 %v653, %v677
        %v679 = vmin.f32 %v678, 1.0
        %v680 = vmax.f32 %v679, -1.0
        %v681 = vadd.f32 %v640, 1.0
        %v682 = vadd.f32 %v680, 1.0
        %v683 = vmul.f32 %v597, %v681
        %v684 = vmul.f32 %v598, %v682
        %v685 = vld [vmem:[#allocation6] sm:$0xff]
        %v686 = vld [vmem:[#allocation6 + $0x8] sm:$0xff]
        %v687 = vld [vmem:[#allocation6 + $0x10] sm:$0xff]
        %v688 = vld [vmem:[#allocation6 + $0x18] sm:$0xff]
        %v689 = vld [vmem:[#allocation6 + $0x20] sm:$0xff]
        %v690 = vld [vmem:[#allocation6 + $0x28] sm:$0xff]
        %v691 = vld [vmem:[#allocation6 + $0x30] sm:$0xff]
        %v692 = vld [vmem:[#allocation6 + $0x38] sm:$0xff]
        %v693 = vld [vmem:[#allocation6 + $0x40] sm:$0xff]
        %v694 = vld [vmem:[#allocation6 + $0x48] sm:$0xff]
        %v695 = vld [vmem:[#allocation6 + $0x50] sm:$0xff]
        %v696 = vld [vmem:[#allocation6 + $0x58] sm:$0xff]
        %v697 = vld [vmem:[#allocation6 + $0x60] sm:$0xff]
        %v698 = vld [vmem:[#allocation6 + $0x68] sm:$0xff]
        %v699 = vld [vmem:[#allocation6 + $0x70] sm:$0xff]
        %v700 = vld [vmem:[#allocation6 + $0x78] sm:$0xff]
        %v701 = vld [vmem:[#allocation6 + $0x80] sm:$0xff]
        %v702 = vld [vmem:[#allocation6 + $0x88] sm:$0xff]
        %v703 = vld [vmem:[#allocation6 + $0x90] sm:$0xff]
        %v704 = vld [vmem:[#allocation6 + $0x98] sm:$0xff]
        %v705 = vld [vmem:[#allocation6 + $0xa0] sm:$0xff]
        %v706 = vld [vmem:[#allocation6 + $0xa8] sm:$0xff]
        %v707 = vld [vmem:[#allocation6 + $0xb0] sm:$0xff]
        %v708 = vld [vmem:[#allocation6 + $0xb8] sm:$0xff]
        %v709 = vld [vmem:[#allocation6 + $0xc0] sm:$0xff]
        %v710 = vld [vmem:[#allocation6 + $0xc8] sm:$0xff]
        %v711 = vld [vmem:[#allocation6 + $0xd0] sm:$0xff]
        %v712 = vld [vmem:[#allocation6 + $0xd8] sm:$0xff]
        %v713 = vld [vmem:[#allocation6 + $0xe0] sm:$0xff]
        %v714 = vld [vmem:[#allocation6 + $0xe8] sm:$0xff]
        %v715 = vld [vmem:[#allocation6 + $0xf0] sm:$0xff]
        %v716 = vld [vmem:[#allocation6 + $0xf8] sm:$0xff]
        %v717 = vld [vmem:[%s7] sm:$0x1]
        %v718 = vperm.slane %v717, 0
        %719 = vmatpush.msra.mxu0 %v700
        %720 = vmatpush.msra.mxu0 %v699
        %721 = vmatpush.msra.mxu0 %v698
        %722 = vmatpush.msra.mxu0 %v697
        %723 = vmatpush.msra.mxu0 %v696
        %724 = vmatpush.msra.mxu0 %v695
        %725 = vmatpush.msra.mxu0 %v694
        %726 = vmatpush.msra.mxu0 %v693
        %727 = vmatpush.msra.mxu0 %v692
        %728 = vmatpush.msra.mxu0 %v691
        %729 = vmatpush.msra.mxu0 %v690
        %730 = vmatpush.msra.mxu0 %v689
        %731 = vmatpush.msra.mxu0 %v688
        %732 = vmatpush.msra.mxu0 %v687
        %733 = vmatpush.msra.mxu0 %v686
        %734 = vmatpush.msra.mxu0 %v685
        %735 = vmatmul.f32.gmra.mxu0 %v683
        %v736 = vpop.f32.mrf.mxu0
        %v737 = vadd.f32 %v718, %v736
        %738 = vdwg.mxu0
        %739 = vmatpush.msra.mxu0 %v716
        %740 = vmatpush.msra.mxu0 %v715
        %741 = vmatpush.msra.mxu0 %v714
        %742 = vmatpush.msra.mxu0 %v713
        %743 = vmatpush.msra.mxu0 %v712
        %744 = vmatpush.msra.mxu0 %v711
        %745 = vmatpush.msra.mxu0 %v710
        %746 = vmatpush.msra.mxu0 %v709
        %747 = vmatpush.msra.mxu0 %v708
        %748 = vmatpush.msra.mxu0 %v707
        %749 = vmatpush.msra.mxu0 %v706
        %750 = vmatpush.msra.mxu0 %v705
        %751 = vmatpush.msra.mxu0 %v704
        %752 = vmatpush.msra.mxu0 %v703
        %753 = vmatpush.msra.mxu0 %v702
        %754 = vmatpush.msra.mxu0 %v701
        %755 = vmatmul.f32.gmra.mxu0 %v684
        %v756 = vpop.f32.mrf.mxu0
        %v757 = vadd.f32 %v737, %v756
        %758 = vdwg.mxu0
        %v759 = vadd.f32 %v757, %v475
        %v760 = vld [vmem:[%s3 + $0x1] sm:$0x1]
        %v761 = vmul.f32 %v759, %v759
        %762 = vadd.xlane.f32.xlu0 %v761
        %v763 = vpop.xlane.xlu0 %762
        %v764 = vmul.f32 %v763, %v487
        %v765 = vrsqrt.pop %v764
        %v766 = vmul.f32 %v765, %v764
        %v767 = vmul.f32 %v766, %v765
        %v768 = vmul.f32 0.5, %v767
        %v769 = vsub.f32 1.5, %v768
        %v770 = vmul.f32 %v765, %v769
        %v771 = vmul.f32 %v764, %v770
        %vm772 = vcmp.eq.f32.partialorder %v764, inf
        %v773 = vsel %vm772, %v764, %v771
        %vm774 = vcmp.eq.f32.partialorder %v764, 0.0
        %v775 = vand.u32 %v764, 2147483648
        %v776 = vsel %vm774, %v775, %v773
        %v777 = vadd.f32 %v776, 1e-08
        %v778 = vrcp.pop %v777
        %v779 = vmul.f32 %v777, %v778
        %v780 = vsub.f32 1.0, %v779
        %v781 = vmul.f32 %v778, %v780
        %v782 = vadd.f32 %v778, %v781
        %vm783 = vweird.f32 %v777
        %vm784 = vweird.f32 %v778
        %vm785 = vmor %vm783, %vm784
        %v786 = vsel %vm785, %v778, %v782
        %v787 = vand.u32 2147483647, %v777
        %vm788 = vcmp.eq.f32.partialorder %v787, 8.507059e+37
        %v789 = vand.u32 %v777, 2147483648
        %v790 = vor.u32 1.1754944e-38, %v789
        %v791 = vsel %vm788, %v790, %v786
        %v792 = vmul.f32 %v759, %v791
        %v793 = vperm.slane %v760, 0
        %v794 = vmul.f32 %v792, %v793
        %s795 = scalar_lea.vmem [#allocation3], 256
        %v796 = vld [vmem:[%s795] sm:$0xff]
        %v797 = vld [vmem:[%s795 + $0x8] sm:$0xff]
        %v798 = vld [vmem:[%s795 + $0x10] sm:$0xff]
        %v799 = vld [vmem:[%s795 + $0x18] sm:$0xff]
        %v800 = vld [vmem:[%s795 + $0x20] sm:$0xff]
        %v801 = vld [vmem:[%s795 + $0x28] sm:$0xff]
        %v802 = vld [vmem:[%s795 + $0x30] sm:$0xff]
        %v803 = vld [vmem:[%s795 + $0x38] sm:$0xff]
        %v804 = vld [vmem:[%s795 + $0x40] sm:$0xff]
        %v805 = vld [vmem:[%s795 + $0x48] sm:$0xff]
        %v806 = vld [vmem:[%s795 + $0x50] sm:$0xff]
        %v807 = vld [vmem:[%s795 + $0x58] sm:$0xff]
        %v808 = vld [vmem:[%s795 + $0x60] sm:$0xff]
        %v809 = vld [vmem:[%s795 + $0x68] sm:$0xff]
        %v810 = vld [vmem:[%s795 + $0x70] sm:$0xff]
        %v811 = vld [vmem:[%s795 + $0x78] sm:$0xff]
        %v812 = vld [vmem:[%s795 + $0x80] sm:$0xff]
        %v813 = vld [vmem:[%s795 + $0x88] sm:$0xff]
        %v814 = vld [vmem:[%s795 + $0x90] sm:$0xff]
        %v815 = vld [vmem:[%s795 + $0x98] sm:$0xff]
        %v816 = vld [vmem:[%s795 + $0xa0] sm:$0xff]
        %v817 = vld [vmem:[%s795 + $0xa8] sm:$0xff]
        %v818 = vld [vmem:[%s795 + $0xb0] sm:$0xff]
        %v819 = vld [vmem:[%s795 + $0xb8] sm:$0xff]
        %v820 = vld [vmem:[%s795 + $0xc0] sm:$0xff]
        %v821 = vld [vmem:[%s795 + $0xc8] sm:$0xff]
        %v822 = vld [vmem:[%s795 + $0xd0] sm:$0xff]
        %v823 = vld [vmem:[%s795 + $0xd8] sm:$0xff]
        %v824 = vld [vmem:[%s795 + $0xe0] sm:$0xff]
        %v825 = vld [vmem:[%s795 + $0xe8] sm:$0xff]
        %v826 = vld [vmem:[%s795 + $0xf0] sm:$0xff]
        %v827 = vld [vmem:[%s795 + $0xf8] sm:$0xff]
        %s828 = scalar_lea.vmem %s5, 1
        %v829 = vld [vmem:[%s828] ss:$2 sm:$0x3]
        %v831 = vperm.slane %v829, 0
        %v832 = vperm.slane %v829, 1
        %835 = vmatpush.msra.mxu0 %v826
        %836 = vmatpush.msra.mxu0 %v824
        %837 = vmatpush.msra.mxu0 %v822
        %838 = vmatpush.msra.mxu0 %v820
        %839 = vmatpush.msra.mxu0 %v818
        %840 = vmatpush.msra.mxu0 %v816
        %841 = vmatpush.msra.mxu0 %v814
        %842 = vmatpush.msra.mxu0 %v812
        %843 = vmatpush.msra.mxu0 %v810
        %844 = vmatpush.msra.mxu0 %v808
        %845 = vmatpush.msra.mxu0 %v806
        %846 = vmatpush.msra.mxu0 %v804
        %847 = vmatpush.msra.mxu0 %v802
        %848 = vmatpush.msra.mxu0 %v800
        %849 = vmatpush.msra.mxu0 %v798
        %850 = vmatpush.msra.mxu0 %v796
        %851 = vmatmul.f32.gmra.mxu0 %v794
        %v852 = vpop.f32.mrf.mxu0
        %v853 = vadd.f32 %v831, %v852
        %854 = vdwg.mxu0
        %855 = vmatpush.msra.mxu0 %v827
        %856 = vmatpush.msra.mxu0 %v825
        %857 = vmatpush.msra.mxu0 %v823
        %858 = vmatpush.msra.mxu0 %v821
        %859 = vmatpush.msra.mxu0 %v819
        %860 = vmatpush.msra.mxu0 %v817
        %861 = vmatpush.msra.mxu0 %v815
        %862 = vmatpush.msra.mxu0 %v813
        %863 = vmatpush.msra.mxu0 %v811
        %864 = vmatpush.msra.mxu0 %v809
        %865 = vmatpush.msra.mxu0 %v807
        %866 = vmatpush.msra.mxu0 %v805
        %867 = vmatpush.msra.mxu0 %v803
        %868 = vmatpush.msra.mxu0 %v801
        %869 = vmatpush.msra.mxu0 %v799
        %870 = vmatpush.msra.mxu0 %v797
        %871 = vmatmul.f32.gmra.mxu0 %v794
        %v872 = vpop.f32.mrf.mxu0
        %v873 = vadd.f32 %v832, %v872
        %874 = vdwg.mxu0
        %v875 = vmul.f32 %v853, 0.5
        %v876 = vmul.f32 %v873, 0.5
        %v877 = vmul.f32 %v853, 0.70710677
        %v878 = vmul.f32 %v873, 0.70710677
        %v879 = vmul.f32 %v877, %v877
        %v880 = vmin.f32 16.0, %v879
        %v881 = vmul.f32 %v880, 2.1237322e-06
        %v882 = vadd.f32 %v881, 0.00028619796
        %v883 = vmul.f32 %v880, %v882
        %v884 = vadd.f32 %v883, 0.0036580483
        %v885 = vmul.f32 %v880, %v884
        %v886 = vadd.f32 %v885, 0.05243302
        %v887 = vmul.f32 %v880, %v886
        %v888 = vadd.f32 %v887, 0.18741608
        %v889 = vmul.f32 %v880, %v888
        %v890 = vadd.f32 %v889, 1.1283791
        %v891 = vmul.f32 %v877, %v890
        %v892 = vmul.f32 %v880, 3.8918573e-05
        %v893 = vadd.f32 %v892, 0.001143296
        %v894 = vmul.f32 %v880, %v893
        %v895 = vadd.f32 %v894, 0.014752088
        %v896 = vmul.f32 %v880, %v895
        %v897 = vadd.f32 %v896, 0.112945676
        %v898 = vmul.f32 %v880, %v897
        %v899 = vadd.f32 %v898, 0.4994258
        %v900 = vmul.f32 %v880, %v899
        %v901 = vadd.f32 %v900, 1.0
        %v902 = vrcp.pop %v901
        %v903 = vmul.f32 %v901, %v902
        %v904 = vsub.f32 1.0, %v903
        %v905 = vmul.f32 %v902, %v904
        %v906 = vadd.f32 %v902, %v905
        %vm907 = vweird.f32 %v901
        %vm908 = vweird.f32 %v902
        %vm909 = vmor %vm907, %vm908
        %v910 = vsel %vm909, %v902, %v906
        %v911 = vand.u32 2147483647, %v901
        %vm912 = vcmp.eq.f32.partialorder %v911, 8.507059e+37
        %v913 = vand.u32 %v901, 2147483648
        %v914 = vor.u32 1.1754944e-38, %v913
        %v915 = vsel %vm912, %v914, %v910
        %v916 = vmul.f32 %v891, %v915
        %v917 = vmin.f32 %v916, 1.0
        %v918 = vmax.f32 %v917, -1.0
        %v919 = vmul.f32 %v878, %v878
        %v920 = vmin.f32 16.0, %v919
        %v921 = vmul.f32 %v920, 2.1237322e-06
        %v922 = vadd.f32 %v921, 0.00028619796
        %v923 = vmul.f32 %v920, %v922
        %v924 = vadd.f32 %v923, 0.0036580483
        %v925 = vmul.f32 %v920, %v924
        %v926 = vadd.f32 %v925, 0.05243302
        %v927 = vmul.f32 %v920, %v926
        %v928 = vadd.f32 %v927, 0.18741608
        %v929 = vmul.f32 %v920, %v928
        %v930 = vadd.f32 %v929, 1.1283791
        %v931 = vmul.f32 %v878, %v930
        %v932 = vmul.f32 %v920, 3.8918573e-05
        %v933 = vadd.f32 %v932, 0.001143296
        %v934 = vmul.f32 %v920, %v933
        %v935 = vadd.f32 %v934, 0.014752088
        %v936 = vmul.f32 %v920, %v935
        %v937 = vadd.f32 %v936, 0.112945676
        %v938 = vmul.f32 %v920, %v937
        %v939 = vadd.f32 %v938, 0.4994258
        %v940 = vmul.f32 %v920, %v939
        %v941 = vadd.f32 %v940, 1.0
        %v942 = vrcp.pop %v941
        %v943 = vmul.f32 %v941, %v942
        %v944 = vsub.f32 1.0, %v943
        %v945 = vmul.f32 %v942, %v944
        %v946 = vadd.f32 %v942, %v945
        %vm947 = vweird.f32 %v941
        %vm948 = vweird.f32 %v942
        %vm949 = vmor %vm947, %vm948
        %v950 = vsel %vm949, %v942, %v946
        %v951 = vand.u32 2147483647, %v941
        %vm952 = vcmp.eq.f32.partialorder %v951, 8.507059e+37
        %v953 = vand.u32 %v941, 2147483648
        %v954 = vor.u32 1.1754944e-38, %v953
        %v955 = vsel %vm952, %v954, %v950
        %v956 = vmul.f32 %v931, %v955
        %v957 = vmin.f32 %v956, 1.0
        %v958 = vmax.f32 %v957, -1.0
        %v959 = vadd.f32 %v918, 1.0
        %v960 = vadd.f32 %v958, 1.0
        %v961 = vmul.f32 %v875, %v959
        %v962 = vmul.f32 %v876, %v960
        %s963 = scalar_lea.vmem [#allocation6], 256
        %v964 = vld [vmem:[%s963] sm:$0xff]
        %v965 = vld [vmem:[%s963 + $0x8] sm:$0xff]
        %v966 = vld [vmem:[%s963 + $0x10] sm:$0xff]
        %v967 = vld [vmem:[%s963 + $0x18] sm:$0xff]
        %v968 = vld [vmem:[%s963 + $0x20] sm:$0xff]
        %v969 = vld [vmem:[%s963 + $0x28] sm:$0xff]
        %v970 = vld [vmem:[%s963 + $0x30] sm:$0xff]
        %v971 = vld [vmem:[%s963 + $0x38] sm:$0xff]
        %v972 = vld [vmem:[%s963 + $0x40] sm:$0xff]
        %v973 = vld [vmem:[%s963 + $0x48] sm:$0xff]
        %v974 = vld [vmem:[%s963 + $0x50] sm:$0xff]
        %v975 = vld [vmem:[%s963 + $0x58] sm:$0xff]
        %v976 = vld [vmem:[%s963 + $0x60] sm:$0xff]
        %v977 = vld [vmem:[%s963 + $0x68] sm:$0xff]
        %v978 = vld [vmem:[%s963 + $0x70] sm:$0xff]
        %v979 = vld [vmem:[%s963 + $0x78] sm:$0xff]
        %v980 = vld [vmem:[%s963 + $0x80] sm:$0xff]
        %v981 = vld [vmem:[%s963 + $0x88] sm:$0xff]
        %v982 = vld [vmem:[%s963 + $0x90] sm:$0xff]
        %v983 = vld [vmem:[%s963 + $0x98] sm:$0xff]
        %v984 = vld [vmem:[%s963 + $0xa0] sm:$0xff]
        %v985 = vld [vmem:[%s963 + $0xa8] sm:$0xff]
        %v986 = vld [vmem:[%s963 + $0xb0] sm:$0xff]
        %v987 = vld [vmem:[%s963 + $0xb8] sm:$0xff]
        %v988 = vld [vmem:[%s963 + $0xc0] sm:$0xff]
        %v989 = vld [vmem:[%s963 + $0xc8] sm:$0xff]
        %v990 = vld [vmem:[%s963 + $0xd0] sm:$0xff]
        %v991 = vld [vmem:[%s963 + $0xd8] sm:$0xff]
        %v992 = vld [vmem:[%s963 + $0xe0] sm:$0xff]
        %v993 = vld [vmem:[%s963 + $0xe8] sm:$0xff]
        %v994 = vld [vmem:[%s963 + $0xf0] sm:$0xff]
        %v995 = vld [vmem:[%s963 + $0xf8] sm:$0xff]
        %v996 = vld [vmem:[%s7 + $0x1] sm:$0x1]
        %v997 = vperm.slane %v996, 0
        %998 = vmatpush.msra.mxu0 %v979
        %999 = vmatpush.msra.mxu0 %v978
        %1000 = vmatpush.msra.mxu0 %v977
        %1001 = vmatpush.msra.mxu0 %v976
        %1002 = vmatpush.msra.mxu0 %v975
        %1003 = vmatpush.msra.mxu0 %v974
        %1004 = vmatpush.msra.mxu0 %v973
        %1005 = vmatpush.msra.mxu0 %v972
        %1006 = vmatpush.msra.mxu0 %v971
        %1007 = vmatpush.msra.mxu0 %v970
        %1008 = vmatpush.msra.mxu0 %v969
        %1009 = vmatpush.msra.mxu0 %v968
        %1010 = vmatpush.msra.mxu0 %v967
        %1011 = vmatpush.msra.mxu0 %v966
        %1012 = vmatpush.msra.mxu0 %v965
        %1013 = vmatpush.msra.mxu0 %v964
        %1014 = vmatmul.f32.gmra.mxu0 %v961
        %v1015 = vpop.f32.mrf.mxu0
        %v1016 = vadd.f32 %v997, %v1015
        %1017 = vdwg.mxu0
        %1018 = vmatpush.msra.mxu0 %v995
        %1019 = vmatpush.msra.mxu0 %v994
        %1020 = vmatpush.msra.mxu0 %v993
        %1021 = vmatpush.msra.mxu0 %v992
        %1022 = vmatpush.msra.mxu0 %v991
        %1023 = vmatpush.msra.mxu0 %v990
        %1024 = vmatpush.msra.mxu0 %v989
        %1025 = vmatpush.msra.mxu0 %v988
        %1026 = vmatpush.msra.mxu0 %v987
        %1027 = vmatpush.msra.mxu0 %v986
        %1028 = vmatpush.msra.mxu0 %v985
        %1029 = vmatpush.msra.mxu0 %v984
        %1030 = vmatpush.msra.mxu0 %v983
        %1031 = vmatpush.msra.mxu0 %v982
        %1032 = vmatpush.msra.mxu0 %v981
        %1033 = vmatpush.msra.mxu0 %v980
        %1034 = vmatmul.f32.gmra.mxu0 %v962
        %v1035 = vpop.f32.mrf.mxu0
        %v1036 = vadd.f32 %v1016, %v1035
        %1037 = vdwg.mxu0
        %v1038 = vadd.f32 %v1036, %v759
        %v1039 = vld [vmem:[%s8] sm:$0x1]
        %v1040 = vmul.f32 %v1038, %v1038
        %1041 = vadd.xlane.f32.xlu0 %v1040
        %v1042 = vpop.xlane.xlu0 %1041
        %v1043 = vmul.f32 %v1042, %v487
        %v1044 = vrsqrt.pop %v1043
        %v1045 = vmul.f32 %v1044, %v1043
        %v1046 = vmul.f32 %v1045, %v1044
        %v1047 = vmul.f32 0.5, %v1046
        %v1048 = vsub.f32 1.5, %v1047
        %v1049 = vmul.f32 %v1044, %v1048
        %v1050 = vmul.f32 %v1043, %v1049
        %vm1051 = vcmp.eq.f32.partialorder %v1043, inf
        %v1052 = vsel %vm1051, %v1043, %v1050
        %vm1053 = vcmp.eq.f32.partialorder %v1043, 0.0
        %v1054 = vand.u32 %v1043, 2147483648
        %v1055 = vsel %vm1053, %v1054, %v1052
        %v1056 = vadd.f32 %v1055, 1e-08
        %v1057 = vrcp.pop %v1056
        %v1058 = vmul.f32 %v1056, %v1057
        %v1059 = vsub.f32 1.0, %v1058
        %v1060 = vmul.f32 %v1057, %v1059
        %v1061 = vadd.f32 %v1057, %v1060
        %vm1062 = vweird.f32 %v1056
        %vm1063 = vweird.f32 %v1057
        %vm1064 = vmor %vm1062, %vm1063
        %v1065 = vsel %vm1064, %v1057, %v1061
        %v1066 = vand.u32 2147483647, %v1056
        %vm1067 = vcmp.eq.f32.partialorder %v1066, 8.507059e+37
        %v1068 = vand.u32 %v1056, 2147483648
        %v1069 = vor.u32 1.1754944e-38, %v1068
        %v1070 = vsel %vm1067, %v1069, %v1065
        %v1071 = vmul.f32 %v1038, %v1070
        %v1073 = vperm.slane %v1039, 0
        %v1075 = vmul.f32 %v1071, %v1073
        %v1076 = vld [vmem:[#allocation2] sm:$0x1]
        %v1077 = vrot.slane %v1075, 4
        %v1078 = vadd.f32 %v1075, %v1077
        %v1079 = vrot.slane %v1078, 2
        %v1080 = vadd.f32 %v1078, %v1079
        %v1081 = vrot.slane %v1080, 1
        %v1082 = vadd.f32 %v1080, %v1081
        %v1083 = vadd.f32 %v1076, %v1082
        %1084 = vst [vmem:[#allocation2] sm:$0x1] %v1083
        // Predicated region
        $region77: #{tpu_custom_call.1} parent=63 // pred_check
          %p1085 = pneg %p438
        $region78: #{tpu_custom_call.1} parent=63 // pred_check_branch
          %1087 = sbr.rel (%p1085) target = $region80
        $region79: #{tpu_custom_call.1} parent=63 // pred_region
          %v1088 = vld [vmem:[#allocation2] sm:$0x1]
          %v1089 = vmul.f32 %v1088, 0.125
          %v1090 = vld [vmem:[%s9] sm:$0xff]
          %v1091 = vld [vmem:[%s9 + $0x8] sm:$0xff]
          %v1092 = vld [vmem:[%s9 + $0x10] sm:$0xff]
          %v1093 = vld [vmem:[%s9 + $0x18] sm:$0xff]
          %v1094 = vld [vmem:[%s9 + $0x20] sm:$0xff]
          %v1095 = vld [vmem:[%s9 + $0x28] sm:$0xff]
          %v1096 = vld [vmem:[%s9 + $0x30] sm:$0xff]
          %v1097 = vld [vmem:[%s9 + $0x38] sm:$0xff]
          %v1098 = vld [vmem:[%s9 + $0x40] sm:$0xff]
          %v1099 = vld [vmem:[%s9 + $0x48] sm:$0xff]
          %v1100 = vld [vmem:[%s9 + $0x50] sm:$0xff]
          %v1101 = vld [vmem:[%s9 + $0x58] sm:$0xff]
          %v1102 = vld [vmem:[%s9 + $0x60] sm:$0xff]
          %v1103 = vld [vmem:[%s9 + $0x68] sm:$0xff]
          %v1104 = vld [vmem:[%s9 + $0x70] sm:$0xff]
          %v1105 = vld [vmem:[%s9 + $0x78] sm:$0xff]
          %v1106 = vld [vmem:[%s10] sm:$0x1]
          %1107 = vmatpush.msra.mxu0 %v1105
          %1108 = vmatpush.msra.mxu0 %v1104
          %1109 = vmatpush.msra.mxu0 %v1103
          %1110 = vmatpush.msra.mxu0 %v1102
          %1111 = vmatpush.msra.mxu0 %v1101
          %1112 = vmatpush.msra.mxu0 %v1100
          %1113 = vmatpush.msra.mxu0 %v1099
          %1114 = vmatpush.msra.mxu0 %v1098
          %1115 = vmatpush.msra.mxu0 %v1097
          %1116 = vmatpush.msra.mxu0 %v1096
          %1117 = vmatpush.msra.mxu0 %v1095
          %1118 = vmatpush.msra.mxu0 %v1094
          %1119 = vmatpush.msra.mxu0 %v1093
          %1120 = vmatpush.msra.mxu0 %v1092
          %1121 = vmatpush.msra.mxu0 %v1091
          %1122 = vmatpush.msra.mxu0 %v1090
          %1123 = vmatmul.f32.gmra.mxu0 %v1089
          %v1124 = vpop.f32.mrf.mxu0
          %v1125 = vadd.f32 %v1106, %v1124
          %1126 = vdwg.mxu0
          %vm1127 = vcmask 32768
          %1128 = vst.msk [vmem:[%s430] sm:$0x1] %vm1127, %v1125
        $region80: #{tpu_custom_call.1} parent=63 // pred_fallthru
          _
        %s1129 = sand.u32 %s285, 1
        %s1130 = scalar_lea.sflag [#allocation5], %s1129
        %s1131 = sand.u32 %s285, 1
        %s1132 = scalar_lea.vmem [#allocation8], %s1131
        // Predicated region
        $region81: #{tpu_custom_call.1} parent=63 // pred_check
          %p1133 = pneg %p295
        $region82: #{tpu_custom_call.1} parent=63 // pred_check_branch
          %1135 = sbr.rel (%p1133) target = $region84
        $region83: #{tpu_custom_call.1} parent=63 // pred_region
          %1137 = vsyncadd %s1130, 0
          %s1138 = scalar_lea.hbm %s11, %s31
          %s1140 = sshll.u32 %s1132, 4
          %s1141 = int_to_ptr.vmem [resolvable:$true] %s1140
          %s1142 = sshll.u32 %s1138, 4
          %s1143 = int_to_ptr.hbm [resolvable:$true] %s1142
          %1145 = dma.vmem_to_hbm [thread:$0]  %s1141, 16, %s1143, %s1130
        $region84: #{tpu_custom_call.1} parent=63 // pred_fallthru
          _
      $region64: #{tpu_custom_call.1} parent=5 // pred_fallthru
        _
      %p1146 = scmp.le.s32.totalorder 2, %s22
      // Predicated region
      $region85: #{tpu_custom_call.1} parent=5 // pred_check
        %p1147 = pneg %p1146
      $region86: #{tpu_custom_call.1} parent=5 // pred_check_branch
        %1149 = sbr.rel (%p1147) target = $region88
      $region87: #{tpu_custom_call.1} parent=5 // pred_region
        %s1150 = ssub.s32 %s22, 2
        // Predicated region
        $region89: #{tpu_custom_call.1} parent=87 // pred_check
          %p1151 = pneg %p301
        $region90: #{tpu_custom_call.1} parent=87 // pred_check_branch
          %1153 = sbr.rel (%p1151) target = $region92
        $region91: #{tpu_custom_call.1} parent=87 // pred_region
          %s1154 = sand.u32 %s286, 1
          %s1155 = scalar_lea.sflag [#allocation5], %s1154
          %s1156 = sand.u32 %s286, 1
          %s1157 = scalar_lea.vmem [#allocation8], %s1156
          %1159 = dma.done %s1155, 16
        $region92: #{tpu_custom_call.1} parent=87 // pred_fallthru
          _
      $region88: #{tpu_custom_call.1} parent=5 // pred_fallthru
        _
    $region6: #{tpu_custom_call.1} parent=1 // loop_footer
      %s26 = sadd.s32 1, %s22
    $region7: #{tpu_custom_call.1} parent=1 // loop_footer_branch
      %21 = sbr.rel target = $region3
    $region8: #{tpu_custom_call.1} parent=1 // loop_exit
      _
    %1160 = vsyncpa [#allocation4], 1
    %s1161 = scalar_lea.sflag [#allocation4], 1
    %1162 = vsyncpa %s1161, 1
    %1163 = vsyncpa [#allocation7], 1
    %1164 = vsyncpa [#allocation5], 1
    %s1165 = scalar_lea.sflag [#allocation5], 1
    %1166 = vsyncpa %s1165, 1

</llo_original>
